<compile_context>
chip_gen: v6e
topology: v6e:2x2x1
jax: 0.10.0
libtpu: 0.0.40
codegen_flags: <defaults>
</compile_context>

<pallas_src>
import functools
import math

import numpy as np
import jax
import jax.numpy as jnp
from jax import lax
from jax.experimental import pallas as pl
from jax.experimental.pallas import tpu as pltpu


# ----------------------------------------------------------------------------
# Skeleton-topology bookkeeping (pure python, identical to the PyTorch code)
# ----------------------------------------------------------------------------
def calc_edge_mat(edges):
    edge_num = len(edges)
    edge_mat = [[100000] * edge_num for _ in range(edge_num)]
    for i in range(edge_num):
        edge_mat[i][i] = 0
    for i, a in enumerate(edges):
        for j, b in enumerate(edges):
            link = 0
            for x in range(2):
                for y in range(2):
                    if a[x] == b[y]:
                        link = 1
            if link:
                edge_mat[i][j] = 1
    for k in range(edge_num):
        for i in range(edge_num):
            for j in range(edge_num):
                edge_mat[i][j] = min(edge_mat[i][j], edge_mat[i][k] + edge_mat[k][j])
    return edge_mat


def find_neighbor(edges, d):
    edge_mat = calc_edge_mat(edges)
    neighbor_list = []
    edge_num = len(edge_mat)
    for i in range(edge_num):
        neighbor = []
        for j in range(edge_num):
            if edge_mat[i][j] <= d:
                neighbor.append(j)
        neighbor_list.append(neighbor)
    global_part_neighbor = neighbor_list[0].copy()
    for i in global_part_neighbor:
        neighbor_list[i].append(edge_num)
    neighbor_list.append(global_part_neighbor)
    return neighbor_list


# ----------------------------------------------------------------------------
# Parameter construction (deterministic, mirrors module __init__)
# ----------------------------------------------------------------------------
def make_skeleton_conv_params(key, neighbour_list, in_channels, out_channels,
                              kernel_size, joint_num):
    in_per = in_channels // joint_num
    mask = np.zeros((out_channels, in_channels, kernel_size), np.float32)
    out_per = out_channels // joint_num
    expanded = []
    for neighbour in neighbour_list:
        e = []
        for k in neighbour:
            for i in range(in_per):
                e.append(k * in_per + i)
        expanded.append(e)
    for i, nb in enumerate(expanded):
        mask[out_per * i:out_per * (i + 1), nb, :] = 1.0
    kw, kb = jax.random.split(key)
    fan_in = max(in_channels * kernel_size, 1)
    w = jax.random.normal(kw, (out_channels, in_channels, kernel_size),
                          jnp.float32) * (1.0 / math.sqrt(fan_in))
    b = jax.random.normal(kb, (out_channels,), jnp.float32) * 0.01
    return w * jnp.asarray(mask), b


def make_skeleton_pool(edges, channels_per_edge, last_pool):
    edge_num = len(edges) + 1
    seq_list, pooling_list, new_edges = [], [], []
    degree = [0] * 100
    for e in edges:
        degree[e[0]] += 1
        degree[e[1]] += 1

    def find_seq(j, seq):
        if degree[j] > 2 and j != 0:
            seq_list.append(seq)
            seq = []
        if degree[j] == 1:
            seq_list.append(seq)
            return
        for idx, e in enumerate(edges):
            if e[0] == j:
                find_seq(e[1], seq + [idx])

    find_seq(0, [])
    for seq in seq_list:
        if last_pool:
            pooling_list.append(seq)
            continue
        if len(seq) % 2 == 1:
            pooling_list.append([seq[0]])
            new_edges.append(edges[seq[0]])
            seq = seq[1:]
        for i in range(0, len(seq), 2):
            pooling_list.append([seq[i], seq[i + 1]])
            new_edges.append([edges[seq[i]][0], edges[seq[i + 1]][1]])
    pooling_list.append([edge_num - 1])
    w = np.zeros((len(pooling_list) * channels_per_edge,
                  edge_num * channels_per_edge), np.float32)
    for i, pair in enumerate(pooling_list):
        for j in pair:
            for c in range(channels_per_edge):
                w[i * channels_per_edge + c, j * channels_per_edge + c] = 1.0 / len(pair)
    return np.asarray(w), pooling_list, new_edges


def make_skeleton_unpool(pooling_list, channels_per_edge):
    input_edge_num = len(pooling_list)
    output_edge_num = sum(len(t) for t in pooling_list)
    w = np.zeros((output_edge_num * channels_per_edge,
                  input_edge_num * channels_per_edge), np.float32)
    for i, pair in enumerate(pooling_list):
        for j in pair:
            for c in range(channels_per_edge):
                w[j * channels_per_edge + c, i * channels_per_edge + c] = 1.0
    return np.asarray(w)


class Args:
    window_size = 16
    rotation = "quaternion"
    swap_dim = 1
    pos_repr = "4d"          # 4d quaternions -> no extra channel concat / slice
    num_layers = 2
    kernel_size = 3
    skeleton_dist = 1
    skeleton_pool = "mean"
    padding_mode = "reflect"
    upsampling = "linear"
    add_offset = False
    skeleton_info = ""


def build_body_part_generator(args, edges, key):
    """Returns raw (unfused) per-layer parameters (used for both paths)."""
    K = args.kernel_size
    padding = (K - 1) // 2
    channel_base = [4]                              # quaternion, swap_dim == 1
    for _ in range(args.num_layers):
        channel_base.append(channel_base[-1] * 2)
    topologies = [edges]
    edge_num = [len(edges) + 1]
    channel_list = []
    pooling_lists = []
    raw_enc = []
    for i in range(args.num_layers):
        neighbor_list = find_neighbor(topologies[i], args.skeleton_dist)
        in_channels = channel_base[i] * edge_num[i]
        out_channels = channel_base[i + 1] * edge_num[i]
        if i == 0:
            channel_list.append(in_channels)
        channel_list.append(out_channels)
        key, sub = jax.random.split(key)
        w, b = make_skeleton_conv_params(sub, neighbor_list, in_channels,
                                         out_channels, K, edge_num[i])
        last_pool = (i == args.num_layers - 1)
        pool_w, plist, new_edges = make_skeleton_pool(
            topologies[i], out_channels // len(neighbor_list), last_pool)
        raw_enc.append(dict(conv_w=w, conv_b=b, pool_w=pool_w, padding=padding))
        topologies.append(new_edges)
        pooling_lists.append(plist)
        edge_num.append(len(new_edges) + 1)

    raw_dec = []
    for i in range(args.num_layers):
        in_channels = channel_list[args.num_layers - i]
        out_channels = in_channels // 2
        neighbor_list = find_neighbor(topologies[args.num_layers - i - 1],
                                      args.skeleton_dist)
        use_bias = not (i != 0 and i != args.num_layers - 1)
        unpool_w = make_skeleton_unpool(pooling_lists[args.num_layers - i - 1],
                                        in_channels // len(neighbor_list))
        key, sub = jax.random.split(key)
        w, b = make_skeleton_conv_params(sub, neighbor_list, in_channels,
                                         out_channels, K,
                                         edge_num[args.num_layers - i - 1])
        raw_dec.append(dict(unpool_w=unpool_w, conv_w=w,
                            conv_b=(b if use_bias else None),
                            padding=padding,
                            last=(i == args.num_layers - 1)))
    return raw_enc, raw_dec, channel_list[0]


# ----------------------------------------------------------------------------
# Build-time fusion: fold every layer (conv taps + pool/unpool + upsample +
# reflect pad + stride + bias) into ONE padded (D, D) matrix acting on
# vec(x) (C-major, L-minor) with an appended constant-1 row carrying the bias.
# ----------------------------------------------------------------------------
def _reflect_pad_matrix(L, pad):
    """P (L, L+2p): padded = x @ P  (PyTorch 'reflect' padding)."""
    Lp = L + 2 * pad
    P = np.zeros((L, Lp), np.float32)
    for lp in range(Lp):
        l = lp - pad
        if l < 0:
            l = -l
        elif l >= L:
            l = 2 * (L - 1) - l
        P[l, lp] = 1.0
    return P


def _tap_select_matrix(Lp, K, k, stride):
    """S_k (Lp, Lout): (xp @ S_k)[:, t] = xp[:, stride*t + k]."""
    Lout = (Lp - K) // stride + 1
    S = np.zeros((Lp, Lout), np.float32)
    for t in range(Lout):
        S[stride * t + k, t] = 1.0
    return S


def _upsample_matrix_x2(L):
    """U (L, 2L): nn.Upsample(scale=2, mode='linear', align_corners=False)."""
    U = np.zeros((L, 2 * L), np.float32)
    for t in range(L):
        U[t, 2 * t] += 0.75
        U[max(t - 1, 0), 2 * t] += 0.25
        U[t, 2 * t + 1] += 0.75
        U[min(t + 1, L - 1), 2 * t + 1] += 0.25
    return U


def fuse_network_kron(raw_enc, raw_dec, window_size, kernel_size):
    K = kernel_size
    pad = (K - 1) // 2
    layers = []   # (Wk list, Rk list, bias, leaky, Lin, Lout)
    L = window_size
    # Encoder: conv(stride 2, reflect pad) -> pool -> LeakyReLU(0.2)
    for lyr in raw_enc:
        conv_w = np.asarray(lyr["conv_w"])        # (Cout, Cin, K), already masked
        conv_b = np.asarray(lyr["conv_b"])
        pool_w = np.asarray(lyr["pool_w"])        # (Mp, Cout)
        Lp = L + 2 * pad
        Lout = (Lp - K) // 2 + 1
        P = _reflect_pad_matrix(L, pad)
        Wk = [pool_w @ conv_w[:, :, k] for k in range(K)]                    # (Mp, Cin)
        Rk = [P @ _tap_select_matrix(Lp, K, k, 2) for k in range(K)]          # (L, Lout)
        layers.append((Wk, Rk, pool_w @ conv_b, True, L, Lout))
        L = Lout
    latent_index = len(raw_enc) - 1
    # Decoder: upsample x2 -> unpool -> conv(stride 1, reflect pad) -> LeakyReLU?
    for lyr in raw_dec:
        conv_w = np.asarray(lyr["conv_w"])        # (Cout, Cin, K)
        unpool_w = np.asarray(lyr["unpool_w"])    # (Cin, Cprev)
        Cout = conv_w.shape[0]
        conv_b = (np.asarray(lyr["conv_b"]) if lyr["conv_b"] is not None
                  else np.zeros((Cout,), np.float32))
        Lup = 2 * L
        Lp = Lup + 2 * pad
        Lout = Lp - K + 1                         # == Lup since pad = (K-1)//2
        U = _upsample_matrix_x2(L)
        P = _reflect_pad_matrix(Lup, pad)
        Wk = [conv_w[:, :, k] @ unpool_w for k in range(K)]                   # (Cout, Cprev)
        Rk = [U @ P @ _tap_select_matrix(Lp, K, k, 1) for k in range(K)]      # (L, Lout)
        layers.append((Wk, Rk, conv_b, not lyr["last"], L, Lout))
        L = Lout

    # Kronecker fold: M_l[o*Lout+t, c*Lin+l] = sum_k W_k[o,c] * R_k[l,t]
    kron_layers = []
    dims = []
    for Wk, Rk, bias, leaky, Lin, Lout in layers:
        Cout, Cin = Wk[0].shape
        rows, cols = Cout * Lout, Cin * Lin
        M = np.zeros((rows, cols), np.float32)
        for W, R in zip(Wk, Rk):
            M += np.kron(W, R.T)
        bvec = np.repeat(bias.astype(np.float32), Lout)      # bias[o] at o*Lout+t
        kron_layers.append((M, bvec, leaky, rows, cols))
        dims += [rows + 1, cols + 1]

    # One uniform padded dim D (multiple of 128) -> every matmul and store is
    # perfectly (8,128)-aligned and the ones-row/zero-pad propagates exactly.
    D = max(128, int(np.ceil(max(dims) / 128.0)) * 128)
    slab = np.zeros((len(kron_layers), D, D), np.float32)
    for li, (M, bvec, leaky, rows, cols) in enumerate(kron_layers):
        slab[li, :rows, :cols] = M
        slab[li, :rows, cols] = bvec          # bias column hits the ones row of input
        slab[li, rows, cols] = 1.0            # propagate the ones row to the output

    meta = dict(
        D=D,
        leaky_flags=tuple(bool(kl[2]) for kl in kron_layers),
        latent_index=latent_index,
        lat_rows=kron_layers[latent_index][3],
        out_rows=kron_layers[-1][3],
        in_shape=(layers[0][0][0].shape[1], layers[0][4]),               # (Cin0, L0)
        out_shape=(layers[-1][0][0].shape[0], layers[-1][5]),            # (Cout, Lout)
        lat_shape=(layers[latent_index][0][0].shape[0], layers[latent_index][5]),
    )
    return jnp.asarray(slab), meta


# ----------------------------------------------------------------------------
# The single fused Pallas kernel: whole encoder + decoder, batch on the lanes.
# ----------------------------------------------------------------------------
def _net_kernel(x_ref, m_ref, out_ref, lat_ref, *,
                leaky_flags, latent_index, lat_rows, out_rows):
    h = x_ref[...]                                            # (D, B_tile) f32
    for li, leaky in enumerate(leaky_flags):                  # static unroll (4 layers)
        h = jnp.dot(m_ref[li], h, preferred_element_type=jnp.float32)  # (D,D)@(D,Bt)
        if leaky:
            # LeakyReLU(0.2); the ones row (==1) and zero-pad rows are unaffected.
            h = jnp.where(h >= 0, h, jnp.float32(0.2) * h)
        if li == latent_index:
            lat_ref[...] = h[:lat_rows, :]                    # lane-dense, aligned store
    out_ref[...] = h[:out_rows, :]                            # lane-dense, aligned store


def forward_pallas(x, m_slab, meta, *, b_tile=128):
    x = jnp.asarray(x, jnp.float32)
    B, C0, L0 = x.shape
    if (C0, L0) != tuple(meta["in_shape"]):
        raise ValueError(
            f"fused network built for input (C,L)={meta['in_shape']}, got {(C0, L0)}")
    D = meta["D"]
    n_layers = m_slab.shape[0]
    n_tiles = -(-B // b_tile)
    B_pad = n_tiles * b_tile

    # vec(x) in (C-major, L-minor) order, ones row appended (bias rides the MXU),
    # zero-padded to (D, B_pad) so batch fills the lane axis.
    xv = x.reshape(B, C0 * L0).T                                          # (C0*L0, B)
    xv = jnp.concatenate([xv, jnp.ones((1, B), jnp.float32)], axis=0)     # ones row
    xv = jnp.pad(xv, ((0, D - (C0 * L0 + 1)), (0, B_pad - B)))            # (D, B_pad)

    out_rows, lat_rows = meta["out_rows"], meta["lat_rows"]
    kernel = functools.partial(_net_kernel,
                               leaky_flags=meta["leaky_flags"],
                               latent_index=meta["latent_index"],
                               lat_rows=lat_rows, out_rows=out_rows)

    out_vec, lat_vec = pl.pallas_call(
        kernel,
        out_shape=(jax.ShapeDtypeStruct((out_rows, B_pad), jnp.float32),
                   jax.ShapeDtypeStruct((lat_rows, B_pad), jnp.float32)),
        grid=(n_tiles,),                                       # batch tiles
        in_specs=[
            pl.BlockSpec((D, b_tile), lambda b: (0, b)),       # activations tile
            pl.BlockSpec((n_layers, D, D), lambda b: (0, 0, 0)),  # weight slab, VMEM-resident
        ],
        out_specs=(pl.BlockSpec((out_rows, b_tile), lambda b: (0, b)),
                   pl.BlockSpec((lat_rows, b_tile), lambda b: (0, b))),
        compiler_params=pltpu.CompilerParams(
            dimension_semantics=("parallel",)),                # v7x: 2 TCs split batch tiles
    )(xv, m_slab)

    # Layout plumbing back to the PyTorch (B, C, L) convention (cheap, outside kernel).
    Cout, Lout = meta["out_shape"]
    Clat, Llat = meta["lat_shape"]
    out = out_vec[:, :B].T.reshape(B, Cout, Lout)
    lat = lat_vec[:, :B].T.reshape(B, Clat, Llat)
    return out, lat


# ----------------------------------------------------------------------------
# Pure-JAX reference using the ORIGINAL (unfused) parameters
# ----------------------------------------------------------------------------
def upsample_linear_x2(x):
    B, C, L = x.shape
    left = jnp.concatenate([x[:, :, :1], x[:, :, :-1]], axis=-1)
    right = jnp.concatenate([x[:, :, 1:], x[:, :, -1:]], axis=-1)
    even = 0.25 * left + 0.75 * x
    odd = 0.75 * x + 0.25 * right
    return jnp.stack([even, odd], axis=-1).reshape(B, C, 2 * L)


def _ref_conv(x, w, b, stride, padding):
    xp = jnp.pad(x, ((0, 0), (0, 0), (padding, padding)), mode="reflect")
    y = lax.conv_general_dilated(xp, w, (stride,), "VALID",
                                 dimension_numbers=("NCH", "OIH", "NCH"))
    if b is not None:
        y = y + b[None, :, None]
    return y


def forward_reference(x, raw_enc, raw_dec):
    leaky = lambda v: jnp.where(v >= 0, v, 0.2 * v)
    h = x
    for lyr in raw_enc:
        h = _ref_conv(h, lyr["conv_w"], lyr["conv_b"], 2, lyr["padding"])
        h = leaky(jnp.einsum("mk,bkn->bmn", jnp.asarray(lyr["pool_w"]), h))
    lat = h
    out = lat
    for lyr in raw_dec:
        out = upsample_linear_x2(out)
        out = jnp.einsum("mk,bkn->bmn", jnp.asarray(lyr["unpool_w"]), out)
        out = _ref_conv(out, lyr["conv_w"], lyr["conv_b"], 1, lyr["padding"])
        if not lyr["last"]:
            out = leaky(out)
    # pos_repr == '4d'  ->  no trailing-channel slice
    return out, lat


# ----------------------------------------------------------------------------
if __name__ == "__main__":
    args = Args()
    edges = [[0, 1], [1, 2], [0, 3], [3, 4]]     # 5-joint skeleton, 4 edges

    key = jax.random.PRNGKey(0)
    key, pkey, xkey = jax.random.split(key, 3)
    raw_enc, raw_dec, in_channels = build_body_part_generator(args, edges, pkey)
    m_slab, meta = fuse_network_kron(raw_enc, raw_dec,
                                     args.window_size, args.kernel_size)

    B = 2
    x = jax.random.normal(xkey, (B, in_channels, args.window_size), jnp.float32)

    out, lat = forward_pallas(x, m_slab, meta)
    out, lat = jax.block_until_ready(out), jax.block_until_ready(lat)

    ref_out, ref_lat = forward_reference(x, raw_enc, raw_dec)
    assert out.shape == ref_out.shape and lat.shape == ref_lat.shape
    np.testing.assert_allclose(np.asarray(out), np.asarray(ref_out), atol=1e-3, rtol=1e-3)
    np.testing.assert_allclose(np.asarray(lat), np.asarray(ref_lat), atol=1e-3, rtol=1e-3)

    print("KERNEL_OK")
</pallas_src>

<mosaic_0001>
module attributes {stable_mosaic.version = 11 : i64} {
  func.func @_net_kernel(%arg0: i32, %arg1: memref<384x128xf32, #tpu.memory_space<vmem>>, %arg2: memref<4x384x384xf32, #tpu.memory_space<vmem>>, %arg3: memref<320x128xf32, #tpu.memory_space<vmem>>, %arg4: memref<192x128xf32, #tpu.memory_space<vmem>>) attributes {dimension_semantics = [#tpu.dimension_semantics<parallel>], iteration_bounds = array<i64: 1>, scalar_prefetch = 0 : i64, scratch_operands = 0 : i64, tpu.core_type = #tpu.core_type<tc>, window_params = [{transform_indices = @transform_0, window_bounds = array<i64: 384, 128>}, {pipeline_mode = #tpu.pipeline_mode<synchronous>, transform_indices = @transform_1, window_bounds = array<i64: 4, 384, 384>}, {transform_indices = @transform_2, window_bounds = array<i64: 320, 128>}, {transform_indices = @transform_3, window_bounds = array<i64: 192, 128>}]} {
    %c0 = arith.constant 0 : index
    %c0_0 = arith.constant 0 : index
    %0 = vector.load %arg1[%c0, %c0_0] : memref<384x128xf32, #tpu.memory_space<vmem>>, vector<384x128xf32>
    %c0_1 = arith.constant 0 : index
    %c0_2 = arith.constant 0 : index
    %c0_3 = arith.constant 0 : index
    %1 = vector.load %arg2[%c0_1, %c0_2, %c0_3] : memref<4x384x384xf32, #tpu.memory_space<vmem>>, vector<1x384x384xf32>
    %2 = vector.shape_cast %1 : vector<1x384x384xf32> to vector<384x384xf32>
    %cst = arith.constant dense<0.000000e+00> : vector<384x128xf32>
    %3 = tpu.matmul %2, %0, %cst {dimension_numbers = #tpu.dot_dimension_numbers<[1], [0], [0], [1], [0, 0, 1, 1], [], []>} : vector<384x384xf32>, vector<384x128xf32>, vector<384x128xf32> -> vector<384x128xf32>
    %cst_4 = arith.constant 0.000000e+00 : f32
    %4 = vector.broadcast %cst_4 : f32 to vector<384x128xf32>
    %5 = arith.cmpf oge, %3, %4 : vector<384x128xf32>
    %cst_5 = arith.constant 2.000000e-01 : f32
    %6 = vector.broadcast %cst_5 : f32 to vector<384x128xf32>
    %7 = arith.mulf %6, %3 : vector<384x128xf32>
    %8 = arith.select %5, %3, %7 : vector<384x128xi1>, vector<384x128xf32>
    %c1 = arith.constant 1 : index
    %c0_6 = arith.constant 0 : index
    %c0_7 = arith.constant 0 : index
    %9 = vector.load %arg2[%c1, %c0_6, %c0_7] : memref<4x384x384xf32, #tpu.memory_space<vmem>>, vector<1x384x384xf32>
    %10 = vector.shape_cast %9 : vector<1x384x384xf32> to vector<384x384xf32>
    %cst_8 = arith.constant dense<0.000000e+00> : vector<384x128xf32>
    %11 = tpu.matmul %10, %8, %cst_8 {dimension_numbers = #tpu.dot_dimension_numbers<[1], [0], [0], [1], [0, 0, 1, 1], [], []>} : vector<384x384xf32>, vector<384x128xf32>, vector<384x128xf32> -> vector<384x128xf32>
    %cst_9 = arith.constant 0.000000e+00 : f32
    %12 = vector.broadcast %cst_9 : f32 to vector<384x128xf32>
    %13 = arith.cmpf oge, %11, %12 : vector<384x128xf32>
    %cst_10 = arith.constant 2.000000e-01 : f32
    %14 = vector.broadcast %cst_10 : f32 to vector<384x128xf32>
    %15 = arith.mulf %14, %11 : vector<384x128xf32>
    %16 = arith.select %13, %11, %15 : vector<384x128xi1>, vector<384x128xf32>
    %17 = vector.extract_strided_slice %16 {offsets = [0, 0], sizes = [192, 128], strides = [1, 1]} : vector<384x128xf32> to vector<192x128xf32>
    %c0_11 = arith.constant 0 : index
    %c0_12 = arith.constant 0 : index
    %18 = vector.load %arg4[%c0_11, %c0_12] : memref<192x128xf32, #tpu.memory_space<vmem>>, vector<192x128xf32>
    tpu.vector_store %arg4[%c0_11, %c0_12], %17 {strides = array<i32>} : memref<192x128xf32, #tpu.memory_space<vmem>>, vector<192x128xf32>,
    %c2 = arith.constant 2 : index
    %c0_13 = arith.constant 0 : index
    %c0_14 = arith.constant 0 : index
    %19 = vector.load %arg2[%c2, %c0_13, %c0_14] : memref<4x384x384xf32, #tpu.memory_space<vmem>>, vector<1x384x384xf32>
    %20 = vector.shape_cast %19 : vector<1x384x384xf32> to vector<384x384xf32>
    %cst_15 = arith.constant dense<0.000000e+00> : vector<384x128xf32>
    %21 = tpu.matmul %20, %16, %cst_15 {dimension_numbers = #tpu.dot_dimension_numbers<[1], [0], [0], [1], [0, 0, 1, 1], [], []>} : vector<384x384xf32>, vector<384x128xf32>, vector<384x128xf32> -> vector<384x128xf32>
    %cst_16 = arith.constant 0.000000e+00 : f32
    %22 = vector.broadcast %cst_16 : f32 to vector<384x128xf32>
    %23 = arith.cmpf oge, %21, %22 : vector<384x128xf32>
    %cst_17 = arith.constant 2.000000e-01 : f32
    %24 = vector.broadcast %cst_17 : f32 to vector<384x128xf32>
    %25 = arith.mulf %24, %21 : vector<384x128xf32>
    %26 = arith.select %23, %21, %25 : vector<384x128xi1>, vector<384x128xf32>
    %c3 = arith.constant 3 : index
    %c0_18 = arith.constant 0 : index
    %c0_19 = arith.constant 0 : index
    %27 = vector.load %arg2[%c3, %c0_18, %c0_19] : memref<4x384x384xf32, #tpu.memory_space<vmem>>, vector<1x384x384xf32>
    %28 = vector.shape_cast %27 : vector<1x384x384xf32> to vector<384x384xf32>
    %cst_20 = arith.constant dense<0.000000e+00> : vector<384x128xf32>
    %29 = tpu.matmul %28, %26, %cst_20 {dimension_numbers = #tpu.dot_dimension_numbers<[1], [0], [0], [1], [0, 0, 1, 1], [], []>} : vector<384x384xf32>, vector<384x128xf32>, vector<384x128xf32> -> vector<384x128xf32>
    %30 = vector.extract_strided_slice %29 {offsets = [0, 0], sizes = [320, 128], strides = [1, 1]} : vector<384x128xf32> to vector<320x128xf32>
    %c0_21 = arith.constant 0 : index
    %c0_22 = arith.constant 0 : index
    %31 = vector.load %arg3[%c0_21, %c0_22] : memref<320x128xf32, #tpu.memory_space<vmem>>, vector<320x128xf32>
    tpu.vector_store %arg3[%c0_21, %c0_22], %30 {strides = array<i32>} : memref<320x128xf32, #tpu.memory_space<vmem>>, vector<320x128xf32>,
    return
  }
  func.func @transform_0(%arg0: i32) -> (i32, i32) {
    %c0_i32 = arith.constant 0 : i32
    %c0_i32_0 = arith.constant 0 : i32
    return %c0_i32, %arg0 : i32, i32
  }
  func.func @transform_1(%arg0: i32) -> (i32, i32, i32) {
    %c0_i32 = arith.constant 0 : i32
    %c0_i32_0 = arith.constant 0 : i32
    %c0_i32_1 = arith.constant 0 : i32
    %c0_i32_2 = arith.constant 0 : i32
    return %c0_i32, %c0_i32_0, %c0_i32_1 : i32, i32, i32
  }
  func.func @transform_2(%arg0: i32) -> (i32, i32) {
    %c0_i32 = arith.constant 0 : i32
    %c0_i32_0 = arith.constant 0 : i32
    return %c0_i32, %arg0 : i32, i32
  }
  func.func @transform_3(%arg0: i32) -> (i32, i32) {
    %c0_i32 = arith.constant 0 : i32
    %c0_i32_0 = arith.constant 0 : i32
    return %c0_i32, %arg0 : i32, i32
  }
}

</mosaic_0001>

<llo_original>
// kernel: tpu_custom_call.1
$region0: #{tpu_custom_call.1}
  #allocation0 [shape = 'u32[]', space=smem, size = 0x4, offset = 0x4, fixed_abs, tag = 'smem constant byte address 0x4 - core index']
  #allocation1 [shape = 'u32[144,128]{1,0:T(1,128)}', space=vmem, size = 0x12000, scoped, tag = 'internal scratch']
  %s0 = inlined_call_operand.hbm [shape: f32[384,128], index: 0, kind: input, shape index: {}]
  %s1 = inlined_call_operand.hbm [shape: f32[4,384,384], index: 1, kind: input, shape index: {}]
  %s2 = inlined_call_operand.hbm [shape: f32[320,128], index: 2, kind: output, shape index: {0}]
  %s3 = inlined_call_operand.hbm [shape: f32[192,128], index: 3, kind: output, shape index: {1}]
  %4 = xla_tuple %s2, %s3
  %s5 = sld [smem:[#allocation0]]
  $region34: #{tpu_custom_call.1} parent=0
    _
  %s7 = ssub.s32 1, %s5
  %s8 = scalar_select 0, %s7, %s5
  $region1: #{tpu_custom_call.1} parent=0
    #allocation2 [shape = 'u8[196608]{0}', space=vmem, size = 0x30000, scoped, tag = 'input window, operand 0, single buffered']
    #allocation3 [shape = 's32[1]{0}', space=sflag, size = 0x4, scoped, tag = 'scoped memory for tpu_custom_call.1']
    #allocation4 [shape = 's32[1]{0}', space=sflag, size = 0x4, scoped, tag = 'scoped memory for tpu_custom_call.1']
    #allocation5 [shape = 'u8[2359296]{0}', space=vmem, size = 0x240000, scoped, tag = 'input window, operand 1, single buffered']
    #allocation6 [shape = 's32[1]{0}', space=sflag, size = 0x4, scoped, tag = 'scoped memory for tpu_custom_call.1']
    #allocation7 [shape = 'u8[163840]{0}', space=vmem, size = 0x28000, scoped, tag = 'output window, operand 0, single buffered']
    #allocation8 [shape = 'u8[98304]{0}', space=vmem, size = 0x18000, scoped, tag = 'output window, operand 1, single buffered']
    #allocation9 [shape = 's32[1]{0}', space=sflag, size = 0x4, scoped, tag = 'scoped memory for tpu_custom_call.1']
    %9 = vsyncpa [#allocation3], 0
    %10 = vsyncpa [#allocation6], 0
    %11 = vsyncpa [#allocation4], 0
    %12 = vsyncpa [#allocation9], 0
    // Predicated region
    $region2: #{tpu_custom_call.1} parent=1 // pred_check
      _
    $region3: #{tpu_custom_call.1} parent=1 // pred_check_branch
      %14 = sbr.rel (0) target = $region5
    $region4: #{tpu_custom_call.1} parent=1 // pred_region
      %s16 = ssub.s32 6144, 6144
      %17 = vsyncadd [#allocation3], %s16
      %s18 = sshll.u32 [#allocation2], 4
      %s19 = int_to_ptr.vmem [resolvable:$true] %s18
      %24 = dma.hbm_to_vmem [thread:$0]  %s0, 6144, %s19, [#allocation3], 128, 128, 8
    $region5: #{tpu_custom_call.1} parent=1 // pred_fallthru
      _
    // Predicated region
    $region6: #{tpu_custom_call.1} parent=1 // pred_check
      _
    $region7: #{tpu_custom_call.1} parent=1 // pred_check_branch
      %26 = sbr.rel (0) target = $region9
    $region8: #{tpu_custom_call.1} parent=1 // pred_region
      %s28 = ssub.s32 73728, 73728
      %29 = vsyncadd [#allocation6], %s28
      %s30 = sshll.u32 [#allocation5], 4
      %s31 = int_to_ptr.vmem [resolvable:$true] %s30
      %36 = dma.hbm_to_vmem [thread:$0]  %s1, 73728, %s31, [#allocation6], 384, 384, 24
    $region9: #{tpu_custom_call.1} parent=1 // pred_fallthru
      _
    // Predicated region
    $region10: #{tpu_custom_call.1} parent=1 // pred_check
      _
    $region11: #{tpu_custom_call.1} parent=1 // pred_check_branch
      %38 = sbr.rel (0) target = $region13
    $region12: #{tpu_custom_call.1} parent=1 // pred_region
      %39 = dma.done [#allocation3], 6144
    $region13: #{tpu_custom_call.1} parent=1 // pred_fallthru
      _
    // Predicated region
    $region14: #{tpu_custom_call.1} parent=1 // pred_check
      _
    $region15: #{tpu_custom_call.1} parent=1 // pred_check_branch
      %41 = sbr.rel (0) target = $region17
    $region16: #{tpu_custom_call.1} parent=1 // pred_region
      %42 = dma.done [#allocation6], 73728
    $region17: #{tpu_custom_call.1} parent=1 // pred_fallthru
      _
    %v43 = vld [vmem:[#allocation2] sm:$0xff]
    %v44 = vld [vmem:[#allocation2 + $0x8] sm:$0xff]
    %v45 = vld [vmem:[#allocation2 + $0x10] sm:$0xff]
    %v46 = vld [vmem:[#allocation2 + $0x18] sm:$0xff]
    %v47 = vld [vmem:[#allocation2 + $0x20] sm:$0xff]
    %v48 = vld [vmem:[#allocation2 + $0x28] sm:$0xff]
    %v49 = vld [vmem:[#allocation2 + $0x30] sm:$0xff]
    %v50 = vld [vmem:[#allocation2 + $0x38] sm:$0xff]
    %v51 = vld [vmem:[#allocation2 + $0x40] sm:$0xff]
    %v52 = vld [vmem:[#allocation2 + $0x48] sm:$0xff]
    %v53 = vld [vmem:[#allocation2 + $0x50] sm:$0xff]
    %v54 = vld [vmem:[#allocation2 + $0x58] sm:$0xff]
    %v55 = vld [vmem:[#allocation2 + $0x60] sm:$0xff]
    %v56 = vld [vmem:[#allocation2 + $0x68] sm:$0xff]
    %v57 = vld [vmem:[#allocation2 + $0x70] sm:$0xff]
    %v58 = vld [vmem:[#allocation2 + $0x78] sm:$0xff]
    %v59 = vld [vmem:[#allocation2 + $0x80] sm:$0xff]
    %v60 = vld [vmem:[#allocation2 + $0x88] sm:$0xff]
    %v61 = vld [vmem:[#allocation2 + $0x90] sm:$0xff]
    %v62 = vld [vmem:[#allocation2 + $0x98] sm:$0xff]
    %v63 = vld [vmem:[#allocation2 + $0xa0] sm:$0xff]
    %v64 = vld [vmem:[#allocation2 + $0xa8] sm:$0xff]
    %v65 = vld [vmem:[#allocation2 + $0xb0] sm:$0xff]
    %v66 = vld [vmem:[#allocation2 + $0xb8] sm:$0xff]
    %v67 = vld [vmem:[#allocation2 + $0xc0] sm:$0xff]
    %v68 = vld [vmem:[#allocation2 + $0xc8] sm:$0xff]
    %v69 = vld [vmem:[#allocation2 + $0xd0] sm:$0xff]
    %v70 = vld [vmem:[#allocation2 + $0xd8] sm:$0xff]
    %v71 = vld [vmem:[#allocation2 + $0xe0] sm:$0xff]
    %v72 = vld [vmem:[#allocation2 + $0xe8] sm:$0xff]
    %v73 = vld [vmem:[#allocation2 + $0xf0] sm:$0xff]
    %v74 = vld [vmem:[#allocation2 + $0xf8] sm:$0xff]
    %v75 = vld [vmem:[#allocation2 + $0x100] sm:$0xff]
    %v76 = vld [vmem:[#allocation2 + $0x108] sm:$0xff]
    %v77 = vld [vmem:[#allocation2 + $0x110] sm:$0xff]
    %v78 = vld [vmem:[#allocation2 + $0x118] sm:$0xff]
    %v79 = vld [vmem:[#allocation2 + $0x120] sm:$0xff]
    %v80 = vld [vmem:[#allocation2 + $0x128] sm:$0xff]
    %v81 = vld [vmem:[#allocation2 + $0x130] sm:$0xff]
    %v82 = vld [vmem:[#allocation2 + $0x138] sm:$0xff]
    %v83 = vld [vmem:[#allocation2 + $0x140] sm:$0xff]
    %v84 = vld [vmem:[#allocation2 + $0x148] sm:$0xff]
    %v85 = vld [vmem:[#allocation2 + $0x150] sm:$0xff]
    %v86 = vld [vmem:[#allocation2 + $0x158] sm:$0xff]
    %v87 = vld [vmem:[#allocation2 + $0x160] sm:$0xff]
    %v88 = vld [vmem:[#allocation2 + $0x168] sm:$0xff]
    %v89 = vld [vmem:[#allocation2 + $0x170] sm:$0xff]
    %v90 = vld [vmem:[#allocation2 + $0x178] sm:$0xff]
    %v91 = vld [vmem:[#allocation5] sm:$0xff]
    %v92 = vld [vmem:[#allocation5 + $0x8] sm:$0xff]
    %v93 = vld [vmem:[#allocation5 + $0x10] sm:$0xff]
    %v94 = vld [vmem:[#allocation5 + $0x18] sm:$0xff]
    %v95 = vld [vmem:[#allocation5 + $0x20] sm:$0xff]
    %v96 = vld [vmem:[#allocation5 + $0x28] sm:$0xff]
    %v97 = vld [vmem:[#allocation5 + $0x30] sm:$0xff]
    %v98 = vld [vmem:[#allocation5 + $0x38] sm:$0xff]
    %v99 = vld [vmem:[#allocation5 + $0x40] sm:$0xff]
    %v100 = vld [vmem:[#allocation5 + $0x48] sm:$0xff]
    %v101 = vld [vmem:[#allocation5 + $0x50] sm:$0xff]
    %v102 = vld [vmem:[#allocation5 + $0x58] sm:$0xff]
    %v103 = vld [vmem:[#allocation5 + $0x60] sm:$0xff]
    %v104 = vld [vmem:[#allocation5 + $0x68] sm:$0xff]
    %v105 = vld [vmem:[#allocation5 + $0x70] sm:$0xff]
    %v106 = vld [vmem:[#allocation5 + $0x78] sm:$0xff]
    %v107 = vld [vmem:[#allocation5 + $0x80] sm:$0xff]
    %v108 = vld [vmem:[#allocation5 + $0x88] sm:$0xff]
    %v109 = vld [vmem:[#allocation5 + $0x90] sm:$0xff]
    %v110 = vld [vmem:[#allocation5 + $0x98] sm:$0xff]
    %v111 = vld [vmem:[#allocation5 + $0xa0] sm:$0xff]
    %v112 = vld [vmem:[#allocation5 + $0xa8] sm:$0xff]
    %v113 = vld [vmem:[#allocation5 + $0xb0] sm:$0xff]
    %v114 = vld [vmem:[#allocation5 + $0xb8] sm:$0xff]
    %v115 = vld [vmem:[#allocation5 + $0xc0] sm:$0xff]
    %v116 = vld [vmem:[#allocation5 + $0xc8] sm:$0xff]
    %v117 = vld [vmem:[#allocation5 + $0xd0] sm:$0xff]
    %v118 = vld [vmem:[#allocation5 + $0xd8] sm:$0xff]
    %v119 = vld [vmem:[#allocation5 + $0xe0] sm:$0xff]
    %v120 = vld [vmem:[#allocation5 + $0xe8] sm:$0xff]
    %v121 = vld [vmem:[#allocation5 + $0xf0] sm:$0xff]
    %v122 = vld [vmem:[#allocation5 + $0xf8] sm:$0xff]
    %v123 = vld [vmem:[#allocation5 + $0x100] sm:$0xff]
    %v124 = vld [vmem:[#allocation5 + $0x108] sm:$0xff]
    %v125 = vld [vmem:[#allocation5 + $0x110] sm:$0xff]
    %v126 = vld [vmem:[#allocation5 + $0x118] sm:$0xff]
    %v127 = vld [vmem:[#allocation5 + $0x120] sm:$0xff]
    %v128 = vld [vmem:[#allocation5 + $0x128] sm:$0xff]
    %v129 = vld [vmem:[#allocation5 + $0x130] sm:$0xff]
    %v130 = vld [vmem:[#allocation5 + $0x138] sm:$0xff]
    %v131 = vld [vmem:[#allocation5 + $0x140] sm:$0xff]
    %v132 = vld [vmem:[#allocation5 + $0x148] sm:$0xff]
    %v133 = vld [vmem:[#allocation5 + $0x150] sm:$0xff]
    %v134 = vld [vmem:[#allocation5 + $0x158] sm:$0xff]
    %v135 = vld [vmem:[#allocation5 + $0x160] sm:$0xff]
    %v136 = vld [vmem:[#allocation5 + $0x168] sm:$0xff]
    %v137 = vld [vmem:[#allocation5 + $0x170] sm:$0xff]
    %v138 = vld [vmem:[#allocation5 + $0x178] sm:$0xff]
    %v139 = vld [vmem:[#allocation5 + $0x180] sm:$0xff]
    %v140 = vld [vmem:[#allocation5 + $0x188] sm:$0xff]
    %v141 = vld [vmem:[#allocation5 + $0x190] sm:$0xff]
    %v142 = vld [vmem:[#allocation5 + $0x198] sm:$0xff]
    %v143 = vld [vmem:[#allocation5 + $0x1a0] sm:$0xff]
    %v144 = vld [vmem:[#allocation5 + $0x1a8] sm:$0xff]
    %v145 = vld [vmem:[#allocation5 + $0x1b0] sm:$0xff]
    %v146 = vld [vmem:[#allocation5 + $0x1b8] sm:$0xff]
    %v147 = vld [vmem:[#allocation5 + $0x1c0] sm:$0xff]
    %v148 = vld [vmem:[#allocation5 + $0x1c8] sm:$0xff]
    %v149 = vld [vmem:[#allocation5 + $0x1d0] sm:$0xff]
    %v150 = vld [vmem:[#allocation5 + $0x1d8] sm:$0xff]
    %v151 = vld [vmem:[#allocation5 + $0x1e0] sm:$0xff]
    %v152 = vld [vmem:[#allocation5 + $0x1e8] sm:$0xff]
    %v153 = vld [vmem:[#allocation5 + $0x1f0] sm:$0xff]
    %v154 = vld [vmem:[#allocation5 + $0x1f8] sm:$0xff]
    %v155 = vld [vmem:[#allocation5 + $0x200] sm:$0xff]
    %v156 = vld [vmem:[#allocation5 + $0x208] sm:$0xff]
    %v157 = vld [vmem:[#allocation5 + $0x210] sm:$0xff]
    %v158 = vld [vmem:[#allocation5 + $0x218] sm:$0xff]
    %v159 = vld [vmem:[#allocation5 + $0x220] sm:$0xff]
    %v160 = vld [vmem:[#allocation5 + $0x228] sm:$0xff]
    %v161 = vld [vmem:[#allocation5 + $0x230] sm:$0xff]
    %v162 = vld [vmem:[#allocation5 + $0x238] sm:$0xff]
    %v163 = vld [vmem:[#allocation5 + $0x240] sm:$0xff]
    %v164 = vld [vmem:[#allocation5 + $0x248] sm:$0xff]
    %v165 = vld [vmem:[#allocation5 + $0x250] sm:$0xff]
    %v166 = vld [vmem:[#allocation5 + $0x258] sm:$0xff]
    %v167 = vld [vmem:[#allocation5 + $0x260] sm:$0xff]
    %v168 = vld [vmem:[#allocation5 + $0x268] sm:$0xff]
    %v169 = vld [vmem:[#allocation5 + $0x270] sm:$0xff]
    %v170 = vld [vmem:[#allocation5 + $0x278] sm:$0xff]
    %v171 = vld [vmem:[#allocation5 + $0x280] sm:$0xff]
    %v172 = vld [vmem:[#allocation5 + $0x288] sm:$0xff]
    %v173 = vld [vmem:[#allocation5 + $0x290] sm:$0xff]
    %v174 = vld [vmem:[#allocation5 + $0x298] sm:$0xff]
    %v175 = vld [vmem:[#allocation5 + $0x2a0] sm:$0xff]
    %v176 = vld [vmem:[#allocation5 + $0x2a8] sm:$0xff]
    %v177 = vld [vmem:[#allocation5 + $0x2b0] sm:$0xff]
    %v178 = vld [vmem:[#allocation5 + $0x2b8] sm:$0xff]
    %v179 = vld [vmem:[#allocation5 + $0x2c0] sm:$0xff]
    %v180 = vld [vmem:[#allocation5 + $0x2c8] sm:$0xff]
    %v181 = vld [vmem:[#allocation5 + $0x2d0] sm:$0xff]
    %v182 = vld [vmem:[#allocation5 + $0x2d8] sm:$0xff]
    %v183 = vld [vmem:[#allocation5 + $0x2e0] sm:$0xff]
    %v184 = vld [vmem:[#allocation5 + $0x2e8] sm:$0xff]
    %v185 = vld [vmem:[#allocation5 + $0x2f0] sm:$0xff]
    %v186 = vld [vmem:[#allocation5 + $0x2f8] sm:$0xff]
    %v187 = vld [vmem:[#allocation5 + $0x300] sm:$0xff]
    %v188 = vld [vmem:[#allocation5 + $0x308] sm:$0xff]
    %v189 = vld [vmem:[#allocation5 + $0x310] sm:$0xff]
    %v190 = vld [vmem:[#allocation5 + $0x318] sm:$0xff]
    %v191 = vld [vmem:[#allocation5 + $0x320] sm:$0xff]
    %v192 = vld [vmem:[#allocation5 + $0x328] sm:$0xff]
    %v193 = vld [vmem:[#allocation5 + $0x330] sm:$0xff]
    %v194 = vld [vmem:[#allocation5 + $0x338] sm:$0xff]
    %v195 = vld [vmem:[#allocation5 + $0x340] sm:$0xff]
    %v196 = vld [vmem:[#allocation5 + $0x348] sm:$0xff]
    %v197 = vld [vmem:[#allocation5 + $0x350] sm:$0xff]
    %v198 = vld [vmem:[#allocation5 + $0x358] sm:$0xff]
    %v199 = vld [vmem:[#allocation5 + $0x360] sm:$0xff]
    %v200 = vld [vmem:[#allocation5 + $0x368] sm:$0xff]
    %v201 = vld [vmem:[#allocation5 + $0x370] sm:$0xff]
    %v202 = vld [vmem:[#allocation5 + $0x378] sm:$0xff]
    %v203 = vld [vmem:[#allocation5 + $0x380] sm:$0xff]
    %v204 = vld [vmem:[#allocation5 + $0x388] sm:$0xff]
    %v205 = vld [vmem:[#allocation5 + $0x390] sm:$0xff]
    %v206 = vld [vmem:[#allocation5 + $0x398] sm:$0xff]
    %v207 = vld [vmem:[#allocation5 + $0x3a0] sm:$0xff]
    %v208 = vld [vmem:[#allocation5 + $0x3a8] sm:$0xff]
    %v209 = vld [vmem:[#allocation5 + $0x3b0] sm:$0xff]
    %v210 = vld [vmem:[#allocation5 + $0x3b8] sm:$0xff]
    %v211 = vld [vmem:[#allocation5 + $0x3c0] sm:$0xff]
    %v212 = vld [vmem:[#allocation5 + $0x3c8] sm:$0xff]
    %v213 = vld [vmem:[#allocation5 + $0x3d0] sm:$0xff]
    %v214 = vld [vmem:[#allocation5 + $0x3d8] sm:$0xff]
    %v215 = vld [vmem:[#allocation5 + $0x3e0] sm:$0xff]
    %v216 = vld [vmem:[#allocation5 + $0x3e8] sm:$0xff]
    %v217 = vld [vmem:[#allocation5 + $0x3f0] sm:$0xff]
    %v218 = vld [vmem:[#allocation5 + $0x3f8] sm:$0xff]
    %v219 = vld [vmem:[#allocation5 + $0x400] sm:$0xff]
    %v220 = vld [vmem:[#allocation5 + $0x408] sm:$0xff]
    %v221 = vld [vmem:[#allocation5 + $0x410] sm:$0xff]
    %v222 = vld [vmem:[#allocation5 + $0x418] sm:$0xff]
    %v223 = vld [vmem:[#allocation5 + $0x420] sm:$0xff]
    %v224 = vld [vmem:[#allocation5 + $0x428] sm:$0xff]
    %v225 = vld [vmem:[#allocation5 + $0x430] sm:$0xff]
    %v226 = vld [vmem:[#allocation5 + $0x438] sm:$0xff]
    %v227 = vld [vmem:[#allocation5 + $0x440] sm:$0xff]
    %v228 = vld [vmem:[#allocation5 + $0x448] sm:$0xff]
    %v229 = vld [vmem:[#allocation5 + $0x450] sm:$0xff]
    %v230 = vld [vmem:[#allocation5 + $0x458] sm:$0xff]
    %v231 = vld [vmem:[#allocation5 + $0x460] sm:$0xff]
    %v232 = vld [vmem:[#allocation5 + $0x468] sm:$0xff]
    %v233 = vld [vmem:[#allocation5 + $0x470] sm:$0xff]
    %v234 = vld [vmem:[#allocation5 + $0x478] sm:$0xff]
    %235 = vmatprep.subr.mxu0 0.0
    %236 = vmatpush1.msra.mxu0 %v58
    %237 = vmatprep.subr.mxu0 0.0
    %238 = vmatpush1.msra.mxu0 %v57
    %239 = vmatprep.subr.mxu0 0.0
    %240 = vmatpush1.msra.mxu0 %v56
    %241 = vmatprep.subr.mxu0 0.0
    %242 = vmatpush1.msra.mxu0 %v55
    %243 = vmatprep.subr.mxu0 0.0
    %244 = vmatpush1.msra.mxu0 %v54
    %245 = vmatprep.subr.mxu0 0.0
    %246 = vmatpush1.msra.mxu0 %v53
    %247 = vmatprep.subr.mxu0 0.0
    %248 = vmatpush1.msra.mxu0 %v52
    %249 = vmatprep.subr.mxu0 0.0
    %250 = vmatpush1.msra.mxu0 %v51
    %251 = vmatprep.subr.mxu0 0.0
    %252 = vmatpush1.msra.mxu0 %v50
    %253 = vmatprep.subr.mxu0 0.0
    %254 = vmatpush1.msra.mxu0 %v49
    %255 = vmatprep.subr.mxu0 0.0
    %256 = vmatpush1.msra.mxu0 %v48
    %257 = vmatprep.subr.mxu0 0.0
    %258 = vmatpush1.msra.mxu0 %v47
    %259 = vmatprep.subr.mxu0 0.0
    %260 = vmatpush1.msra.mxu0 %v46
    %261 = vmatprep.subr.mxu0 0.0
    %262 = vmatpush1.msra.mxu0 %v45
    %263 = vmatprep.subr.mxu0 0.0
    %264 = vmatpush1.msra.mxu0 %v44
    %265 = vmatprep.subr.mxu0 0.0
    %266 = vmatpush1.msra.mxu0 %v43
    %267 = vmatprep.subr.mxu0 0.0
    %268 = vmatpush2.msra.mxu0 %v74
    %269 = vmatprep.subr.mxu0 0.0
    %270 = vmatpush2.msra.mxu0 %v73
    %271 = vmatprep.subr.mxu0 0.0
    %272 = vmatpush2.msra.mxu0 %v72
    %273 = vmatprep.subr.mxu0 0.0
    %274 = vmatpush2.msra.mxu0 %v71
    %275 = vmatprep.subr.mxu0 0.0
    %276 = vmatpush2.msra.mxu0 %v70
    %277 = vmatprep.subr.mxu0 0.0
    %278 = vmatpush2.msra.mxu0 %v69
    %279 = vmatprep.subr.mxu0 0.0
    %280 = vmatpush2.msra.mxu0 %v68
    %281 = vmatprep.subr.mxu0 0.0
    %282 = vmatpush2.msra.mxu0 %v67
    %283 = vmatprep.subr.mxu0 0.0
    %284 = vmatpush2.msra.mxu0 %v66
    %285 = vmatprep.subr.mxu0 0.0
    %286 = vmatpush2.msra.mxu0 %v65
    %287 = vmatprep.subr.mxu0 0.0
    %288 = vmatpush2.msra.mxu0 %v64
    %289 = vmatprep.subr.mxu0 0.0
    %290 = vmatpush2.msra.mxu0 %v63
    %291 = vmatprep.subr.mxu0 0.0
    %292 = vmatpush2.msra.mxu0 %v62
    %293 = vmatprep.subr.mxu0 0.0
    %294 = vmatpush2.msra.mxu0 %v61
    %295 = vmatprep.subr.mxu0 0.0
    %296 = vmatpush2.msra.mxu0 %v60
    %297 = vmatprep.subr.mxu0 0.0
    %298 = vmatpush2.msra.mxu0 %v59
    %299 = vmatprep.mubr.f32.mxu0 %v92
    %300 = vmatmul.mubr.f32.gmra.mxu0 %v91
    %v301 = vpop.f32.mrf.mxu0
    %v302 = vadd.f32 0.0, %v301
    %v303 = vpop.f32.mrf.mxu0
    %304 = vmatprep.mubr.f32.mxu0 %v95
    %305 = vmatmul.mubr.f32.gmra.mxu0 %v94
    %v306 = vpop.f32.mrf.mxu0
    %v307 = vadd.f32 0.0, %v306
    %v308 = vpop.f32.mrf.mxu0
    %309 = vmatprep.mubr.f32.mxu0 %v98
    %310 = vmatmul.mubr.f32.gmra.mxu0 %v97
    %v311 = vpop.f32.mrf.mxu0
    %v312 = vadd.f32 0.0, %v311
    %v313 = vpop.f32.mrf.mxu0
    %314 = vmatprep.mubr.f32.mxu0 %v101
    %315 = vmatmul.mubr.f32.gmra.mxu0 %v100
    %v316 = vpop.f32.mrf.mxu0
    %v317 = vadd.f32 0.0, %v316
    %v318 = vpop.f32.mrf.mxu0
    %319 = vmatprep.mubr.f32.mxu0 %v104
    %320 = vmatmul.mubr.f32.gmra.mxu0 %v103
    %v321 = vpop.f32.mrf.mxu0
    %v322 = vadd.f32 0.0, %v321
    %v323 = vpop.f32.mrf.mxu0
    %324 = vmatprep.mubr.f32.mxu0 %v107
    %325 = vmatmul.mubr.f32.gmra.mxu0 %v106
    %v326 = vpop.f32.mrf.mxu0
    %v327 = vadd.f32 0.0, %v326
    %v328 = vpop.f32.mrf.mxu0
    %329 = vmatprep.mubr.f32.mxu0 %v110
    %330 = vmatmul.mubr.f32.gmra.mxu0 %v109
    %v331 = vpop.f32.mrf.mxu0
    %v332 = vadd.f32 0.0, %v331
    %v333 = vpop.f32.mrf.mxu0
    %334 = vmatprep.mubr.f32.mxu0 %v113
    %335 = vmatmul.mubr.f32.gmra.mxu0 %v112
    %v336 = vpop.f32.mrf.mxu0
    %v337 = vadd.f32 0.0, %v336
    %v338 = vpop.f32.mrf.mxu0
    %339 = vmatprep.mubr.f32.mxu0 %v116
    %340 = vmatmul.mubr.f32.gmra.mxu0 %v115
    %v341 = vpop.f32.mrf.mxu0
    %v342 = vadd.f32 0.0, %v341
    %v343 = vpop.f32.mrf.mxu0
    %344 = vmatprep.mubr.f32.mxu0 %v119
    %345 = vmatmul.mubr.f32.gmra.mxu0 %v118
    %v346 = vpop.f32.mrf.mxu0
    %v347 = vadd.f32 0.0, %v346
    %v348 = vpop.f32.mrf.mxu0
    %349 = vmatprep.mubr.f32.mxu0 %v122
    %350 = vmatmul.mubr.f32.gmra.mxu0 %v121
    %v351 = vpop.f32.mrf.mxu0
    %v352 = vadd.f32 0.0, %v351
    %v353 = vpop.f32.mrf.mxu0
    %354 = vmatprep.mubr.f32.mxu0 %v125
    %355 = vmatmul.mubr.f32.gmra.mxu0 %v124
    %v356 = vpop.f32.mrf.mxu0
    %v357 = vadd.f32 0.0, %v356
    %v358 = vpop.f32.mrf.mxu0
    %359 = vmatprep.mubr.f32.mxu0 %v128
    %360 = vmatmul.mubr.f32.gmra.mxu0 %v127
    %v361 = vpop.f32.mrf.mxu0
    %v362 = vadd.f32 0.0, %v361
    %v363 = vpop.f32.mrf.mxu0
    %364 = vmatprep.mubr.f32.mxu0 %v131
    %365 = vmatmul.mubr.f32.gmra.mxu0 %v130
    %v366 = vpop.f32.mrf.mxu0
    %v367 = vadd.f32 0.0, %v366
    %v368 = vpop.f32.mrf.mxu0
    %369 = vmatprep.mubr.f32.mxu0 %v134
    %370 = vmatmul.mubr.f32.gmra.mxu0 %v133
    %v371 = vpop.f32.mrf.mxu0
    %v372 = vadd.f32 0.0, %v371
    %v373 = vpop.f32.mrf.mxu0
    %374 = vmatprep.mubr.f32.mxu0 %v137
    %375 = vmatmul.mubr.f32.gmra.mxu0 %v136
    %v376 = vpop.f32.mrf.mxu0
    %v377 = vadd.f32 0.0, %v376
    %v378 = vpop.f32.mrf.mxu0
    %379 = vmatprep.mubr.f32.mxu0 %v140
    %380 = vmatmul.mubr.f32.gmra.mxu0 %v139
    %v381 = vpop.f32.mrf.mxu0
    %v382 = vadd.f32 0.0, %v381
    %v383 = vpop.f32.mrf.mxu0
    %384 = vmatprep.mubr.f32.mxu0 %v143
    %385 = vmatmul.mubr.f32.gmra.mxu0 %v142
    %v386 = vpop.f32.mrf.mxu0
    %v387 = vadd.f32 0.0, %v386
    %v388 = vpop.f32.mrf.mxu0
    %389 = vmatprep.mubr.f32.mxu0 %v146
    %390 = vmatmul.mubr.f32.gmra.mxu0 %v145
    %v391 = vpop.f32.mrf.mxu0
    %v392 = vadd.f32 0.0, %v391
    %v393 = vpop.f32.mrf.mxu0
    %394 = vmatprep.mubr.f32.mxu0 %v149
    %395 = vmatmul.mubr.f32.gmra.mxu0 %v148
    %v396 = vpop.f32.mrf.mxu0
    %v397 = vadd.f32 0.0, %v396
    %v398 = vpop.f32.mrf.mxu0
    %399 = vmatprep.mubr.f32.mxu0 %v152
    %400 = vmatmul.mubr.f32.gmra.mxu0 %v151
    %v401 = vpop.f32.mrf.mxu0
    %v402 = vadd.f32 0.0, %v401
    %v403 = vpop.f32.mrf.mxu0
    %404 = vmatprep.mubr.f32.mxu0 %v155
    %405 = vmatmul.mubr.f32.gmra.mxu0 %v154
    %v406 = vpop.f32.mrf.mxu0
    %v407 = vadd.f32 0.0, %v406
    %v408 = vpop.f32.mrf.mxu0
    %409 = vmatprep.mubr.f32.mxu0 %v158
    %410 = vmatmul.mubr.f32.gmra.mxu0 %v157
    %v411 = vpop.f32.mrf.mxu0
    %v412 = vadd.f32 0.0, %v411
    %v413 = vpop.f32.mrf.mxu0
    %414 = vmatprep.mubr.f32.mxu0 %v161
    %415 = vmatmul.mubr.f32.gmra.mxu0 %v160
    %v416 = vpop.f32.mrf.mxu0
    %v417 = vadd.f32 0.0, %v416
    %v418 = vpop.f32.mrf.mxu0
    %419 = vmatprep.mubr.f32.mxu0 %v164
    %420 = vmatmul.mubr.f32.gmra.mxu0 %v163
    %v421 = vpop.f32.mrf.mxu0
    %v422 = vadd.f32 0.0, %v421
    %v423 = vpop.f32.mrf.mxu0
    %424 = vmatprep.mubr.f32.mxu0 %v167
    %425 = vmatmul.mubr.f32.gmra.mxu0 %v166
    %v426 = vpop.f32.mrf.mxu0
    %v427 = vadd.f32 0.0, %v426
    %v428 = vpop.f32.mrf.mxu0
    %429 = vmatprep.mubr.f32.mxu0 %v170
    %430 = vmatmul.mubr.f32.gmra.mxu0 %v169
    %v431 = vpop.f32.mrf.mxu0
    %v432 = vadd.f32 0.0, %v431
    %v433 = vpop.f32.mrf.mxu0
    %434 = vmatprep.mubr.f32.mxu0 %v173
    %435 = vmatmul.mubr.f32.gmra.mxu0 %v172
    %v436 = vpop.f32.mrf.mxu0
    %v437 = vadd.f32 0.0, %v436
    %v438 = vpop.f32.mrf.mxu0
    %439 = vmatprep.mubr.f32.mxu0 %v176
    %440 = vmatmul.mubr.f32.gmra.mxu0 %v175
    %v441 = vpop.f32.mrf.mxu0
    %v442 = vadd.f32 0.0, %v441
    %v443 = vpop.f32.mrf.mxu0
    %444 = vmatprep.mubr.f32.mxu0 %v179
    %445 = vmatmul.mubr.f32.gmra.mxu0 %v178
    %v446 = vpop.f32.mrf.mxu0
    %v447 = vadd.f32 0.0, %v446
    %v448 = vpop.f32.mrf.mxu0
    %449 = vmatprep.mubr.f32.mxu0 %v182
    %450 = vmatmul.mubr.f32.gmra.mxu0 %v181
    %v451 = vpop.f32.mrf.mxu0
    %v452 = vadd.f32 0.0, %v451
    %v453 = vpop.f32.mrf.mxu0
    %454 = vmatprep.mubr.f32.mxu0 %v185
    %455 = vmatmul.mubr.f32.gmra.mxu0 %v184
    %v456 = vpop.f32.mrf.mxu0
    %v457 = vadd.f32 0.0, %v456
    %v458 = vpop.f32.mrf.mxu0
    %459 = vmatprep.mubr.f32.mxu0 %v188
    %460 = vmatmul.mubr.f32.gmra.mxu0 %v187
    %v461 = vpop.f32.mrf.mxu0
    %v462 = vadd.f32 0.0, %v461
    %v463 = vpop.f32.mrf.mxu0
    %464 = vmatprep.mubr.f32.mxu0 %v191
    %465 = vmatmul.mubr.f32.gmra.mxu0 %v190
    %v466 = vpop.f32.mrf.mxu0
    %v467 = vadd.f32 0.0, %v466
    %v468 = vpop.f32.mrf.mxu0
    %469 = vmatprep.mubr.f32.mxu0 %v194
    %470 = vmatmul.mubr.f32.gmra.mxu0 %v193
    %v471 = vpop.f32.mrf.mxu0
    %v472 = vadd.f32 0.0, %v471
    %v473 = vpop.f32.mrf.mxu0
    %474 = vmatprep.mubr.f32.mxu0 %v197
    %475 = vmatmul.mubr.f32.gmra.mxu0 %v196
    %v476 = vpop.f32.mrf.mxu0
    %v477 = vadd.f32 0.0, %v476
    %v478 = vpop.f32.mrf.mxu0
    %479 = vmatprep.mubr.f32.mxu0 %v200
    %480 = vmatmul.mubr.f32.gmra.mxu0 %v199
    %v481 = vpop.f32.mrf.mxu0
    %v482 = vadd.f32 0.0, %v481
    %v483 = vpop.f32.mrf.mxu0
    %484 = vmatprep.mubr.f32.mxu0 %v203
    %485 = vmatmul.mubr.f32.gmra.mxu0 %v202
    %v486 = vpop.f32.mrf.mxu0
    %v487 = vadd.f32 0.0, %v486
    %v488 = vpop.f32.mrf.mxu0
    %489 = vmatprep.mubr.f32.mxu0 %v206
    %490 = vmatmul.mubr.f32.gmra.mxu0 %v205
    %v491 = vpop.f32.mrf.mxu0
    %v492 = vadd.f32 0.0, %v491
    %v493 = vpop.f32.mrf.mxu0
    %494 = vmatprep.mubr.f32.mxu0 %v209
    %495 = vmatmul.mubr.f32.gmra.mxu0 %v208
    %v496 = vpop.f32.mrf.mxu0
    %v497 = vadd.f32 0.0, %v496
    %v498 = vpop.f32.mrf.mxu0
    %499 = vmatprep.mubr.f32.mxu0 %v212
    %500 = vmatmul.mubr.f32.gmra.mxu0 %v211
    %v501 = vpop.f32.mrf.mxu0
    %v502 = vadd.f32 0.0, %v501
    %v503 = vpop.f32.mrf.mxu0
    %504 = vmatprep.mubr.f32.mxu0 %v215
    %505 = vmatmul.mubr.f32.gmra.mxu0 %v214
    %v506 = vpop.f32.mrf.mxu0
    %v507 = vadd.f32 0.0, %v506
    %v508 = vpop.f32.mrf.mxu0
    %509 = vmatprep.mubr.f32.mxu0 %v218
    %510 = vmatmul.mubr.f32.gmra.mxu0 %v217
    %v511 = vpop.f32.mrf.mxu0
    %v512 = vadd.f32 0.0, %v511
    %v513 = vpop.f32.mrf.mxu0
    %514 = vmatprep.mubr.f32.mxu0 %v221
    %515 = vmatmul.mubr.f32.gmra.mxu0 %v220
    %v516 = vpop.f32.mrf.mxu0
    %v517 = vadd.f32 0.0, %v516
    %v518 = vpop.f32.mrf.mxu0
    %519 = vmatprep.mubr.f32.mxu0 %v224
    %520 = vmatmul.mubr.f32.gmra.mxu0 %v223
    %v521 = vpop.f32.mrf.mxu0
    %v522 = vadd.f32 0.0, %v521
    %v523 = vpop.f32.mrf.mxu0
    %524 = vmatprep.mubr.f32.mxu0 %v227
    %525 = vmatmul.mubr.f32.gmra.mxu0 %v226
    %v526 = vpop.f32.mrf.mxu0
    %v527 = vadd.f32 0.0, %v526
    %v528 = vpop.f32.mrf.mxu0
    %529 = vmatprep.mubr.f32.mxu0 %v230
    %530 = vmatmul.mubr.f32.gmra.mxu0 %v229
    %v531 = vpop.f32.mrf.mxu0
    %v532 = vadd.f32 0.0, %v531
    %v533 = vpop.f32.mrf.mxu0
    %534 = vmatprep.mubr.f32.mxu0 %v233
    %535 = vmatmul.mubr.f32.gmra.mxu0 %v232
    %v536 = vpop.f32.mrf.mxu0
    %v537 = vadd.f32 0.0, %v536
    %v538 = vpop.f32.mrf.mxu0
    %539 = vdwg.mxu0
    %540 = vmatprep.subr.mxu0 0.0
    %541 = vmatpush1.msra.mxu0 %v90
    %542 = vmatprep.subr.mxu0 0.0
    %543 = vmatpush1.msra.mxu0 %v89
    %544 = vmatprep.subr.mxu0 0.0
    %545 = vmatpush1.msra.mxu0 %v88
    %546 = vmatprep.subr.mxu0 0.0
    %547 = vmatpush1.msra.mxu0 %v87
    %548 = vmatprep.subr.mxu0 0.0
    %549 = vmatpush1.msra.mxu0 %v86
    %550 = vmatprep.subr.mxu0 0.0
    %551 = vmatpush1.msra.mxu0 %v85
    %552 = vmatprep.subr.mxu0 0.0
    %553 = vmatpush1.msra.mxu0 %v84
    %554 = vmatprep.subr.mxu0 0.0
    %555 = vmatpush1.msra.mxu0 %v83
    %556 = vmatprep.subr.mxu0 0.0
    %557 = vmatpush1.msra.mxu0 %v82
    %558 = vmatprep.subr.mxu0 0.0
    %559 = vmatpush1.msra.mxu0 %v81
    %560 = vmatprep.subr.mxu0 0.0
    %561 = vmatpush1.msra.mxu0 %v80
    %562 = vmatprep.subr.mxu0 0.0
    %563 = vmatpush1.msra.mxu0 %v79
    %564 = vmatprep.subr.mxu0 0.0
    %565 = vmatpush1.msra.mxu0 %v78
    %566 = vmatprep.subr.mxu0 0.0
    %567 = vmatpush1.msra.mxu0 %v77
    %568 = vmatprep.subr.mxu0 0.0
    %569 = vmatpush1.msra.mxu0 %v76
    %570 = vmatprep.subr.mxu0 0.0
    %571 = vmatpush1.msra.mxu0 %v75
    %572 = vmatprep.subr.mxu0 0.0
    %573 = vmatpush2.msra.mxu0 0.0
    %574 = vmatprep.subr.mxu0 0.0
    %575 = vmatpush2.msra.mxu0 0.0
    %576 = vmatprep.subr.mxu0 0.0
    %577 = vmatpush2.msra.mxu0 0.0
    %578 = vmatprep.subr.mxu0 0.0
    %579 = vmatpush2.msra.mxu0 0.0
    %580 = vmatprep.subr.mxu0 0.0
    %581 = vmatpush2.msra.mxu0 0.0
    %582 = vmatprep.subr.mxu0 0.0
    %583 = vmatpush2.msra.mxu0 0.0
    %584 = vmatprep.subr.mxu0 0.0
    %585 = vmatpush2.msra.mxu0 0.0
    %586 = vmatprep.subr.mxu0 0.0
    %587 = vmatpush2.msra.mxu0 0.0
    %588 = vmatprep.subr.mxu0 0.0
    %589 = vmatpush2.msra.mxu0 0.0
    %590 = vmatprep.subr.mxu0 0.0
    %591 = vmatpush2.msra.mxu0 0.0
    %592 = vmatprep.subr.mxu0 0.0
    %593 = vmatpush2.msra.mxu0 0.0
    %594 = vmatprep.subr.mxu0 0.0
    %595 = vmatpush2.msra.mxu0 0.0
    %596 = vmatprep.subr.mxu0 0.0
    %597 = vmatpush2.msra.mxu0 0.0
    %598 = vmatprep.subr.mxu0 0.0
    %599 = vmatpush2.msra.mxu0 0.0
    %600 = vmatprep.subr.mxu0 0.0
    %601 = vmatpush2.msra.mxu0 0.0
    %602 = vmatprep.subr.mxu0 0.0
    %603 = vmatpush2.msra.mxu0 0.0
    %604 = vmatprep.mubr.f32.mxu0 0.0
    %605 = vmatmul.mubr.f32.gmra.mxu0 %v93
    %v606 = vpop.f32.mrf.mxu0
    %v607 = vadd.f32 %v302, %v606
    %v608 = vpop.f32.mrf.mxu0
    %609 = vmatprep.mubr.f32.mxu0 0.0
    %610 = vmatmul.mubr.f32.gmra.mxu0 %v96
    %v611 = vpop.f32.mrf.mxu0
    %v612 = vadd.f32 %v307, %v611
    %v613 = vpop.f32.mrf.mxu0
    %614 = vmatprep.mubr.f32.mxu0 0.0
    %615 = vmatmul.mubr.f32.gmra.mxu0 %v99
    %v616 = vpop.f32.mrf.mxu0
    %v617 = vadd.f32 %v312, %v616
    %v618 = vpop.f32.mrf.mxu0
    %619 = vmatprep.mubr.f32.mxu0 0.0
    %620 = vmatmul.mubr.f32.gmra.mxu0 %v102
    %v621 = vpop.f32.mrf.mxu0
    %v622 = vadd.f32 %v317, %v621
    %v623 = vpop.f32.mrf.mxu0
    %624 = vmatprep.mubr.f32.mxu0 0.0
    %625 = vmatmul.mubr.f32.gmra.mxu0 %v105
    %v626 = vpop.f32.mrf.mxu0
    %v627 = vadd.f32 %v322, %v626
    %v628 = vpop.f32.mrf.mxu0
    %629 = vmatprep.mubr.f32.mxu0 0.0
    %630 = vmatmul.mubr.f32.gmra.mxu0 %v108
    %v631 = vpop.f32.mrf.mxu0
    %v632 = vadd.f32 %v327, %v631
    %v633 = vpop.f32.mrf.mxu0
    %634 = vmatprep.mubr.f32.mxu0 0.0
    %635 = vmatmul.mubr.f32.gmra.mxu0 %v111
    %v636 = vpop.f32.mrf.mxu0
    %v637 = vadd.f32 %v332, %v636
    %v638 = vpop.f32.mrf.mxu0
    %639 = vmatprep.mubr.f32.mxu0 0.0
    %640 = vmatmul.mubr.f32.gmra.mxu0 %v114
    %v641 = vpop.f32.mrf.mxu0
    %v642 = vadd.f32 %v337, %v641
    %v643 = vpop.f32.mrf.mxu0
    %644 = vmatprep.mubr.f32.mxu0 0.0
    %645 = vmatmul.mubr.f32.gmra.mxu0 %v117
    %v646 = vpop.f32.mrf.mxu0
    %v647 = vadd.f32 %v342, %v646
    %v648 = vpop.f32.mrf.mxu0
    %649 = vmatprep.mubr.f32.mxu0 0.0
    %650 = vmatmul.mubr.f32.gmra.mxu0 %v120
    %v651 = vpop.f32.mrf.mxu0
    %v652 = vadd.f32 %v347, %v651
    %v653 = vpop.f32.mrf.mxu0
    %654 = vmatprep.mubr.f32.mxu0 0.0
    %655 = vmatmul.mubr.f32.gmra.mxu0 %v123
    %v656 = vpop.f32.mrf.mxu0
    %v657 = vadd.f32 %v352, %v656
    %v658 = vpop.f32.mrf.mxu0
    %659 = vmatprep.mubr.f32.mxu0 0.0
    %660 = vmatmul.mubr.f32.gmra.mxu0 %v126
    %v661 = vpop.f32.mrf.mxu0
    %v662 = vadd.f32 %v357, %v661
    %v663 = vpop.f32.mrf.mxu0
    %664 = vmatprep.mubr.f32.mxu0 0.0
    %665 = vmatmul.mubr.f32.gmra.mxu0 %v129
    %v666 = vpop.f32.mrf.mxu0
    %v667 = vadd.f32 %v362, %v666
    %v668 = vpop.f32.mrf.mxu0
    %669 = vmatprep.mubr.f32.mxu0 0.0
    %670 = vmatmul.mubr.f32.gmra.mxu0 %v132
    %v671 = vpop.f32.mrf.mxu0
    %v672 = vadd.f32 %v367, %v671
    %v673 = vpop.f32.mrf.mxu0
    %674 = vmatprep.mubr.f32.mxu0 0.0
    %675 = vmatmul.mubr.f32.gmra.mxu0 %v135
    %v676 = vpop.f32.mrf.mxu0
    %v677 = vadd.f32 %v372, %v676
    %v678 = vpop.f32.mrf.mxu0
    %679 = vmatprep.mubr.f32.mxu0 0.0
    %680 = vmatmul.mubr.f32.gmra.mxu0 %v138
    %v681 = vpop.f32.mrf.mxu0
    %v682 = vadd.f32 %v377, %v681
    %v683 = vpop.f32.mrf.mxu0
    %684 = vmatprep.mubr.f32.mxu0 0.0
    %685 = vmatmul.mubr.f32.gmra.mxu0 %v141
    %v686 = vpop.f32.mrf.mxu0
    %v687 = vadd.f32 %v382, %v686
    %v688 = vpop.f32.mrf.mxu0
    %689 = vmatprep.mubr.f32.mxu0 0.0
    %690 = vmatmul.mubr.f32.gmra.mxu0 %v144
    %v691 = vpop.f32.mrf.mxu0
    %v692 = vadd.f32 %v387, %v691
    %v693 = vpop.f32.mrf.mxu0
    %694 = vmatprep.mubr.f32.mxu0 0.0
    %695 = vmatmul.mubr.f32.gmra.mxu0 %v147
    %v696 = vpop.f32.mrf.mxu0
    %v697 = vadd.f32 %v392, %v696
    %v698 = vpop.f32.mrf.mxu0
    %699 = vmatprep.mubr.f32.mxu0 0.0
    %700 = vmatmul.mubr.f32.gmra.mxu0 %v150
    %v701 = vpop.f32.mrf.mxu0
    %v702 = vadd.f32 %v397, %v701
    %v703 = vpop.f32.mrf.mxu0
    %704 = vmatprep.mubr.f32.mxu0 0.0
    %705 = vmatmul.mubr.f32.gmra.mxu0 %v153
    %v706 = vpop.f32.mrf.mxu0
    %v707 = vadd.f32 %v402, %v706
    %v708 = vpop.f32.mrf.mxu0
    %709 = vmatprep.mubr.f32.mxu0 0.0
    %710 = vmatmul.mubr.f32.gmra.mxu0 %v156
    %v711 = vpop.f32.mrf.mxu0
    %v712 = vadd.f32 %v407, %v711
    %v713 = vpop.f32.mrf.mxu0
    %714 = vmatprep.mubr.f32.mxu0 0.0
    %715 = vmatmul.mubr.f32.gmra.mxu0 %v159
    %v716 = vpop.f32.mrf.mxu0
    %v717 = vadd.f32 %v412, %v716
    %v718 = vpop.f32.mrf.mxu0
    %719 = vmatprep.mubr.f32.mxu0 0.0
    %720 = vmatmul.mubr.f32.gmra.mxu0 %v162
    %v721 = vpop.f32.mrf.mxu0
    %v722 = vadd.f32 %v417, %v721
    %v723 = vpop.f32.mrf.mxu0
    %724 = vmatprep.mubr.f32.mxu0 0.0
    %725 = vmatmul.mubr.f32.gmra.mxu0 %v165
    %v726 = vpop.f32.mrf.mxu0
    %v727 = vadd.f32 %v422, %v726
    %v728 = vpop.f32.mrf.mxu0
    %729 = vmatprep.mubr.f32.mxu0 0.0
    %730 = vmatmul.mubr.f32.gmra.mxu0 %v168
    %v731 = vpop.f32.mrf.mxu0
    %v732 = vadd.f32 %v427, %v731
    %v733 = vpop.f32.mrf.mxu0
    %734 = vmatprep.mubr.f32.mxu0 0.0
    %735 = vmatmul.mubr.f32.gmra.mxu0 %v171
    %v736 = vpop.f32.mrf.mxu0
    %v737 = vadd.f32 %v432, %v736
    %v738 = vpop.f32.mrf.mxu0
    %739 = vmatprep.mubr.f32.mxu0 0.0
    %740 = vmatmul.mubr.f32.gmra.mxu0 %v174
    %v741 = vpop.f32.mrf.mxu0
    %v742 = vadd.f32 %v437, %v741
    %v743 = vpop.f32.mrf.mxu0
    %744 = vmatprep.mubr.f32.mxu0 0.0
    %745 = vmatmul.mubr.f32.gmra.mxu0 %v177
    %v746 = vpop.f32.mrf.mxu0
    %v747 = vadd.f32 %v442, %v746
    %v748 = vpop.f32.mrf.mxu0
    %749 = vmatprep.mubr.f32.mxu0 0.0
    %750 = vmatmul.mubr.f32.gmra.mxu0 %v180
    %v751 = vpop.f32.mrf.mxu0
    %v752 = vadd.f32 %v447, %v751
    %v753 = vpop.f32.mrf.mxu0
    %754 = vmatprep.mubr.f32.mxu0 0.0
    %755 = vmatmul.mubr.f32.gmra.mxu0 %v183
    %v756 = vpop.f32.mrf.mxu0
    %v757 = vadd.f32 %v452, %v756
    %v758 = vpop.f32.mrf.mxu0
    %759 = vmatprep.mubr.f32.mxu0 0.0
    %760 = vmatmul.mubr.f32.gmra.mxu0 %v186
    %v761 = vpop.f32.mrf.mxu0
    %v762 = vadd.f32 %v457, %v761
    %v763 = vpop.f32.mrf.mxu0
    %764 = vmatprep.mubr.f32.mxu0 0.0
    %765 = vmatmul.mubr.f32.gmra.mxu0 %v189
    %v766 = vpop.f32.mrf.mxu0
    %v767 = vadd.f32 %v462, %v766
    %v768 = vpop.f32.mrf.mxu0
    %769 = vmatprep.mubr.f32.mxu0 0.0
    %770 = vmatmul.mubr.f32.gmra.mxu0 %v192
    %v771 = vpop.f32.mrf.mxu0
    %v772 = vadd.f32 %v467, %v771
    %v773 = vpop.f32.mrf.mxu0
    %774 = vmatprep.mubr.f32.mxu0 0.0
    %775 = vmatmul.mubr.f32.gmra.mxu0 %v195
    %v776 = vpop.f32.mrf.mxu0
    %v777 = vadd.f32 %v472, %v776
    %v778 = vpop.f32.mrf.mxu0
    %779 = vmatprep.mubr.f32.mxu0 0.0
    %780 = vmatmul.mubr.f32.gmra.mxu0 %v198
    %v781 = vpop.f32.mrf.mxu0
    %v782 = vadd.f32 %v477, %v781
    %v783 = vpop.f32.mrf.mxu0
    %784 = vmatprep.mubr.f32.mxu0 0.0
    %785 = vmatmul.mubr.f32.gmra.mxu0 %v201
    %v786 = vpop.f32.mrf.mxu0
    %v787 = vadd.f32 %v482, %v786
    %v788 = vpop.f32.mrf.mxu0
    %789 = vmatprep.mubr.f32.mxu0 0.0
    %790 = vmatmul.mubr.f32.gmra.mxu0 %v204
    %v791 = vpop.f32.mrf.mxu0
    %v792 = vadd.f32 %v487, %v791
    %v793 = vpop.f32.mrf.mxu0
    %794 = vmatprep.mubr.f32.mxu0 0.0
    %795 = vmatmul.mubr.f32.gmra.mxu0 %v207
    %v796 = vpop.f32.mrf.mxu0
    %v797 = vadd.f32 %v492, %v796
    %v798 = vpop.f32.mrf.mxu0
    %799 = vmatprep.mubr.f32.mxu0 0.0
    %800 = vmatmul.mubr.f32.gmra.mxu0 %v210
    %v801 = vpop.f32.mrf.mxu0
    %v802 = vadd.f32 %v497, %v801
    %v803 = vpop.f32.mrf.mxu0
    %804 = vmatprep.mubr.f32.mxu0 0.0
    %805 = vmatmul.mubr.f32.gmra.mxu0 %v213
    %v806 = vpop.f32.mrf.mxu0
    %v807 = vadd.f32 %v502, %v806
    %v808 = vpop.f32.mrf.mxu0
    %809 = vmatprep.mubr.f32.mxu0 0.0
    %810 = vmatmul.mubr.f32.gmra.mxu0 %v216
    %v811 = vpop.f32.mrf.mxu0
    %v812 = vadd.f32 %v507, %v811
    %v813 = vpop.f32.mrf.mxu0
    %814 = vmatprep.mubr.f32.mxu0 0.0
    %815 = vmatmul.mubr.f32.gmra.mxu0 %v219
    %v816 = vpop.f32.mrf.mxu0
    %v817 = vadd.f32 %v512, %v816
    %v818 = vpop.f32.mrf.mxu0
    %819 = vmatprep.mubr.f32.mxu0 0.0
    %820 = vmatmul.mubr.f32.gmra.mxu0 %v222
    %v821 = vpop.f32.mrf.mxu0
    %v822 = vadd.f32 %v517, %v821
    %v823 = vpop.f32.mrf.mxu0
    %824 = vmatprep.mubr.f32.mxu0 0.0
    %825 = vmatmul.mubr.f32.gmra.mxu0 %v225
    %v826 = vpop.f32.mrf.mxu0
    %v827 = vadd.f32 %v522, %v826
    %v828 = vpop.f32.mrf.mxu0
    %829 = vmatprep.mubr.f32.mxu0 0.0
    %830 = vmatmul.mubr.f32.gmra.mxu0 %v228
    %v831 = vpop.f32.mrf.mxu0
    %v832 = vadd.f32 %v527, %v831
    %v833 = vpop.f32.mrf.mxu0
    %834 = vmatprep.mubr.f32.mxu0 0.0
    %835 = vmatmul.mubr.f32.gmra.mxu0 %v231
    %v836 = vpop.f32.mrf.mxu0
    %v837 = vadd.f32 %v532, %v836
    %v838 = vpop.f32.mrf.mxu0
    %839 = vmatprep.mubr.f32.mxu0 0.0
    %840 = vmatmul.mubr.f32.gmra.mxu0 %v234
    %v841 = vpop.f32.mrf.mxu0
    %v842 = vadd.f32 %v537, %v841
    %v843 = vpop.f32.mrf.mxu0
    %844 = vdwg.mxu0
    %vm845 = vcmp.ge.f32.partialorder %v607, 0.0
    %vm846 = vcmp.ge.f32.partialorder %v612, 0.0
    %vm847 = vcmp.ge.f32.partialorder %v617, 0.0
    %vm848 = vcmp.ge.f32.partialorder %v622, 0.0
    %vm849 = vcmp.ge.f32.partialorder %v627, 0.0
    %vm850 = vcmp.ge.f32.partialorder %v632, 0.0
    %vm851 = vcmp.ge.f32.partialorder %v637, 0.0
    %vm852 = vcmp.ge.f32.partialorder %v642, 0.0
    %vm853 = vcmp.ge.f32.partialorder %v647, 0.0
    %vm854 = vcmp.ge.f32.partialorder %v652, 0.0
    %vm855 = vcmp.ge.f32.partialorder %v657, 0.0
    %vm856 = vcmp.ge.f32.partialorder %v662, 0.0
    %vm857 = vcmp.ge.f32.partialorder %v667, 0.0
    %vm858 = vcmp.ge.f32.partialorder %v672, 0.0
    %vm859 = vcmp.ge.f32.partialorder %v677, 0.0
    %vm860 = vcmp.ge.f32.partialorder %v682, 0.0
    %vm861 = vcmp.ge.f32.partialorder %v687, 0.0
    %vm862 = vcmp.ge.f32.partialorder %v692, 0.0
    %vm863 = vcmp.ge.f32.partialorder %v697, 0.0
    %vm864 = vcmp.ge.f32.partialorder %v702, 0.0
    %vm865 = vcmp.ge.f32.partialorder %v707, 0.0
    %vm866 = vcmp.ge.f32.partialorder %v712, 0.0
    %vm867 = vcmp.ge.f32.partialorder %v717, 0.0
    %vm868 = vcmp.ge.f32.partialorder %v722, 0.0
    %vm869 = vcmp.ge.f32.partialorder %v727, 0.0
    %vm870 = vcmp.ge.f32.partialorder %v732, 0.0
    %vm871 = vcmp.ge.f32.partialorder %v737, 0.0
    %vm872 = vcmp.ge.f32.partialorder %v742, 0.0
    %vm873 = vcmp.ge.f32.partialorder %v747, 0.0
    %vm874 = vcmp.ge.f32.partialorder %v752, 0.0
    %vm875 = vcmp.ge.f32.partialorder %v757, 0.0
    %vm876 = vcmp.ge.f32.partialorder %v762, 0.0
    %vm877 = vcmp.ge.f32.partialorder %v767, 0.0
    %vm878 = vcmp.ge.f32.partialorder %v772, 0.0
    %vm879 = vcmp.ge.f32.partialorder %v777, 0.0
    %vm880 = vcmp.ge.f32.partialorder %v782, 0.0
    %vm881 = vcmp.ge.f32.partialorder %v787, 0.0
    %vm882 = vcmp.ge.f32.partialorder %v792, 0.0
    %vm883 = vcmp.ge.f32.partialorder %v797, 0.0
    %vm884 = vcmp.ge.f32.partialorder %v802, 0.0
    %vm885 = vcmp.ge.f32.partialorder %v807, 0.0
    %vm886 = vcmp.ge.f32.partialorder %v812, 0.0
    %vm887 = vcmp.ge.f32.partialorder %v817, 0.0
    %vm888 = vcmp.ge.f32.partialorder %v822, 0.0
    %vm889 = vcmp.ge.f32.partialorder %v827, 0.0
    %vm890 = vcmp.ge.f32.partialorder %v832, 0.0
    %vm891 = vcmp.ge.f32.partialorder %v837, 0.0
    %vm892 = vcmp.ge.f32.partialorder %v842, 0.0
    %v893 = vmul.f32 %v607, 0.2
    %v894 = vmul.f32 %v612, 0.2
    %v895 = vmul.f32 %v617, 0.2
    %v896 = vmul.f32 %v622, 0.2
    %v897 = vmul.f32 %v627, 0.2
    %v898 = vmul.f32 %v632, 0.2
    %v899 = vmul.f32 %v637, 0.2
    %v900 = vmul.f32 %v642, 0.2
    %v901 = vmul.f32 %v647, 0.2
    %v902 = vmul.f32 %v652, 0.2
    %v903 = vmul.f32 %v657, 0.2
    %v904 = vmul.f32 %v662, 0.2
    %v905 = vmul.f32 %v667, 0.2
    %v906 = vmul.f32 %v672, 0.2
    %v907 = vmul.f32 %v677, 0.2
    %v908 = vmul.f32 %v682, 0.2
    %v909 = vmul.f32 %v687, 0.2
    %v910 = vmul.f32 %v692, 0.2
    %v911 = vmul.f32 %v697, 0.2
    %v912 = vmul.f32 %v702, 0.2
    %v913 = vmul.f32 %v707, 0.2
    %v914 = vmul.f32 %v712, 0.2
    %v915 = vmul.f32 %v717, 0.2
    %v916 = vmul.f32 %v722, 0.2
    %v917 = vmul.f32 %v727, 0.2
    %v918 = vmul.f32 %v732, 0.2
    %v919 = vmul.f32 %v737, 0.2
    %v920 = vmul.f32 %v742, 0.2
    %v921 = vmul.f32 %v747, 0.2
    %v922 = vmul.f32 %v752, 0.2
    %v923 = vmul.f32 %v757, 0.2
    %v924 = vmul.f32 %v762, 0.2
    %v925 = vmul.f32 %v767, 0.2
    %v926 = vmul.f32 %v772, 0.2
    %v927 = vmul.f32 %v777, 0.2
    %v928 = vmul.f32 %v782, 0.2
    %v929 = vmul.f32 %v787, 0.2
    %v930 = vmul.f32 %v792, 0.2
    %v931 = vmul.f32 %v797, 0.2
    %v932 = vmul.f32 %v802, 0.2
    %v933 = vmul.f32 %v807, 0.2
    %v934 = vmul.f32 %v812, 0.2
    %v935 = vmul.f32 %v817, 0.2
    %v936 = vmul.f32 %v822, 0.2
    %v937 = vmul.f32 %v827, 0.2
    %v938 = vmul.f32 %v832, 0.2
    %v939 = vmul.f32 %v837, 0.2
    %v940 = vmul.f32 %v842, 0.2
    %v941 = vsel %vm845, %v607, %v893
    %v942 = vsel %vm846, %v612, %v894
    %v943 = vsel %vm847, %v617, %v895
    %v944 = vsel %vm848, %v622, %v896
    %v945 = vsel %vm849, %v627, %v897
    %v946 = vsel %vm850, %v632, %v898
    %v947 = vsel %vm851, %v637, %v899
    %v948 = vsel %vm852, %v642, %v900
    %v949 = vsel %vm853, %v647, %v901
    %v950 = vsel %vm854, %v652, %v902
    %v951 = vsel %vm855, %v657, %v903
    %v952 = vsel %vm856, %v662, %v904
    %v953 = vsel %vm857, %v667, %v905
    %v954 = vsel %vm858, %v672, %v906
    %v955 = vsel %vm859, %v677, %v907
    %v956 = vsel %vm860, %v682, %v908
    %v957 = vsel %vm861, %v687, %v909
    %v958 = vsel %vm862, %v692, %v910
    %v959 = vsel %vm863, %v697, %v911
    %v960 = vsel %vm864, %v702, %v912
    %v961 = vsel %vm865, %v707, %v913
    %v962 = vsel %vm866, %v712, %v914
    %v963 = vsel %vm867, %v717, %v915
    %v964 = vsel %vm868, %v722, %v916
    %v965 = vsel %vm869, %v727, %v917
    %v966 = vsel %vm870, %v732, %v918
    %v967 = vsel %vm871, %v737, %v919
    %v968 = vsel %vm872, %v742, %v920
    %v969 = vsel %vm873, %v747, %v921
    %v970 = vsel %vm874, %v752, %v922
    %v971 = vsel %vm875, %v757, %v923
    %v972 = vsel %vm876, %v762, %v924
    %v973 = vsel %vm877, %v767, %v925
    %v974 = vsel %vm878, %v772, %v926
    %v975 = vsel %vm879, %v777, %v927
    %v976 = vsel %vm880, %v782, %v928
    %v977 = vsel %vm881, %v787, %v929
    %v978 = vsel %vm882, %v792, %v930
    %v979 = vsel %vm883, %v797, %v931
    %v980 = vsel %vm884, %v802, %v932
    %v981 = vsel %vm885, %v807, %v933
    %v982 = vsel %vm886, %v812, %v934
    %v983 = vsel %vm887, %v817, %v935
    %v984 = vsel %vm888, %v822, %v936
    %v985 = vsel %vm889, %v827, %v937
    %v986 = vsel %vm890, %v832, %v938
    %v987 = vsel %vm891, %v837, %v939
    %v988 = vsel %vm892, %v842, %v940
    %s989 = scalar_lea.vmem [#allocation5], 1152
    %v990 = vld [vmem:[%s989] sm:$0xff]
    %v991 = vld [vmem:[%s989 + $0x8] sm:$0xff]
    %v992 = vld [vmem:[%s989 + $0x10] sm:$0xff]
    %v993 = vld [vmem:[%s989 + $0x18] sm:$0xff]
    %v994 = vld [vmem:[%s989 + $0x20] sm:$0xff]
    %v995 = vld [vmem:[%s989 + $0x28] sm:$0xff]
    %v996 = vld [vmem:[%s989 + $0x30] sm:$0xff]
    %v997 = vld [vmem:[%s989 + $0x38] sm:$0xff]
    %v998 = vld [vmem:[%s989 + $0x40] sm:$0xff]
    %v999 = vld [vmem:[%s989 + $0x48] sm:$0xff]
    %v1000 = vld [vmem:[%s989 + $0x50] sm:$0xff]
    %v1001 = vld [vmem:[%s989 + $0x58] sm:$0xff]
    %v1002 = vld [vmem:[%s989 + $0x60] sm:$0xff]
    %v1003 = vld [vmem:[%s989 + $0x68] sm:$0xff]
    %v1004 = vld [vmem:[%s989 + $0x70] sm:$0xff]
    %v1005 = vld [vmem:[%s989 + $0x78] sm:$0xff]
    %v1006 = vld [vmem:[%s989 + $0x80] sm:$0xff]
    %v1007 = vld [vmem:[%s989 + $0x88] sm:$0xff]
    %v1008 = vld [vmem:[%s989 + $0x90] sm:$0xff]
    %v1009 = vld [vmem:[%s989 + $0x98] sm:$0xff]
    %v1010 = vld [vmem:[%s989 + $0xa0] sm:$0xff]
    %v1011 = vld [vmem:[%s989 + $0xa8] sm:$0xff]
    %v1012 = vld [vmem:[%s989 + $0xb0] sm:$0xff]
    %v1013 = vld [vmem:[%s989 + $0xb8] sm:$0xff]
    %v1014 = vld [vmem:[%s989 + $0xc0] sm:$0xff]
    %v1015 = vld [vmem:[%s989 + $0xc8] sm:$0xff]
    %v1016 = vld [vmem:[%s989 + $0xd0] sm:$0xff]
    %v1017 = vld [vmem:[%s989 + $0xd8] sm:$0xff]
    %v1018 = vld [vmem:[%s989 + $0xe0] sm:$0xff]
    %v1019 = vld [vmem:[%s989 + $0xe8] sm:$0xff]
    %v1020 = vld [vmem:[%s989 + $0xf0] sm:$0xff]
    %v1021 = vld [vmem:[%s989 + $0xf8] sm:$0xff]
    %v1022 = vld [vmem:[%s989 + $0x100] sm:$0xff]
    %v1023 = vld [vmem:[%s989 + $0x108] sm:$0xff]
    %v1024 = vld [vmem:[%s989 + $0x110] sm:$0xff]
    %v1025 = vld [vmem:[%s989 + $0x118] sm:$0xff]
    %v1026 = vld [vmem:[%s989 + $0x120] sm:$0xff]
    %v1027 = vld [vmem:[%s989 + $0x128] sm:$0xff]
    %v1028 = vld [vmem:[%s989 + $0x130] sm:$0xff]
    %v1029 = vld [vmem:[%s989 + $0x138] sm:$0xff]
    %v1030 = vld [vmem:[%s989 + $0x140] sm:$0xff]
    %v1031 = vld [vmem:[%s989 + $0x148] sm:$0xff]
    %v1032 = vld [vmem:[%s989 + $0x150] sm:$0xff]
    %v1033 = vld [vmem:[%s989 + $0x158] sm:$0xff]
    %v1034 = vld [vmem:[%s989 + $0x160] sm:$0xff]
    %v1035 = vld [vmem:[%s989 + $0x168] sm:$0xff]
    %v1036 = vld [vmem:[%s989 + $0x170] sm:$0xff]
    %v1037 = vld [vmem:[%s989 + $0x178] sm:$0xff]
    %v1038 = vld [vmem:[%s989 + $0x180] sm:$0xff]
    %v1039 = vld [vmem:[%s989 + $0x188] sm:$0xff]
    %v1040 = vld [vmem:[%s989 + $0x190] sm:$0xff]
    %v1041 = vld [vmem:[%s989 + $0x198] sm:$0xff]
    %v1042 = vld [vmem:[%s989 + $0x1a0] sm:$0xff]
    %v1043 = vld [vmem:[%s989 + $0x1a8] sm:$0xff]
    %v1044 = vld [vmem:[%s989 + $0x1b0] sm:$0xff]
    %v1045 = vld [vmem:[%s989 + $0x1b8] sm:$0xff]
    %v1046 = vld [vmem:[%s989 + $0x1c0] sm:$0xff]
    %v1047 = vld [vmem:[%s989 + $0x1c8] sm:$0xff]
    %v1048 = vld [vmem:[%s989 + $0x1d0] sm:$0xff]
    %v1049 = vld [vmem:[%s989 + $0x1d8] sm:$0xff]
    %v1050 = vld [vmem:[%s989 + $0x1e0] sm:$0xff]
    %v1051 = vld [vmem:[%s989 + $0x1e8] sm:$0xff]
    %v1052 = vld [vmem:[%s989 + $0x1f0] sm:$0xff]
    %v1053 = vld [vmem:[%s989 + $0x1f8] sm:$0xff]
    %v1054 = vld [vmem:[%s989 + $0x200] sm:$0xff]
    %v1055 = vld [vmem:[%s989 + $0x208] sm:$0xff]
    %v1056 = vld [vmem:[%s989 + $0x210] sm:$0xff]
    %v1057 = vld [vmem:[%s989 + $0x218] sm:$0xff]
    %v1058 = vld [vmem:[%s989 + $0x220] sm:$0xff]
    %v1059 = vld [vmem:[%s989 + $0x228] sm:$0xff]
    %v1060 = vld [vmem:[%s989 + $0x230] sm:$0xff]
    %v1061 = vld [vmem:[%s989 + $0x238] sm:$0xff]
    %v1062 = vld [vmem:[%s989 + $0x240] sm:$0xff]
    %v1063 = vld [vmem:[%s989 + $0x248] sm:$0xff]
    %v1064 = vld [vmem:[%s989 + $0x250] sm:$0xff]
    %v1065 = vld [vmem:[%s989 + $0x258] sm:$0xff]
    %v1066 = vld [vmem:[%s989 + $0x260] sm:$0xff]
    %v1067 = vld [vmem:[%s989 + $0x268] sm:$0xff]
    %v1068 = vld [vmem:[%s989 + $0x270] sm:$0xff]
    %v1069 = vld [vmem:[%s989 + $0x278] sm:$0xff]
    %v1070 = vld [vmem:[%s989 + $0x280] sm:$0xff]
    %v1071 = vld [vmem:[%s989 + $0x288] sm:$0xff]
    %v1072 = vld [vmem:[%s989 + $0x290] sm:$0xff]
    %v1073 = vld [vmem:[%s989 + $0x298] sm:$0xff]
    %v1074 = vld [vmem:[%s989 + $0x2a0] sm:$0xff]
    %v1075 = vld [vmem:[%s989 + $0x2a8] sm:$0xff]
    %v1076 = vld [vmem:[%s989 + $0x2b0] sm:$0xff]
    %v1077 = vld [vmem:[%s989 + $0x2b8] sm:$0xff]
    %v1078 = vld [vmem:[%s989 + $0x2c0] sm:$0xff]
    %v1079 = vld [vmem:[%s989 + $0x2c8] sm:$0xff]
    %v1080 = vld [vmem:[%s989 + $0x2d0] sm:$0xff]
    %v1081 = vld [vmem:[%s989 + $0x2d8] sm:$0xff]
    %v1082 = vld [vmem:[%s989 + $0x2e0] sm:$0xff]
    %v1083 = vld [vmem:[%s989 + $0x2e8] sm:$0xff]
    %v1084 = vld [vmem:[%s989 + $0x2f0] sm:$0xff]
    %v1085 = vld [vmem:[%s989 + $0x2f8] sm:$0xff]
    %v1086 = vld [vmem:[%s989 + $0x300] sm:$0xff]
    %v1087 = vld [vmem:[%s989 + $0x308] sm:$0xff]
    %v1088 = vld [vmem:[%s989 + $0x310] sm:$0xff]
    %v1089 = vld [vmem:[%s989 + $0x318] sm:$0xff]
    %v1090 = vld [vmem:[%s989 + $0x320] sm:$0xff]
    %v1091 = vld [vmem:[%s989 + $0x328] sm:$0xff]
    %v1092 = vld [vmem:[%s989 + $0x330] sm:$0xff]
    %v1093 = vld [vmem:[%s989 + $0x338] sm:$0xff]
    %v1094 = vld [vmem:[%s989 + $0x340] sm:$0xff]
    %v1095 = vld [vmem:[%s989 + $0x348] sm:$0xff]
    %v1096 = vld [vmem:[%s989 + $0x350] sm:$0xff]
    %v1097 = vld [vmem:[%s989 + $0x358] sm:$0xff]
    %v1098 = vld [vmem:[%s989 + $0x360] sm:$0xff]
    %v1099 = vld [vmem:[%s989 + $0x368] sm:$0xff]
    %v1100 = vld [vmem:[%s989 + $0x370] sm:$0xff]
    %v1101 = vld [vmem:[%s989 + $0x378] sm:$0xff]
    %v1102 = vld [vmem:[%s989 + $0x380] sm:$0xff]
    %v1103 = vld [vmem:[%s989 + $0x388] sm:$0xff]
    %v1104 = vld [vmem:[%s989 + $0x390] sm:$0xff]
    %v1105 = vld [vmem:[%s989 + $0x398] sm:$0xff]
    %v1106 = vld [vmem:[%s989 + $0x3a0] sm:$0xff]
    %v1107 = vld [vmem:[%s989 + $0x3a8] sm:$0xff]
    %v1108 = vld [vmem:[%s989 + $0x3b0] sm:$0xff]
    %v1109 = vld [vmem:[%s989 + $0x3b8] sm:$0xff]
    %v1110 = vld [vmem:[%s989 + $0x3c0] sm:$0xff]
    %v1111 = vld [vmem:[%s989 + $0x3c8] sm:$0xff]
    %v1112 = vld [vmem:[%s989 + $0x3d0] sm:$0xff]
    %v1113 = vld [vmem:[%s989 + $0x3d8] sm:$0xff]
    %v1114 = vld [vmem:[%s989 + $0x3e0] sm:$0xff]
    %v1115 = vld [vmem:[%s989 + $0x3e8] sm:$0xff]
    %v1116 = vld [vmem:[%s989 + $0x3f0] sm:$0xff]
    %v1117 = vld [vmem:[%s989 + $0x3f8] sm:$0xff]
    %v1118 = vld [vmem:[%s989 + $0x400] sm:$0xff]
    %v1119 = vld [vmem:[%s989 + $0x408] sm:$0xff]
    %v1120 = vld [vmem:[%s989 + $0x410] sm:$0xff]
    %v1121 = vld [vmem:[%s989 + $0x418] sm:$0xff]
    %v1122 = vld [vmem:[%s989 + $0x420] sm:$0xff]
    %v1123 = vld [vmem:[%s989 + $0x428] sm:$0xff]
    %v1124 = vld [vmem:[%s989 + $0x430] sm:$0xff]
    %v1125 = vld [vmem:[%s989 + $0x438] sm:$0xff]
    %v1126 = vld [vmem:[%s989 + $0x440] sm:$0xff]
    %v1127 = vld [vmem:[%s989 + $0x448] sm:$0xff]
    %v1128 = vld [vmem:[%s989 + $0x450] sm:$0xff]
    %v1129 = vld [vmem:[%s989 + $0x458] sm:$0xff]
    %v1130 = vld [vmem:[%s989 + $0x460] sm:$0xff]
    %v1131 = vld [vmem:[%s989 + $0x468] sm:$0xff]
    %v1132 = vld [vmem:[%s989 + $0x470] sm:$0xff]
    %v1133 = vld [vmem:[%s989 + $0x478] sm:$0xff]
    %1134 = vmatprep.subr.mxu0 0.0
    %1135 = vmatpush1.msra.mxu0 %v956
    %1136 = vmatprep.subr.mxu0 0.0
    %1137 = vmatpush1.msra.mxu0 %v955
    %1138 = vmatprep.subr.mxu0 0.0
    %1139 = vmatpush1.msra.mxu0 %v954
    %1140 = vmatprep.subr.mxu0 0.0
    %1141 = vmatpush1.msra.mxu0 %v953
    %1142 = vmatprep.subr.mxu0 0.0
    %1143 = vmatpush1.msra.mxu0 %v952
    %1144 = vmatprep.subr.mxu0 0.0
    %1145 = vmatpush1.msra.mxu0 %v951
    %1146 = vmatprep.subr.mxu0 0.0
    %1147 = vmatpush1.msra.mxu0 %v950
    %1148 = vmatprep.subr.mxu0 0.0
    %1149 = vmatpush1.msra.mxu0 %v949
    %1150 = vmatprep.subr.mxu0 0.0
    %1151 = vmatpush1.msra.mxu0 %v948
    %1152 = vmatprep.subr.mxu0 0.0
    %1153 = vmatpush1.msra.mxu0 %v947
    %1154 = vmatprep.subr.mxu0 0.0
    %1155 = vmatpush1.msra.mxu0 %v946
    %1156 = vmatprep.subr.mxu0 0.0
    %1157 = vmatpush1.msra.mxu0 %v945
    %1158 = vmatprep.subr.mxu0 0.0
    %1159 = vmatpush1.msra.mxu0 %v944
    %1160 = vmatprep.subr.mxu0 0.0
    %1161 = vmatpush1.msra.mxu0 %v943
    %1162 = vmatprep.subr.mxu0 0.0
    %1163 = vmatpush1.msra.mxu0 %v942
    %1164 = vmatprep.subr.mxu0 0.0
    %1165 = vmatpush1.msra.mxu0 %v941
    %1166 = vmatprep.subr.mxu0 0.0
    %1167 = vmatpush2.msra.mxu0 %v972
    %1168 = vmatprep.subr.mxu0 0.0
    %1169 = vmatpush2.msra.mxu0 %v971
    %1170 = vmatprep.subr.mxu0 0.0
    %1171 = vmatpush2.msra.mxu0 %v970
    %1172 = vmatprep.subr.mxu0 0.0
    %1173 = vmatpush2.msra.mxu0 %v969
    %1174 = vmatprep.subr.mxu0 0.0
    %1175 = vmatpush2.msra.mxu0 %v968
    %1176 = vmatprep.subr.mxu0 0.0
    %1177 = vmatpush2.msra.mxu0 %v967
    %1178 = vmatprep.subr.mxu0 0.0
    %1179 = vmatpush2.msra.mxu0 %v966
    %1180 = vmatprep.subr.mxu0 0.0
    %1181 = vmatpush2.msra.mxu0 %v965
    %1182 = vmatprep.subr.mxu0 0.0
    %1183 = vmatpush2.msra.mxu0 %v964
    %1184 = vmatprep.subr.mxu0 0.0
    %1185 = vmatpush2.msra.mxu0 %v963
    %1186 = vmatprep.subr.mxu0 0.0
    %1187 = vmatpush2.msra.mxu0 %v962
    %1188 = vmatprep.subr.mxu0 0.0
    %1189 = vmatpush2.msra.mxu0 %v961
    %1190 = vmatprep.subr.mxu0 0.0
    %1191 = vmatpush2.msra.mxu0 %v960
    %1192 = vmatprep.subr.mxu0 0.0
    %1193 = vmatpush2.msra.mxu0 %v959
    %1194 = vmatprep.subr.mxu0 0.0
    %1195 = vmatpush2.msra.mxu0 %v958
    %1196 = vmatprep.subr.mxu0 0.0
    %1197 = vmatpush2.msra.mxu0 %v957
    %1198 = vmatprep.mubr.f32.mxu0 %v991
    %1199 = vmatmul.mubr.f32.gmra.mxu0 %v990
    %v1200 = vpop.f32.mrf.mxu0
    %v1201 = vadd.f32 0.0, %v1200
    %v1202 = vpop.f32.mrf.mxu0
    %1203 = vmatprep.mubr.f32.mxu0 %v994
    %1204 = vmatmul.mubr.f32.gmra.mxu0 %v993
    %v1205 = vpop.f32.mrf.mxu0
    %v1206 = vadd.f32 0.0, %v1205
    %v1207 = vpop.f32.mrf.mxu0
    %1208 = vmatprep.mubr.f32.mxu0 %v997
    %1209 = vmatmul.mubr.f32.gmra.mxu0 %v996
    %v1210 = vpop.f32.mrf.mxu0
    %v1211 = vadd.f32 0.0, %v1210
    %v1212 = vpop.f32.mrf.mxu0
    %1213 = vmatprep.mubr.f32.mxu0 %v1000
    %1214 = vmatmul.mubr.f32.gmra.mxu0 %v999
    %v1215 = vpop.f32.mrf.mxu0
    %v1216 = vadd.f32 0.0, %v1215
    %v1217 = vpop.f32.mrf.mxu0
    %1218 = vmatprep.mubr.f32.mxu0 %v1003
    %1219 = vmatmul.mubr.f32.gmra.mxu0 %v1002
    %v1220 = vpop.f32.mrf.mxu0
    %v1221 = vadd.f32 0.0, %v1220
    %v1222 = vpop.f32.mrf.mxu0
    %1223 = vmatprep.mubr.f32.mxu0 %v1006
    %1224 = vmatmul.mubr.f32.gmra.mxu0 %v1005
    %v1225 = vpop.f32.mrf.mxu0
    %v1226 = vadd.f32 0.0, %v1225
    %v1227 = vpop.f32.mrf.mxu0
    %1228 = vmatprep.mubr.f32.mxu0 %v1009
    %1229 = vmatmul.mubr.f32.gmra.mxu0 %v1008
    %v1230 = vpop.f32.mrf.mxu0
    %v1231 = vadd.f32 0.0, %v1230
    %v1232 = vpop.f32.mrf.mxu0
    %1233 = vmatprep.mubr.f32.mxu0 %v1012
    %1234 = vmatmul.mubr.f32.gmra.mxu0 %v1011
    %v1235 = vpop.f32.mrf.mxu0
    %v1236 = vadd.f32 0.0, %v1235
    %v1237 = vpop.f32.mrf.mxu0
    %1238 = vmatprep.mubr.f32.mxu0 %v1015
    %1239 = vmatmul.mubr.f32.gmra.mxu0 %v1014
    %v1240 = vpop.f32.mrf.mxu0
    %v1241 = vadd.f32 0.0, %v1240
    %v1242 = vpop.f32.mrf.mxu0
    %1243 = vmatprep.mubr.f32.mxu0 %v1018
    %1244 = vmatmul.mubr.f32.gmra.mxu0 %v1017
    %v1245 = vpop.f32.mrf.mxu0
    %v1246 = vadd.f32 0.0, %v1245
    %v1247 = vpop.f32.mrf.mxu0
    %1248 = vmatprep.mubr.f32.mxu0 %v1021
    %1249 = vmatmul.mubr.f32.gmra.mxu0 %v1020
    %v1250 = vpop.f32.mrf.mxu0
    %v1251 = vadd.f32 0.0, %v1250
    %v1252 = vpop.f32.mrf.mxu0
    %1253 = vmatprep.mubr.f32.mxu0 %v1024
    %1254 = vmatmul.mubr.f32.gmra.mxu0 %v1023
    %v1255 = vpop.f32.mrf.mxu0
    %v1256 = vadd.f32 0.0, %v1255
    %v1257 = vpop.f32.mrf.mxu0
    %1258 = vmatprep.mubr.f32.mxu0 %v1027
    %1259 = vmatmul.mubr.f32.gmra.mxu0 %v1026
    %v1260 = vpop.f32.mrf.mxu0
    %v1261 = vadd.f32 0.0, %v1260
    %v1262 = vpop.f32.mrf.mxu0
    %1263 = vmatprep.mubr.f32.mxu0 %v1030
    %1264 = vmatmul.mubr.f32.gmra.mxu0 %v1029
    %v1265 = vpop.f32.mrf.mxu0
    %v1266 = vadd.f32 0.0, %v1265
    %v1267 = vpop.f32.mrf.mxu0
    %1268 = vmatprep.mubr.f32.mxu0 %v1033
    %1269 = vmatmul.mubr.f32.gmra.mxu0 %v1032
    %v1270 = vpop.f32.mrf.mxu0
    %v1271 = vadd.f32 0.0, %v1270
    %v1272 = vpop.f32.mrf.mxu0
    %1273 = vmatprep.mubr.f32.mxu0 %v1036
    %1274 = vmatmul.mubr.f32.gmra.mxu0 %v1035
    %v1275 = vpop.f32.mrf.mxu0
    %v1276 = vadd.f32 0.0, %v1275
    %v1277 = vpop.f32.mrf.mxu0
    %1278 = vmatprep.mubr.f32.mxu0 %v1039
    %1279 = vmatmul.mubr.f32.gmra.mxu0 %v1038
    %v1280 = vpop.f32.mrf.mxu0
    %v1281 = vadd.f32 0.0, %v1280
    %v1282 = vpop.f32.mrf.mxu0
    %1283 = vmatprep.mubr.f32.mxu0 %v1042
    %1284 = vmatmul.mubr.f32.gmra.mxu0 %v1041
    %v1285 = vpop.f32.mrf.mxu0
    %v1286 = vadd.f32 0.0, %v1285
    %v1287 = vpop.f32.mrf.mxu0
    %1288 = vmatprep.mubr.f32.mxu0 %v1045
    %1289 = vmatmul.mubr.f32.gmra.mxu0 %v1044
    %v1290 = vpop.f32.mrf.mxu0
    %v1291 = vadd.f32 0.0, %v1290
    %v1292 = vpop.f32.mrf.mxu0
    %1293 = vmatprep.mubr.f32.mxu0 %v1048
    %1294 = vmatmul.mubr.f32.gmra.mxu0 %v1047
    %v1295 = vpop.f32.mrf.mxu0
    %v1296 = vadd.f32 0.0, %v1295
    %v1297 = vpop.f32.mrf.mxu0
    %1298 = vmatprep.mubr.f32.mxu0 %v1051
    %1299 = vmatmul.mubr.f32.gmra.mxu0 %v1050
    %v1300 = vpop.f32.mrf.mxu0
    %v1301 = vadd.f32 0.0, %v1300
    %v1302 = vpop.f32.mrf.mxu0
    %1303 = vmatprep.mubr.f32.mxu0 %v1054
    %1304 = vmatmul.mubr.f32.gmra.mxu0 %v1053
    %v1305 = vpop.f32.mrf.mxu0
    %v1306 = vadd.f32 0.0, %v1305
    %v1307 = vpop.f32.mrf.mxu0
    %1308 = vmatprep.mubr.f32.mxu0 %v1057
    %1309 = vmatmul.mubr.f32.gmra.mxu0 %v1056
    %v1310 = vpop.f32.mrf.mxu0
    %v1311 = vadd.f32 0.0, %v1310
    %v1312 = vpop.f32.mrf.mxu0
    %1313 = vmatprep.mubr.f32.mxu0 %v1060
    %1314 = vmatmul.mubr.f32.gmra.mxu0 %v1059
    %v1315 = vpop.f32.mrf.mxu0
    %v1316 = vadd.f32 0.0, %v1315
    %v1317 = vpop.f32.mrf.mxu0
    %1318 = vmatprep.mubr.f32.mxu0 %v1063
    %1319 = vmatmul.mubr.f32.gmra.mxu0 %v1062
    %v1320 = vpop.f32.mrf.mxu0
    %v1321 = vadd.f32 0.0, %v1320
    %v1322 = vpop.f32.mrf.mxu0
    %1323 = vmatprep.mubr.f32.mxu0 %v1066
    %1324 = vmatmul.mubr.f32.gmra.mxu0 %v1065
    %v1325 = vpop.f32.mrf.mxu0
    %v1326 = vadd.f32 0.0, %v1325
    %v1327 = vpop.f32.mrf.mxu0
    %1328 = vmatprep.mubr.f32.mxu0 %v1069
    %1329 = vmatmul.mubr.f32.gmra.mxu0 %v1068
    %v1330 = vpop.f32.mrf.mxu0
    %v1331 = vadd.f32 0.0, %v1330
    %v1332 = vpop.f32.mrf.mxu0
    %1333 = vmatprep.mubr.f32.mxu0 %v1072
    %1334 = vmatmul.mubr.f32.gmra.mxu0 %v1071
    %v1335 = vpop.f32.mrf.mxu0
    %v1336 = vadd.f32 0.0, %v1335
    %v1337 = vpop.f32.mrf.mxu0
    %1338 = vmatprep.mubr.f32.mxu0 %v1075
    %1339 = vmatmul.mubr.f32.gmra.mxu0 %v1074
    %v1340 = vpop.f32.mrf.mxu0
    %v1341 = vadd.f32 0.0, %v1340
    %v1342 = vpop.f32.mrf.mxu0
    %1343 = vmatprep.mubr.f32.mxu0 %v1078
    %1344 = vmatmul.mubr.f32.gmra.mxu0 %v1077
    %v1345 = vpop.f32.mrf.mxu0
    %v1346 = vadd.f32 0.0, %v1345
    %v1347 = vpop.f32.mrf.mxu0
    %1348 = vmatprep.mubr.f32.mxu0 %v1081
    %1349 = vmatmul.mubr.f32.gmra.mxu0 %v1080
    %v1350 = vpop.f32.mrf.mxu0
    %v1351 = vadd.f32 0.0, %v1350
    %v1352 = vpop.f32.mrf.mxu0
    %1353 = vmatprep.mubr.f32.mxu0 %v1084
    %1354 = vmatmul.mubr.f32.gmra.mxu0 %v1083
    %v1355 = vpop.f32.mrf.mxu0
    %v1356 = vadd.f32 0.0, %v1355
    %v1357 = vpop.f32.mrf.mxu0
    %1358 = vmatprep.mubr.f32.mxu0 %v1087
    %1359 = vmatmul.mubr.f32.gmra.mxu0 %v1086
    %v1360 = vpop.f32.mrf.mxu0
    %v1361 = vadd.f32 0.0, %v1360
    %v1362 = vpop.f32.mrf.mxu0
    %1363 = vmatprep.mubr.f32.mxu0 %v1090
    %1364 = vmatmul.mubr.f32.gmra.mxu0 %v1089
    %v1365 = vpop.f32.mrf.mxu0
    %v1366 = vadd.f32 0.0, %v1365
    %v1367 = vpop.f32.mrf.mxu0
    %1368 = vmatprep.mubr.f32.mxu0 %v1093
    %1369 = vmatmul.mubr.f32.gmra.mxu0 %v1092
    %v1370 = vpop.f32.mrf.mxu0
    %v1371 = vadd.f32 0.0, %v1370
    %v1372 = vpop.f32.mrf.mxu0
    %1373 = vmatprep.mubr.f32.mxu0 %v1096
    %1374 = vmatmul.mubr.f32.gmra.mxu0 %v1095
    %v1375 = vpop.f32.mrf.mxu0
    %v1376 = vadd.f32 0.0, %v1375
    %v1377 = vpop.f32.mrf.mxu0
    %1378 = vmatprep.mubr.f32.mxu0 %v1099
    %1379 = vmatmul.mubr.f32.gmra.mxu0 %v1098
    %v1380 = vpop.f32.mrf.mxu0
    %v1381 = vadd.f32 0.0, %v1380
    %v1382 = vpop.f32.mrf.mxu0
    %1383 = vmatprep.mubr.f32.mxu0 %v1102
    %1384 = vmatmul.mubr.f32.gmra.mxu0 %v1101
    %v1385 = vpop.f32.mrf.mxu0
    %v1386 = vadd.f32 0.0, %v1385
    %v1387 = vpop.f32.mrf.mxu0
    %1388 = vmatprep.mubr.f32.mxu0 %v1105
    %1389 = vmatmul.mubr.f32.gmra.mxu0 %v1104
    %v1390 = vpop.f32.mrf.mxu0
    %v1391 = vadd.f32 0.0, %v1390
    %v1392 = vpop.f32.mrf.mxu0
    %1393 = vmatprep.mubr.f32.mxu0 %v1108
    %1394 = vmatmul.mubr.f32.gmra.mxu0 %v1107
    %v1395 = vpop.f32.mrf.mxu0
    %v1396 = vadd.f32 0.0, %v1395
    %v1397 = vpop.f32.mrf.mxu0
    %1398 = vmatprep.mubr.f32.mxu0 %v1111
    %1399 = vmatmul.mubr.f32.gmra.mxu0 %v1110
    %v1400 = vpop.f32.mrf.mxu0
    %v1401 = vadd.f32 0.0, %v1400
    %v1402 = vpop.f32.mrf.mxu0
    %1403 = vmatprep.mubr.f32.mxu0 %v1114
    %1404 = vmatmul.mubr.f32.gmra.mxu0 %v1113
    %v1405 = vpop.f32.mrf.mxu0
    %v1406 = vadd.f32 0.0, %v1405
    %v1407 = vpop.f32.mrf.mxu0
    %1408 = vmatprep.mubr.f32.mxu0 %v1117
    %1409 = vmatmul.mubr.f32.gmra.mxu0 %v1116
    %v1410 = vpop.f32.mrf.mxu0
    %v1411 = vadd.f32 0.0, %v1410
    %v1412 = vpop.f32.mrf.mxu0
    %1413 = vmatprep.mubr.f32.mxu0 %v1120
    %1414 = vmatmul.mubr.f32.gmra.mxu0 %v1119
    %v1415 = vpop.f32.mrf.mxu0
    %v1416 = vadd.f32 0.0, %v1415
    %v1417 = vpop.f32.mrf.mxu0
    %1418 = vmatprep.mubr.f32.mxu0 %v1123
    %1419 = vmatmul.mubr.f32.gmra.mxu0 %v1122
    %v1420 = vpop.f32.mrf.mxu0
    %v1421 = vadd.f32 0.0, %v1420
    %v1422 = vpop.f32.mrf.mxu0
    %1423 = vmatprep.mubr.f32.mxu0 %v1126
    %1424 = vmatmul.mubr.f32.gmra.mxu0 %v1125
    %v1425 = vpop.f32.mrf.mxu0
    %v1426 = vadd.f32 0.0, %v1425
    %v1427 = vpop.f32.mrf.mxu0
    %1428 = vmatprep.mubr.f32.mxu0 %v1129
    %1429 = vmatmul.mubr.f32.gmra.mxu0 %v1128
    %v1430 = vpop.f32.mrf.mxu0
    %v1431 = vadd.f32 0.0, %v1430
    %v1432 = vpop.f32.mrf.mxu0
    %1433 = vmatprep.mubr.f32.mxu0 %v1132
    %1434 = vmatmul.mubr.f32.gmra.mxu0 %v1131
    %v1435 = vpop.f32.mrf.mxu0
    %v1436 = vadd.f32 0.0, %v1435
    %v1437 = vpop.f32.mrf.mxu0
    %1438 = vdwg.mxu0
    %1439 = vmatprep.subr.mxu0 0.0
    %1440 = vmatpush1.msra.mxu0 %v988
    %1441 = vmatprep.subr.mxu0 0.0
    %1442 = vmatpush1.msra.mxu0 %v987
    %1443 = vmatprep.subr.mxu0 0.0
    %1444 = vmatpush1.msra.mxu0 %v986
    %1445 = vmatprep.subr.mxu0 0.0
    %1446 = vmatpush1.msra.mxu0 %v985
    %1447 = vmatprep.subr.mxu0 0.0
    %1448 = vmatpush1.msra.mxu0 %v984
    %1449 = vmatprep.subr.mxu0 0.0
    %1450 = vmatpush1.msra.mxu0 %v983
    %1451 = vmatprep.subr.mxu0 0.0
    %1452 = vmatpush1.msra.mxu0 %v982
    %1453 = vmatprep.subr.mxu0 0.0
    %1454 = vmatpush1.msra.mxu0 %v981
    %1455 = vmatprep.subr.mxu0 0.0
    %1456 = vmatpush1.msra.mxu0 %v980
    %1457 = vmatprep.subr.mxu0 0.0
    %1458 = vmatpush1.msra.mxu0 %v979
    %1459 = vmatprep.subr.mxu0 0.0
    %1460 = vmatpush1.msra.mxu0 %v978
    %1461 = vmatprep.subr.mxu0 0.0
    %1462 = vmatpush1.msra.mxu0 %v977
    %1463 = vmatprep.subr.mxu0 0.0
    %1464 = vmatpush1.msra.mxu0 %v976
    %1465 = vmatprep.subr.mxu0 0.0
    %1466 = vmatpush1.msra.mxu0 %v975
    %1467 = vmatprep.subr.mxu0 0.0
    %1468 = vmatpush1.msra.mxu0 %v974
    %1469 = vmatprep.subr.mxu0 0.0
    %1470 = vmatpush1.msra.mxu0 %v973
    %1471 = vmatprep.subr.mxu0 0.0
    %1472 = vmatpush2.msra.mxu0 0.0
    %1473 = vmatprep.subr.mxu0 0.0
    %1474 = vmatpush2.msra.mxu0 0.0
    %1475 = vmatprep.subr.mxu0 0.0
    %1476 = vmatpush2.msra.mxu0 0.0
    %1477 = vmatprep.subr.mxu0 0.0
    %1478 = vmatpush2.msra.mxu0 0.0
    %1479 = vmatprep.subr.mxu0 0.0
    %1480 = vmatpush2.msra.mxu0 0.0
    %1481 = vmatprep.subr.mxu0 0.0
    %1482 = vmatpush2.msra.mxu0 0.0
    %1483 = vmatprep.subr.mxu0 0.0
    %1484 = vmatpush2.msra.mxu0 0.0
    %1485 = vmatprep.subr.mxu0 0.0
    %1486 = vmatpush2.msra.mxu0 0.0
    %1487 = vmatprep.subr.mxu0 0.0
    %1488 = vmatpush2.msra.mxu0 0.0
    %1489 = vmatprep.subr.mxu0 0.0
    %1490 = vmatpush2.msra.mxu0 0.0
    %1491 = vmatprep.subr.mxu0 0.0
    %1492 = vmatpush2.msra.mxu0 0.0
    %1493 = vmatprep.subr.mxu0 0.0
    %1494 = vmatpush2.msra.mxu0 0.0
    %1495 = vmatprep.subr.mxu0 0.0
    %1496 = vmatpush2.msra.mxu0 0.0
    %1497 = vmatprep.subr.mxu0 0.0
    %1498 = vmatpush2.msra.mxu0 0.0
    %1499 = vmatprep.subr.mxu0 0.0
    %1500 = vmatpush2.msra.mxu0 0.0
    %1501 = vmatprep.subr.mxu0 0.0
    %1502 = vmatpush2.msra.mxu0 0.0
    %1503 = vmatprep.mubr.f32.mxu0 0.0
    %1504 = vmatmul.mubr.f32.gmra.mxu0 %v992
    %v1505 = vpop.f32.mrf.mxu0
    %v1506 = vadd.f32 %v1201, %v1505
    %v1507 = vpop.f32.mrf.mxu0
    %1508 = vmatprep.mubr.f32.mxu0 0.0
    %1509 = vmatmul.mubr.f32.gmra.mxu0 %v995
    %v1510 = vpop.f32.mrf.mxu0
    %v1511 = vadd.f32 %v1206, %v1510
    %v1512 = vpop.f32.mrf.mxu0
    %1513 = vmatprep.mubr.f32.mxu0 0.0
    %1514 = vmatmul.mubr.f32.gmra.mxu0 %v998
    %v1515 = vpop.f32.mrf.mxu0
    %v1516 = vadd.f32 %v1211, %v1515
    %v1517 = vpop.f32.mrf.mxu0
    %1518 = vmatprep.mubr.f32.mxu0 0.0
    %1519 = vmatmul.mubr.f32.gmra.mxu0 %v1001
    %v1520 = vpop.f32.mrf.mxu0
    %v1521 = vadd.f32 %v1216, %v1520
    %v1522 = vpop.f32.mrf.mxu0
    %1523 = vmatprep.mubr.f32.mxu0 0.0
    %1524 = vmatmul.mubr.f32.gmra.mxu0 %v1004
    %v1525 = vpop.f32.mrf.mxu0
    %v1526 = vadd.f32 %v1221, %v1525
    %v1527 = vpop.f32.mrf.mxu0
    %1528 = vmatprep.mubr.f32.mxu0 0.0
    %1529 = vmatmul.mubr.f32.gmra.mxu0 %v1007
    %v1530 = vpop.f32.mrf.mxu0
    %v1531 = vadd.f32 %v1226, %v1530
    %v1532 = vpop.f32.mrf.mxu0
    %1533 = vmatprep.mubr.f32.mxu0 0.0
    %1534 = vmatmul.mubr.f32.gmra.mxu0 %v1010
    %v1535 = vpop.f32.mrf.mxu0
    %v1536 = vadd.f32 %v1231, %v1535
    %v1537 = vpop.f32.mrf.mxu0
    %1538 = vmatprep.mubr.f32.mxu0 0.0
    %1539 = vmatmul.mubr.f32.gmra.mxu0 %v1013
    %v1540 = vpop.f32.mrf.mxu0
    %v1541 = vadd.f32 %v1236, %v1540
    %v1542 = vpop.f32.mrf.mxu0
    %1543 = vmatprep.mubr.f32.mxu0 0.0
    %1544 = vmatmul.mubr.f32.gmra.mxu0 %v1016
    %v1545 = vpop.f32.mrf.mxu0
    %v1546 = vadd.f32 %v1241, %v1545
    %v1547 = vpop.f32.mrf.mxu0
    %1548 = vmatprep.mubr.f32.mxu0 0.0
    %1549 = vmatmul.mubr.f32.gmra.mxu0 %v1019
    %v1550 = vpop.f32.mrf.mxu0
    %v1551 = vadd.f32 %v1246, %v1550
    %v1552 = vpop.f32.mrf.mxu0
    %1553 = vmatprep.mubr.f32.mxu0 0.0
    %1554 = vmatmul.mubr.f32.gmra.mxu0 %v1022
    %v1555 = vpop.f32.mrf.mxu0
    %v1556 = vadd.f32 %v1251, %v1555
    %v1557 = vpop.f32.mrf.mxu0
    %1558 = vmatprep.mubr.f32.mxu0 0.0
    %1559 = vmatmul.mubr.f32.gmra.mxu0 %v1025
    %v1560 = vpop.f32.mrf.mxu0
    %v1561 = vadd.f32 %v1256, %v1560
    %v1562 = vpop.f32.mrf.mxu0
    %1563 = vmatprep.mubr.f32.mxu0 0.0
    %1564 = vmatmul.mubr.f32.gmra.mxu0 %v1028
    %v1565 = vpop.f32.mrf.mxu0
    %v1566 = vadd.f32 %v1261, %v1565
    %v1567 = vpop.f32.mrf.mxu0
    %1568 = vmatprep.mubr.f32.mxu0 0.0
    %1569 = vmatmul.mubr.f32.gmra.mxu0 %v1031
    %v1570 = vpop.f32.mrf.mxu0
    %v1571 = vadd.f32 %v1266, %v1570
    %v1572 = vpop.f32.mrf.mxu0
    %1573 = vmatprep.mubr.f32.mxu0 0.0
    %1574 = vmatmul.mubr.f32.gmra.mxu0 %v1034
    %v1575 = vpop.f32.mrf.mxu0
    %v1576 = vadd.f32 %v1271, %v1575
    %v1577 = vpop.f32.mrf.mxu0
    %1578 = vmatprep.mubr.f32.mxu0 0.0
    %1579 = vmatmul.mubr.f32.gmra.mxu0 %v1037
    %v1580 = vpop.f32.mrf.mxu0
    %v1581 = vadd.f32 %v1276, %v1580
    %v1582 = vpop.f32.mrf.mxu0
    %1583 = vmatprep.mubr.f32.mxu0 0.0
    %1584 = vmatmul.mubr.f32.gmra.mxu0 %v1040
    %v1585 = vpop.f32.mrf.mxu0
    %v1586 = vadd.f32 %v1281, %v1585
    %v1587 = vpop.f32.mrf.mxu0
    %1588 = vmatprep.mubr.f32.mxu0 0.0
    %1589 = vmatmul.mubr.f32.gmra.mxu0 %v1043
    %v1590 = vpop.f32.mrf.mxu0
    %v1591 = vadd.f32 %v1286, %v1590
    %v1592 = vpop.f32.mrf.mxu0
    %1593 = vmatprep.mubr.f32.mxu0 0.0
    %1594 = vmatmul.mubr.f32.gmra.mxu0 %v1046
    %v1595 = vpop.f32.mrf.mxu0
    %v1596 = vadd.f32 %v1291, %v1595
    %v1597 = vpop.f32.mrf.mxu0
    %1598 = vmatprep.mubr.f32.mxu0 0.0
    %1599 = vmatmul.mubr.f32.gmra.mxu0 %v1049
    %v1600 = vpop.f32.mrf.mxu0
    %v1601 = vadd.f32 %v1296, %v1600
    %v1602 = vpop.f32.mrf.mxu0
    %1603 = vmatprep.mubr.f32.mxu0 0.0
    %1604 = vmatmul.mubr.f32.gmra.mxu0 %v1052
    %v1605 = vpop.f32.mrf.mxu0
    %v1606 = vadd.f32 %v1301, %v1605
    %v1607 = vpop.f32.mrf.mxu0
    %1608 = vmatprep.mubr.f32.mxu0 0.0
    %1609 = vmatmul.mubr.f32.gmra.mxu0 %v1055
    %v1610 = vpop.f32.mrf.mxu0
    %v1611 = vadd.f32 %v1306, %v1610
    %v1612 = vpop.f32.mrf.mxu0
    %1613 = vmatprep.mubr.f32.mxu0 0.0
    %1614 = vmatmul.mubr.f32.gmra.mxu0 %v1058
    %v1615 = vpop.f32.mrf.mxu0
    %v1616 = vadd.f32 %v1311, %v1615
    %v1617 = vpop.f32.mrf.mxu0
    %1618 = vmatprep.mubr.f32.mxu0 0.0
    %1619 = vmatmul.mubr.f32.gmra.mxu0 %v1061
    %v1620 = vpop.f32.mrf.mxu0
    %v1621 = vadd.f32 %v1316, %v1620
    %v1622 = vpop.f32.mrf.mxu0
    %1623 = vmatprep.mubr.f32.mxu0 0.0
    %1624 = vmatmul.mubr.f32.gmra.mxu0 %v1064
    %v1625 = vpop.f32.mrf.mxu0
    %v1626 = vadd.f32 %v1321, %v1625
    %v1627 = vpop.f32.mrf.mxu0
    %1628 = vmatprep.mubr.f32.mxu0 0.0
    %1629 = vmatmul.mubr.f32.gmra.mxu0 %v1067
    %v1630 = vpop.f32.mrf.mxu0
    %v1631 = vadd.f32 %v1326, %v1630
    %v1632 = vpop.f32.mrf.mxu0
    %1633 = vmatprep.mubr.f32.mxu0 0.0
    %1634 = vmatmul.mubr.f32.gmra.mxu0 %v1070
    %v1635 = vpop.f32.mrf.mxu0
    %v1636 = vadd.f32 %v1331, %v1635
    %v1637 = vpop.f32.mrf.mxu0
    %1638 = vmatprep.mubr.f32.mxu0 0.0
    %1639 = vmatmul.mubr.f32.gmra.mxu0 %v1073
    %v1640 = vpop.f32.mrf.mxu0
    %v1641 = vadd.f32 %v1336, %v1640
    %v1642 = vpop.f32.mrf.mxu0
    %1643 = vmatprep.mubr.f32.mxu0 0.0
    %1644 = vmatmul.mubr.f32.gmra.mxu0 %v1076
    %v1645 = vpop.f32.mrf.mxu0
    %v1646 = vadd.f32 %v1341, %v1645
    %v1647 = vpop.f32.mrf.mxu0
    %1648 = vmatprep.mubr.f32.mxu0 0.0
    %1649 = vmatmul.mubr.f32.gmra.mxu0 %v1079
    %v1650 = vpop.f32.mrf.mxu0
    %v1651 = vadd.f32 %v1346, %v1650
    %v1652 = vpop.f32.mrf.mxu0
    %1653 = vmatprep.mubr.f32.mxu0 0.0
    %1654 = vmatmul.mubr.f32.gmra.mxu0 %v1082
    %v1655 = vpop.f32.mrf.mxu0
    %v1656 = vadd.f32 %v1351, %v1655
    %v1657 = vpop.f32.mrf.mxu0
    %1658 = vmatprep.mubr.f32.mxu0 0.0
    %1659 = vmatmul.mubr.f32.gmra.mxu0 %v1085
    %v1660 = vpop.f32.mrf.mxu0
    %v1661 = vadd.f32 %v1356, %v1660
    %v1662 = vpop.f32.mrf.mxu0
    %1663 = vmatprep.mubr.f32.mxu0 0.0
    %1664 = vmatmul.mubr.f32.gmra.mxu0 %v1088
    %v1665 = vpop.f32.mrf.mxu0
    %v1666 = vadd.f32 %v1361, %v1665
    %v1667 = vpop.f32.mrf.mxu0
    %1668 = vmatprep.mubr.f32.mxu0 0.0
    %1669 = vmatmul.mubr.f32.gmra.mxu0 %v1091
    %v1670 = vpop.f32.mrf.mxu0
    %v1671 = vadd.f32 %v1366, %v1670
    %v1672 = vpop.f32.mrf.mxu0
    %1673 = vmatprep.mubr.f32.mxu0 0.0
    %1674 = vmatmul.mubr.f32.gmra.mxu0 %v1094
    %v1675 = vpop.f32.mrf.mxu0
    %v1676 = vadd.f32 %v1371, %v1675
    %v1677 = vpop.f32.mrf.mxu0
    %1678 = vmatprep.mubr.f32.mxu0 0.0
    %1679 = vmatmul.mubr.f32.gmra.mxu0 %v1097
    %v1680 = vpop.f32.mrf.mxu0
    %v1681 = vadd.f32 %v1376, %v1680
    %v1682 = vpop.f32.mrf.mxu0
    %1683 = vmatprep.mubr.f32.mxu0 0.0
    %1684 = vmatmul.mubr.f32.gmra.mxu0 %v1100
    %v1685 = vpop.f32.mrf.mxu0
    %v1686 = vadd.f32 %v1381, %v1685
    %v1687 = vpop.f32.mrf.mxu0
    %1688 = vmatprep.mubr.f32.mxu0 0.0
    %1689 = vmatmul.mubr.f32.gmra.mxu0 %v1103
    %v1690 = vpop.f32.mrf.mxu0
    %v1691 = vadd.f32 %v1386, %v1690
    %v1692 = vpop.f32.mrf.mxu0
    %1693 = vmatprep.mubr.f32.mxu0 0.0
    %1694 = vmatmul.mubr.f32.gmra.mxu0 %v1106
    %v1695 = vpop.f32.mrf.mxu0
    %v1696 = vadd.f32 %v1391, %v1695
    %v1697 = vpop.f32.mrf.mxu0
    %1698 = vmatprep.mubr.f32.mxu0 0.0
    %1699 = vmatmul.mubr.f32.gmra.mxu0 %v1109
    %v1700 = vpop.f32.mrf.mxu0
    %v1701 = vadd.f32 %v1396, %v1700
    %v1702 = vpop.f32.mrf.mxu0
    %1703 = vmatprep.mubr.f32.mxu0 0.0
    %1704 = vmatmul.mubr.f32.gmra.mxu0 %v1112
    %v1705 = vpop.f32.mrf.mxu0
    %v1706 = vadd.f32 %v1401, %v1705
    %v1707 = vpop.f32.mrf.mxu0
    %1708 = vmatprep.mubr.f32.mxu0 0.0
    %1709 = vmatmul.mubr.f32.gmra.mxu0 %v1115
    %v1710 = vpop.f32.mrf.mxu0
    %v1711 = vadd.f32 %v1406, %v1710
    %v1712 = vpop.f32.mrf.mxu0
    %1713 = vmatprep.mubr.f32.mxu0 0.0
    %1714 = vmatmul.mubr.f32.gmra.mxu0 %v1118
    %v1715 = vpop.f32.mrf.mxu0
    %v1716 = vadd.f32 %v1411, %v1715
    %v1717 = vpop.f32.mrf.mxu0
    %1718 = vmatprep.mubr.f32.mxu0 0.0
    %1719 = vmatmul.mubr.f32.gmra.mxu0 %v1121
    %v1720 = vpop.f32.mrf.mxu0
    %v1721 = vadd.f32 %v1416, %v1720
    %v1722 = vpop.f32.mrf.mxu0
    %1723 = vmatprep.mubr.f32.mxu0 0.0
    %1724 = vmatmul.mubr.f32.gmra.mxu0 %v1124
    %v1725 = vpop.f32.mrf.mxu0
    %v1726 = vadd.f32 %v1421, %v1725
    %v1727 = vpop.f32.mrf.mxu0
    %1728 = vmatprep.mubr.f32.mxu0 0.0
    %1729 = vmatmul.mubr.f32.gmra.mxu0 %v1127
    %v1730 = vpop.f32.mrf.mxu0
    %v1731 = vadd.f32 %v1426, %v1730
    %v1732 = vpop.f32.mrf.mxu0
    %1733 = vmatprep.mubr.f32.mxu0 0.0
    %1734 = vmatmul.mubr.f32.gmra.mxu0 %v1130
    %v1735 = vpop.f32.mrf.mxu0
    %v1736 = vadd.f32 %v1431, %v1735
    %v1737 = vpop.f32.mrf.mxu0
    %1738 = vmatprep.mubr.f32.mxu0 0.0
    %1739 = vmatmul.mubr.f32.gmra.mxu0 %v1133
    %v1740 = vpop.f32.mrf.mxu0
    %v1741 = vadd.f32 %v1436, %v1740
    %v1742 = vpop.f32.mrf.mxu0
    %1743 = vdwg.mxu0
    %vm1744 = vcmp.ge.f32.partialorder %v1506, 0.0
    %vm1745 = vcmp.ge.f32.partialorder %v1511, 0.0
    %vm1746 = vcmp.ge.f32.partialorder %v1516, 0.0
    %vm1747 = vcmp.ge.f32.partialorder %v1521, 0.0
    %vm1748 = vcmp.ge.f32.partialorder %v1526, 0.0
    %vm1749 = vcmp.ge.f32.partialorder %v1531, 0.0
    %vm1750 = vcmp.ge.f32.partialorder %v1536, 0.0
    %vm1751 = vcmp.ge.f32.partialorder %v1541, 0.0
    %vm1752 = vcmp.ge.f32.partialorder %v1546, 0.0
    %vm1753 = vcmp.ge.f32.partialorder %v1551, 0.0
    %vm1754 = vcmp.ge.f32.partialorder %v1556, 0.0
    %vm1755 = vcmp.ge.f32.partialorder %v1561, 0.0
    %vm1756 = vcmp.ge.f32.partialorder %v1566, 0.0
    %vm1757 = vcmp.ge.f32.partialorder %v1571, 0.0
    %vm1758 = vcmp.ge.f32.partialorder %v1576, 0.0
    %vm1759 = vcmp.ge.f32.partialorder %v1581, 0.0
    %vm1760 = vcmp.ge.f32.partialorder %v1586, 0.0
    %vm1761 = vcmp.ge.f32.partialorder %v1591, 0.0
    %vm1762 = vcmp.ge.f32.partialorder %v1596, 0.0
    %vm1763 = vcmp.ge.f32.partialorder %v1601, 0.0
    %vm1764 = vcmp.ge.f32.partialorder %v1606, 0.0
    %vm1765 = vcmp.ge.f32.partialorder %v1611, 0.0
    %vm1766 = vcmp.ge.f32.partialorder %v1616, 0.0
    %vm1767 = vcmp.ge.f32.partialorder %v1621, 0.0
    %vm1768 = vcmp.ge.f32.partialorder %v1626, 0.0
    %vm1769 = vcmp.ge.f32.partialorder %v1631, 0.0
    %vm1770 = vcmp.ge.f32.partialorder %v1636, 0.0
    %vm1771 = vcmp.ge.f32.partialorder %v1641, 0.0
    %vm1772 = vcmp.ge.f32.partialorder %v1646, 0.0
    %vm1773 = vcmp.ge.f32.partialorder %v1651, 0.0
    %vm1774 = vcmp.ge.f32.partialorder %v1656, 0.0
    %vm1775 = vcmp.ge.f32.partialorder %v1661, 0.0
    %vm1776 = vcmp.ge.f32.partialorder %v1666, 0.0
    %vm1777 = vcmp.ge.f32.partialorder %v1671, 0.0
    %vm1778 = vcmp.ge.f32.partialorder %v1676, 0.0
    %vm1779 = vcmp.ge.f32.partialorder %v1681, 0.0
    %vm1780 = vcmp.ge.f32.partialorder %v1686, 0.0
    %vm1781 = vcmp.ge.f32.partialorder %v1691, 0.0
    %vm1782 = vcmp.ge.f32.partialorder %v1696, 0.0
    %vm1783 = vcmp.ge.f32.partialorder %v1701, 0.0
    %vm1784 = vcmp.ge.f32.partialorder %v1706, 0.0
    %vm1785 = vcmp.ge.f32.partialorder %v1711, 0.0
    %vm1786 = vcmp.ge.f32.partialorder %v1716, 0.0
    %vm1787 = vcmp.ge.f32.partialorder %v1721, 0.0
    %vm1788 = vcmp.ge.f32.partialorder %v1726, 0.0
    %vm1789 = vcmp.ge.f32.partialorder %v1731, 0.0
    %vm1790 = vcmp.ge.f32.partialorder %v1736, 0.0
    %vm1791 = vcmp.ge.f32.partialorder %v1741, 0.0
    %v1792 = vmul.f32 %v1506, 0.2
    %v1793 = vmul.f32 %v1511, 0.2
    %v1794 = vmul.f32 %v1516, 0.2
    %v1795 = vmul.f32 %v1521, 0.2
    %v1796 = vmul.f32 %v1526, 0.2
    %v1797 = vmul.f32 %v1531, 0.2
    %v1798 = vmul.f32 %v1536, 0.2
    %v1799 = vmul.f32 %v1541, 0.2
    %v1800 = vmul.f32 %v1546, 0.2
    %v1801 = vmul.f32 %v1551, 0.2
    %v1802 = vmul.f32 %v1556, 0.2
    %v1803 = vmul.f32 %v1561, 0.2
    %v1804 = vmul.f32 %v1566, 0.2
    %v1805 = vmul.f32 %v1571, 0.2
    %v1806 = vmul.f32 %v1576, 0.2
    %v1807 = vmul.f32 %v1581, 0.2
    %v1808 = vmul.f32 %v1586, 0.2
    %v1809 = vmul.f32 %v1591, 0.2
    %v1810 = vmul.f32 %v1596, 0.2
    %v1811 = vmul.f32 %v1601, 0.2
    %v1812 = vmul.f32 %v1606, 0.2
    %v1813 = vmul.f32 %v1611, 0.2
    %v1814 = vmul.f32 %v1616, 0.2
    %v1815 = vmul.f32 %v1621, 0.2
    %v1816 = vmul.f32 %v1626, 0.2
    %v1817 = vmul.f32 %v1631, 0.2
    %v1818 = vmul.f32 %v1636, 0.2
    %v1819 = vmul.f32 %v1641, 0.2
    %v1820 = vmul.f32 %v1646, 0.2
    %v1821 = vmul.f32 %v1651, 0.2
    %v1822 = vmul.f32 %v1656, 0.2
    %v1823 = vmul.f32 %v1661, 0.2
    %v1824 = vmul.f32 %v1666, 0.2
    %v1825 = vmul.f32 %v1671, 0.2
    %v1826 = vmul.f32 %v1676, 0.2
    %v1827 = vmul.f32 %v1681, 0.2
    %v1828 = vmul.f32 %v1686, 0.2
    %v1829 = vmul.f32 %v1691, 0.2
    %v1830 = vmul.f32 %v1696, 0.2
    %v1831 = vmul.f32 %v1701, 0.2
    %v1832 = vmul.f32 %v1706, 0.2
    %v1833 = vmul.f32 %v1711, 0.2
    %v1834 = vmul.f32 %v1716, 0.2
    %v1835 = vmul.f32 %v1721, 0.2
    %v1836 = vmul.f32 %v1726, 0.2
    %v1837 = vmul.f32 %v1731, 0.2
    %v1838 = vmul.f32 %v1736, 0.2
    %v1839 = vmul.f32 %v1741, 0.2
    %v1840 = vsel %vm1744, %v1506, %v1792
    %v1841 = vsel %vm1745, %v1511, %v1793
    %v1842 = vsel %vm1746, %v1516, %v1794
    %v1843 = vsel %vm1747, %v1521, %v1795
    %v1844 = vsel %vm1748, %v1526, %v1796
    %v1845 = vsel %vm1749, %v1531, %v1797
    %v1846 = vsel %vm1750, %v1536, %v1798
    %v1847 = vsel %vm1751, %v1541, %v1799
    %v1848 = vsel %vm1752, %v1546, %v1800
    %v1849 = vsel %vm1753, %v1551, %v1801
    %v1850 = vsel %vm1754, %v1556, %v1802
    %v1851 = vsel %vm1755, %v1561, %v1803
    %v1852 = vsel %vm1756, %v1566, %v1804
    %v1853 = vsel %vm1757, %v1571, %v1805
    %v1854 = vsel %vm1758, %v1576, %v1806
    %v1855 = vsel %vm1759, %v1581, %v1807
    %v1856 = vsel %vm1760, %v1586, %v1808
    %v1857 = vsel %vm1761, %v1591, %v1809
    %v1858 = vsel %vm1762, %v1596, %v1810
    %v1859 = vsel %vm1763, %v1601, %v1811
    %v1860 = vsel %vm1764, %v1606, %v1812
    %v1861 = vsel %vm1765, %v1611, %v1813
    %v1862 = vsel %vm1766, %v1616, %v1814
    %v1863 = vsel %vm1767, %v1621, %v1815
    %v1864 = vsel %vm1768, %v1626, %v1816
    %v1865 = vsel %vm1769, %v1631, %v1817
    %v1866 = vsel %vm1770, %v1636, %v1818
    %v1867 = vsel %vm1771, %v1641, %v1819
    %v1868 = vsel %vm1772, %v1646, %v1820
    %v1869 = vsel %vm1773, %v1651, %v1821
    %v1870 = vsel %vm1774, %v1656, %v1822
    %v1871 = vsel %vm1775, %v1661, %v1823
    %v1872 = vsel %vm1776, %v1666, %v1824
    %v1873 = vsel %vm1777, %v1671, %v1825
    %v1874 = vsel %vm1778, %v1676, %v1826
    %v1875 = vsel %vm1779, %v1681, %v1827
    %v1876 = vsel %vm1780, %v1686, %v1828
    %v1877 = vsel %vm1781, %v1691, %v1829
    %v1878 = vsel %vm1782, %v1696, %v1830
    %v1879 = vsel %vm1783, %v1701, %v1831
    %v1880 = vsel %vm1784, %v1706, %v1832
    %v1881 = vsel %vm1785, %v1711, %v1833
    %v1882 = vsel %vm1786, %v1716, %v1834
    %v1883 = vsel %vm1787, %v1721, %v1835
    %v1884 = vsel %vm1788, %v1726, %v1836
    %v1885 = vsel %vm1789, %v1731, %v1837
    %v1886 = vsel %vm1790, %v1736, %v1838
    %v1887 = vsel %vm1791, %v1741, %v1839
    %1888 = vst [vmem:[#allocation8] sm:$0xff] %v1840
    %1889 = vst [vmem:[#allocation8 + $0x8] sm:$0xff] %v1841
    %1890 = vst [vmem:[#allocation8 + $0x10] sm:$0xff] %v1842
    %1891 = vst [vmem:[#allocation8 + $0x18] sm:$0xff] %v1843
    %1892 = vst [vmem:[#allocation8 + $0x20] sm:$0xff] %v1844
    %1893 = vst [vmem:[#allocation8 + $0x28] sm:$0xff] %v1845
    %1894 = vst [vmem:[#allocation8 + $0x30] sm:$0xff] %v1846
    %1895 = vst [vmem:[#allocation8 + $0x38] sm:$0xff] %v1847
    %1896 = vst [vmem:[#allocation8 + $0x40] sm:$0xff] %v1848
    %1897 = vst [vmem:[#allocation8 + $0x48] sm:$0xff] %v1849
    %1898 = vst [vmem:[#allocation8 + $0x50] sm:$0xff] %v1850
    %1899 = vst [vmem:[#allocation8 + $0x58] sm:$0xff] %v1851
    %1900 = vst [vmem:[#allocation8 + $0x60] sm:$0xff] %v1852
    %1901 = vst [vmem:[#allocation8 + $0x68] sm:$0xff] %v1853
    %1902 = vst [vmem:[#allocation8 + $0x70] sm:$0xff] %v1854
    %1903 = vst [vmem:[#allocation8 + $0x78] sm:$0xff] %v1855
    %1904 = vst [vmem:[#allocation8 + $0x80] sm:$0xff] %v1856
    %1905 = vst [vmem:[#allocation8 + $0x88] sm:$0xff] %v1857
    %1906 = vst [vmem:[#allocation8 + $0x90] sm:$0xff] %v1858
    %1907 = vst [vmem:[#allocation8 + $0x98] sm:$0xff] %v1859
    %1908 = vst [vmem:[#allocation8 + $0xa0] sm:$0xff] %v1860
    %1909 = vst [vmem:[#allocation8 + $0xa8] sm:$0xff] %v1861
    %1910 = vst [vmem:[#allocation8 + $0xb0] sm:$0xff] %v1862
    %1911 = vst [vmem:[#allocation8 + $0xb8] sm:$0xff] %v1863
    %s1912 = scalar_lea.vmem [#allocation5], 2304
    %v1913 = vld [vmem:[%s1912] sm:$0xff]
    %v1914 = vld [vmem:[%s1912 + $0x8] sm:$0xff]
    %v1915 = vld [vmem:[%s1912 + $0x10] sm:$0xff]
    %v1916 = vld [vmem:[%s1912 + $0x18] sm:$0xff]
    %v1917 = vld [vmem:[%s1912 + $0x20] sm:$0xff]
    %v1918 = vld [vmem:[%s1912 + $0x28] sm:$0xff]
    %v1919 = vld [vmem:[%s1912 + $0x30] sm:$0xff]
    %v1920 = vld [vmem:[%s1912 + $0x38] sm:$0xff]
    %v1921 = vld [vmem:[%s1912 + $0x40] sm:$0xff]
    %v1922 = vld [vmem:[%s1912 + $0x48] sm:$0xff]
    %v1923 = vld [vmem:[%s1912 + $0x50] sm:$0xff]
    %v1924 = vld [vmem:[%s1912 + $0x58] sm:$0xff]
    %v1925 = vld [vmem:[%s1912 + $0x60] sm:$0xff]
    %v1926 = vld [vmem:[%s1912 + $0x68] sm:$0xff]
    %v1927 = vld [vmem:[%s1912 + $0x70] sm:$0xff]
    %v1928 = vld [vmem:[%s1912 + $0x78] sm:$0xff]
    %v1929 = vld [vmem:[%s1912 + $0x80] sm:$0xff]
    %v1930 = vld [vmem:[%s1912 + $0x88] sm:$0xff]
    %v1931 = vld [vmem:[%s1912 + $0x90] sm:$0xff]
    %v1932 = vld [vmem:[%s1912 + $0x98] sm:$0xff]
    %v1933 = vld [vmem:[%s1912 + $0xa0] sm:$0xff]
    %v1934 = vld [vmem:[%s1912 + $0xa8] sm:$0xff]
    %v1935 = vld [vmem:[%s1912 + $0xb0] sm:$0xff]
    %v1936 = vld [vmem:[%s1912 + $0xb8] sm:$0xff]
    %v1937 = vld [vmem:[%s1912 + $0xc0] sm:$0xff]
    %v1938 = vld [vmem:[%s1912 + $0xc8] sm:$0xff]
    %v1939 = vld [vmem:[%s1912 + $0xd0] sm:$0xff]
    %v1940 = vld [vmem:[%s1912 + $0xd8] sm:$0xff]
    %v1941 = vld [vmem:[%s1912 + $0xe0] sm:$0xff]
    %v1942 = vld [vmem:[%s1912 + $0xe8] sm:$0xff]
    %v1943 = vld [vmem:[%s1912 + $0xf0] sm:$0xff]
    %v1944 = vld [vmem:[%s1912 + $0xf8] sm:$0xff]
    %v1945 = vld [vmem:[%s1912 + $0x100] sm:$0xff]
    %v1946 = vld [vmem:[%s1912 + $0x108] sm:$0xff]
    %v1947 = vld [vmem:[%s1912 + $0x110] sm:$0xff]
    %v1948 = vld [vmem:[%s1912 + $0x118] sm:$0xff]
    %v1949 = vld [vmem:[%s1912 + $0x120] sm:$0xff]
    %v1950 = vld [vmem:[%s1912 + $0x128] sm:$0xff]
    %v1951 = vld [vmem:[%s1912 + $0x130] sm:$0xff]
    %v1952 = vld [vmem:[%s1912 + $0x138] sm:$0xff]
    %v1953 = vld [vmem:[%s1912 + $0x140] sm:$0xff]
    %v1954 = vld [vmem:[%s1912 + $0x148] sm:$0xff]
    %v1955 = vld [vmem:[%s1912 + $0x150] sm:$0xff]
    %v1956 = vld [vmem:[%s1912 + $0x158] sm:$0xff]
    %v1957 = vld [vmem:[%s1912 + $0x160] sm:$0xff]
    %v1958 = vld [vmem:[%s1912 + $0x168] sm:$0xff]
    %v1959 = vld [vmem:[%s1912 + $0x170] sm:$0xff]
    %v1960 = vld [vmem:[%s1912 + $0x178] sm:$0xff]
    %v1961 = vld [vmem:[%s1912 + $0x180] sm:$0xff]
    %v1962 = vld [vmem:[%s1912 + $0x188] sm:$0xff]
    %v1963 = vld [vmem:[%s1912 + $0x190] sm:$0xff]
    %v1964 = vld [vmem:[%s1912 + $0x198] sm:$0xff]
    %v1965 = vld [vmem:[%s1912 + $0x1a0] sm:$0xff]
    %v1966 = vld [vmem:[%s1912 + $0x1a8] sm:$0xff]
    %v1967 = vld [vmem:[%s1912 + $0x1b0] sm:$0xff]
    %v1968 = vld [vmem:[%s1912 + $0x1b8] sm:$0xff]
    %v1969 = vld [vmem:[%s1912 + $0x1c0] sm:$0xff]
    %v1970 = vld [vmem:[%s1912 + $0x1c8] sm:$0xff]
    %v1971 = vld [vmem:[%s1912 + $0x1d0] sm:$0xff]
    %v1972 = vld [vmem:[%s1912 + $0x1d8] sm:$0xff]
    %v1973 = vld [vmem:[%s1912 + $0x1e0] sm:$0xff]
    %v1974 = vld [vmem:[%s1912 + $0x1e8] sm:$0xff]
    %v1975 = vld [vmem:[%s1912 + $0x1f0] sm:$0xff]
    %v1976 = vld [vmem:[%s1912 + $0x1f8] sm:$0xff]
    %v1977 = vld [vmem:[%s1912 + $0x200] sm:$0xff]
    %v1978 = vld [vmem:[%s1912 + $0x208] sm:$0xff]
    %v1979 = vld [vmem:[%s1912 + $0x210] sm:$0xff]
    %v1980 = vld [vmem:[%s1912 + $0x218] sm:$0xff]
    %v1981 = vld [vmem:[%s1912 + $0x220] sm:$0xff]
    %v1982 = vld [vmem:[%s1912 + $0x228] sm:$0xff]
    %v1983 = vld [vmem:[%s1912 + $0x230] sm:$0xff]
    %v1984 = vld [vmem:[%s1912 + $0x238] sm:$0xff]
    %v1985 = vld [vmem:[%s1912 + $0x240] sm:$0xff]
    %v1986 = vld [vmem:[%s1912 + $0x248] sm:$0xff]
    %v1987 = vld [vmem:[%s1912 + $0x250] sm:$0xff]
    %v1988 = vld [vmem:[%s1912 + $0x258] sm:$0xff]
    %v1989 = vld [vmem:[%s1912 + $0x260] sm:$0xff]
    %v1990 = vld [vmem:[%s1912 + $0x268] sm:$0xff]
    %v1991 = vld [vmem:[%s1912 + $0x270] sm:$0xff]
    %v1992 = vld [vmem:[%s1912 + $0x278] sm:$0xff]
    %v1993 = vld [vmem:[%s1912 + $0x280] sm:$0xff]
    %v1994 = vld [vmem:[%s1912 + $0x288] sm:$0xff]
    %v1995 = vld [vmem:[%s1912 + $0x290] sm:$0xff]
    %v1996 = vld [vmem:[%s1912 + $0x298] sm:$0xff]
    %v1997 = vld [vmem:[%s1912 + $0x2a0] sm:$0xff]
    %v1998 = vld [vmem:[%s1912 + $0x2a8] sm:$0xff]
    %v1999 = vld [vmem:[%s1912 + $0x2b0] sm:$0xff]
    %v2000 = vld [vmem:[%s1912 + $0x2b8] sm:$0xff]
    %v2001 = vld [vmem:[%s1912 + $0x2c0] sm:$0xff]
    %v2002 = vld [vmem:[%s1912 + $0x2c8] sm:$0xff]
    %v2003 = vld [vmem:[%s1912 + $0x2d0] sm:$0xff]
    %v2004 = vld [vmem:[%s1912 + $0x2d8] sm:$0xff]
    %v2005 = vld [vmem:[%s1912 + $0x2e0] sm:$0xff]
    %v2006 = vld [vmem:[%s1912 + $0x2e8] sm:$0xff]
    %v2007 = vld [vmem:[%s1912 + $0x2f0] sm:$0xff]
    %v2008 = vld [vmem:[%s1912 + $0x2f8] sm:$0xff]
    %v2009 = vld [vmem:[%s1912 + $0x300] sm:$0xff]
    %v2010 = vld [vmem:[%s1912 + $0x308] sm:$0xff]
    %v2011 = vld [vmem:[%s1912 + $0x310] sm:$0xff]
    %v2012 = vld [vmem:[%s1912 + $0x318] sm:$0xff]
    %v2013 = vld [vmem:[%s1912 + $0x320] sm:$0xff]
    %v2014 = vld [vmem:[%s1912 + $0x328] sm:$0xff]
    %v2015 = vld [vmem:[%s1912 + $0x330] sm:$0xff]
    %v2016 = vld [vmem:[%s1912 + $0x338] sm:$0xff]
    %v2017 = vld [vmem:[%s1912 + $0x340] sm:$0xff]
    %v2018 = vld [vmem:[%s1912 + $0x348] sm:$0xff]
    %v2019 = vld [vmem:[%s1912 + $0x350] sm:$0xff]
    %v2020 = vld [vmem:[%s1912 + $0x358] sm:$0xff]
    %v2021 = vld [vmem:[%s1912 + $0x360] sm:$0xff]
    %v2022 = vld [vmem:[%s1912 + $0x368] sm:$0xff]
    %v2023 = vld [vmem:[%s1912 + $0x370] sm:$0xff]
    %v2024 = vld [vmem:[%s1912 + $0x378] sm:$0xff]
    %v2025 = vld [vmem:[%s1912 + $0x380] sm:$0xff]
    %v2026 = vld [vmem:[%s1912 + $0x388] sm:$0xff]
    %v2027 = vld [vmem:[%s1912 + $0x390] sm:$0xff]
    %v2028 = vld [vmem:[%s1912 + $0x398] sm:$0xff]
    %v2029 = vld [vmem:[%s1912 + $0x3a0] sm:$0xff]
    %v2030 = vld [vmem:[%s1912 + $0x3a8] sm:$0xff]
    %v2031 = vld [vmem:[%s1912 + $0x3b0] sm:$0xff]
    %v2032 = vld [vmem:[%s1912 + $0x3b8] sm:$0xff]
    %v2033 = vld [vmem:[%s1912 + $0x3c0] sm:$0xff]
    %v2034 = vld [vmem:[%s1912 + $0x3c8] sm:$0xff]
    %v2035 = vld [vmem:[%s1912 + $0x3d0] sm:$0xff]
    %v2036 = vld [vmem:[%s1912 + $0x3d8] sm:$0xff]
    %v2037 = vld [vmem:[%s1912 + $0x3e0] sm:$0xff]
    %v2038 = vld [vmem:[%s1912 + $0x3e8] sm:$0xff]
    %v2039 = vld [vmem:[%s1912 + $0x3f0] sm:$0xff]
    %v2040 = vld [vmem:[%s1912 + $0x3f8] sm:$0xff]
    %v2041 = vld [vmem:[%s1912 + $0x400] sm:$0xff]
    %v2042 = vld [vmem:[%s1912 + $0x408] sm:$0xff]
    %v2043 = vld [vmem:[%s1912 + $0x410] sm:$0xff]
    %v2044 = vld [vmem:[%s1912 + $0x418] sm:$0xff]
    %v2045 = vld [vmem:[%s1912 + $0x420] sm:$0xff]
    %v2046 = vld [vmem:[%s1912 + $0x428] sm:$0xff]
    %v2047 = vld [vmem:[%s1912 + $0x430] sm:$0xff]
    %v2048 = vld [vmem:[%s1912 + $0x438] sm:$0xff]
    %v2049 = vld [vmem:[%s1912 + $0x440] sm:$0xff]
    %v2050 = vld [vmem:[%s1912 + $0x448] sm:$0xff]
    %v2051 = vld [vmem:[%s1912 + $0x450] sm:$0xff]
    %v2052 = vld [vmem:[%s1912 + $0x458] sm:$0xff]
    %v2053 = vld [vmem:[%s1912 + $0x460] sm:$0xff]
    %v2054 = vld [vmem:[%s1912 + $0x468] sm:$0xff]
    %v2055 = vld [vmem:[%s1912 + $0x470] sm:$0xff]
    %v2056 = vld [vmem:[%s1912 + $0x478] sm:$0xff]
    %2057 = vmatprep.subr.mxu0 0.0
    %2058 = vmatpush1.msra.mxu0 %v1855
    %2059 = vmatprep.subr.mxu0 0.0
    %2060 = vmatpush1.msra.mxu0 %v1854
    %2061 = vmatprep.subr.mxu0 0.0
    %2062 = vmatpush1.msra.mxu0 %v1853
    %2063 = vmatprep.subr.mxu0 0.0
    %2064 = vmatpush1.msra.mxu0 %v1852
    %2065 = vmatprep.subr.mxu0 0.0
    %2066 = vmatpush1.msra.mxu0 %v1851
    %2067 = vmatprep.subr.mxu0 0.0
    %2068 = vmatpush1.msra.mxu0 %v1850
    %2069 = vmatprep.subr.mxu0 0.0
    %2070 = vmatpush1.msra.mxu0 %v1849
    %2071 = vmatprep.subr.mxu0 0.0
    %2072 = vmatpush1.msra.mxu0 %v1848
    %2073 = vmatprep.subr.mxu0 0.0
    %2074 = vmatpush1.msra.mxu0 %v1847
    %2075 = vmatprep.subr.mxu0 0.0
    %2076 = vmatpush1.msra.mxu0 %v1846
    %2077 = vmatprep.subr.mxu0 0.0
    %2078 = vmatpush1.msra.mxu0 %v1845
    %2079 = vmatprep.subr.mxu0 0.0
    %2080 = vmatpush1.msra.mxu0 %v1844
    %2081 = vmatprep.subr.mxu0 0.0
    %2082 = vmatpush1.msra.mxu0 %v1843
    %2083 = vmatprep.subr.mxu0 0.0
    %2084 = vmatpush1.msra.mxu0 %v1842
    %2085 = vmatprep.subr.mxu0 0.0
    %2086 = vmatpush1.msra.mxu0 %v1841
    %2087 = vmatprep.subr.mxu0 0.0
    %2088 = vmatpush1.msra.mxu0 %v1840
    %2089 = vmatprep.subr.mxu0 0.0
    %2090 = vmatpush2.msra.mxu0 %v1871
    %2091 = vmatprep.subr.mxu0 0.0
    %2092 = vmatpush2.msra.mxu0 %v1870
    %2093 = vmatprep.subr.mxu0 0.0
    %2094 = vmatpush2.msra.mxu0 %v1869
    %2095 = vmatprep.subr.mxu0 0.0
    %2096 = vmatpush2.msra.mxu0 %v1868
    %2097 = vmatprep.subr.mxu0 0.0
    %2098 = vmatpush2.msra.mxu0 %v1867
    %2099 = vmatprep.subr.mxu0 0.0
    %2100 = vmatpush2.msra.mxu0 %v1866
    %2101 = vmatprep.subr.mxu0 0.0
    %2102 = vmatpush2.msra.mxu0 %v1865
    %2103 = vmatprep.subr.mxu0 0.0
    %2104 = vmatpush2.msra.mxu0 %v1864
    %2105 = vmatprep.subr.mxu0 0.0
    %2106 = vmatpush2.msra.mxu0 %v1863
    %2107 = vmatprep.subr.mxu0 0.0
    %2108 = vmatpush2.msra.mxu0 %v1862
    %2109 = vmatprep.subr.mxu0 0.0
    %2110 = vmatpush2.msra.mxu0 %v1861
    %2111 = vmatprep.subr.mxu0 0.0
    %2112 = vmatpush2.msra.mxu0 %v1860
    %2113 = vmatprep.subr.mxu0 0.0
    %2114 = vmatpush2.msra.mxu0 %v1859
    %2115 = vmatprep.subr.mxu0 0.0
    %2116 = vmatpush2.msra.mxu0 %v1858
    %2117 = vmatprep.subr.mxu0 0.0
    %2118 = vmatpush2.msra.mxu0 %v1857
    %2119 = vmatprep.subr.mxu0 0.0
    %2120 = vmatpush2.msra.mxu0 %v1856
    %2121 = vmatprep.mubr.f32.mxu0 %v1914
    %2122 = vmatmul.mubr.f32.gmra.mxu0 %v1913
    %v2123 = vpop.f32.mrf.mxu0
    %v2124 = vadd.f32 0.0, %v2123
    %v2125 = vpop.f32.mrf.mxu0
    %2126 = vmatprep.mubr.f32.mxu0 %v1917
    %2127 = vmatmul.mubr.f32.gmra.mxu0 %v1916
    %v2128 = vpop.f32.mrf.mxu0
    %v2129 = vadd.f32 0.0, %v2128
    %v2130 = vpop.f32.mrf.mxu0
    %2131 = vmatprep.mubr.f32.mxu0 %v1920
    %2132 = vmatmul.mubr.f32.gmra.mxu0 %v1919
    %v2133 = vpop.f32.mrf.mxu0
    %v2134 = vadd.f32 0.0, %v2133
    %v2135 = vpop.f32.mrf.mxu0
    %2136 = vmatprep.mubr.f32.mxu0 %v1923
    %2137 = vmatmul.mubr.f32.gmra.mxu0 %v1922
    %v2138 = vpop.f32.mrf.mxu0
    %v2139 = vadd.f32 0.0, %v2138
    %v2140 = vpop.f32.mrf.mxu0
    %2141 = vmatprep.mubr.f32.mxu0 %v1926
    %2142 = vmatmul.mubr.f32.gmra.mxu0 %v1925
    %v2143 = vpop.f32.mrf.mxu0
    %v2144 = vadd.f32 0.0, %v2143
    %v2145 = vpop.f32.mrf.mxu0
    %2146 = vmatprep.mubr.f32.mxu0 %v1929
    %2147 = vmatmul.mubr.f32.gmra.mxu0 %v1928
    %v2148 = vpop.f32.mrf.mxu0
    %v2149 = vadd.f32 0.0, %v2148
    %v2150 = vpop.f32.mrf.mxu0
    %2151 = vmatprep.mubr.f32.mxu0 %v1932
    %2152 = vmatmul.mubr.f32.gmra.mxu0 %v1931
    %v2153 = vpop.f32.mrf.mxu0
    %v2154 = vadd.f32 0.0, %v2153
    %v2155 = vpop.f32.mrf.mxu0
    %2156 = vmatprep.mubr.f32.mxu0 %v1935
    %2157 = vmatmul.mubr.f32.gmra.mxu0 %v1934
    %v2158 = vpop.f32.mrf.mxu0
    %v2159 = vadd.f32 0.0, %v2158
    %v2160 = vpop.f32.mrf.mxu0
    %2161 = vmatprep.mubr.f32.mxu0 %v1938
    %2162 = vmatmul.mubr.f32.gmra.mxu0 %v1937
    %v2163 = vpop.f32.mrf.mxu0
    %v2164 = vadd.f32 0.0, %v2163
    %v2165 = vpop.f32.mrf.mxu0
    %2166 = vmatprep.mubr.f32.mxu0 %v1941
    %2167 = vmatmul.mubr.f32.gmra.mxu0 %v1940
    %v2168 = vpop.f32.mrf.mxu0
    %v2169 = vadd.f32 0.0, %v2168
    %v2170 = vpop.f32.mrf.mxu0
    %2171 = vmatprep.mubr.f32.mxu0 %v1944
    %2172 = vmatmul.mubr.f32.gmra.mxu0 %v1943
    %v2173 = vpop.f32.mrf.mxu0
    %v2174 = vadd.f32 0.0, %v2173
    %v2175 = vpop.f32.mrf.mxu0
    %2176 = vmatprep.mubr.f32.mxu0 %v1947
    %2177 = vmatmul.mubr.f32.gmra.mxu0 %v1946
    %v2178 = vpop.f32.mrf.mxu0
    %v2179 = vadd.f32 0.0, %v2178
    %v2180 = vpop.f32.mrf.mxu0
    %2181 = vmatprep.mubr.f32.mxu0 %v1950
    %2182 = vmatmul.mubr.f32.gmra.mxu0 %v1949
    %v2183 = vpop.f32.mrf.mxu0
    %v2184 = vadd.f32 0.0, %v2183
    %v2185 = vpop.f32.mrf.mxu0
    %2186 = vmatprep.mubr.f32.mxu0 %v1953
    %2187 = vmatmul.mubr.f32.gmra.mxu0 %v1952
    %v2188 = vpop.f32.mrf.mxu0
    %v2189 = vadd.f32 0.0, %v2188
    %v2190 = vpop.f32.mrf.mxu0
    %2191 = vmatprep.mubr.f32.mxu0 %v1956
    %2192 = vmatmul.mubr.f32.gmra.mxu0 %v1955
    %v2193 = vpop.f32.mrf.mxu0
    %v2194 = vadd.f32 0.0, %v2193
    %v2195 = vpop.f32.mrf.mxu0
    %2196 = vmatprep.mubr.f32.mxu0 %v1959
    %2197 = vmatmul.mubr.f32.gmra.mxu0 %v1958
    %v2198 = vpop.f32.mrf.mxu0
    %v2199 = vadd.f32 0.0, %v2198
    %v2200 = vpop.f32.mrf.mxu0
    %2201 = vmatprep.mubr.f32.mxu0 %v1962
    %2202 = vmatmul.mubr.f32.gmra.mxu0 %v1961
    %v2203 = vpop.f32.mrf.mxu0
    %v2204 = vadd.f32 0.0, %v2203
    %v2205 = vpop.f32.mrf.mxu0
    %2206 = vmatprep.mubr.f32.mxu0 %v1965
    %2207 = vmatmul.mubr.f32.gmra.mxu0 %v1964
    %v2208 = vpop.f32.mrf.mxu0
    %v2209 = vadd.f32 0.0, %v2208
    %v2210 = vpop.f32.mrf.mxu0
    %2211 = vmatprep.mubr.f32.mxu0 %v1968
    %2212 = vmatmul.mubr.f32.gmra.mxu0 %v1967
    %v2213 = vpop.f32.mrf.mxu0
    %v2214 = vadd.f32 0.0, %v2213
    %v2215 = vpop.f32.mrf.mxu0
    %2216 = vmatprep.mubr.f32.mxu0 %v1971
    %2217 = vmatmul.mubr.f32.gmra.mxu0 %v1970
    %v2218 = vpop.f32.mrf.mxu0
    %v2219 = vadd.f32 0.0, %v2218
    %v2220 = vpop.f32.mrf.mxu0
    %2221 = vmatprep.mubr.f32.mxu0 %v1974
    %2222 = vmatmul.mubr.f32.gmra.mxu0 %v1973
    %v2223 = vpop.f32.mrf.mxu0
    %v2224 = vadd.f32 0.0, %v2223
    %v2225 = vpop.f32.mrf.mxu0
    %2226 = vmatprep.mubr.f32.mxu0 %v1977
    %2227 = vmatmul.mubr.f32.gmra.mxu0 %v1976
    %v2228 = vpop.f32.mrf.mxu0
    %v2229 = vadd.f32 0.0, %v2228
    %v2230 = vpop.f32.mrf.mxu0
    %2231 = vmatprep.mubr.f32.mxu0 %v1980
    %2232 = vmatmul.mubr.f32.gmra.mxu0 %v1979
    %v2233 = vpop.f32.mrf.mxu0
    %v2234 = vadd.f32 0.0, %v2233
    %v2235 = vpop.f32.mrf.mxu0
    %2236 = vmatprep.mubr.f32.mxu0 %v1983
    %2237 = vmatmul.mubr.f32.gmra.mxu0 %v1982
    %v2238 = vpop.f32.mrf.mxu0
    %v2239 = vadd.f32 0.0, %v2238
    %v2240 = vpop.f32.mrf.mxu0
    %2241 = vmatprep.mubr.f32.mxu0 %v1986
    %2242 = vmatmul.mubr.f32.gmra.mxu0 %v1985
    %v2243 = vpop.f32.mrf.mxu0
    %v2244 = vadd.f32 0.0, %v2243
    %v2245 = vpop.f32.mrf.mxu0
    %2246 = vmatprep.mubr.f32.mxu0 %v1989
    %2247 = vmatmul.mubr.f32.gmra.mxu0 %v1988
    %v2248 = vpop.f32.mrf.mxu0
    %v2249 = vadd.f32 0.0, %v2248
    %v2250 = vpop.f32.mrf.mxu0
    %2251 = vmatprep.mubr.f32.mxu0 %v1992
    %2252 = vmatmul.mubr.f32.gmra.mxu0 %v1991
    %v2253 = vpop.f32.mrf.mxu0
    %v2254 = vadd.f32 0.0, %v2253
    %v2255 = vpop.f32.mrf.mxu0
    %2256 = vmatprep.mubr.f32.mxu0 %v1995
    %2257 = vmatmul.mubr.f32.gmra.mxu0 %v1994
    %v2258 = vpop.f32.mrf.mxu0
    %v2259 = vadd.f32 0.0, %v2258
    %v2260 = vpop.f32.mrf.mxu0
    %2261 = vmatprep.mubr.f32.mxu0 %v1998
    %2262 = vmatmul.mubr.f32.gmra.mxu0 %v1997
    %v2263 = vpop.f32.mrf.mxu0
    %v2264 = vadd.f32 0.0, %v2263
    %v2265 = vpop.f32.mrf.mxu0
    %2266 = vmatprep.mubr.f32.mxu0 %v2001
    %2267 = vmatmul.mubr.f32.gmra.mxu0 %v2000
    %v2268 = vpop.f32.mrf.mxu0
    %v2269 = vadd.f32 0.0, %v2268
    %v2270 = vpop.f32.mrf.mxu0
    %2271 = vmatprep.mubr.f32.mxu0 %v2004
    %2272 = vmatmul.mubr.f32.gmra.mxu0 %v2003
    %v2273 = vpop.f32.mrf.mxu0
    %v2274 = vadd.f32 0.0, %v2273
    %v2275 = vpop.f32.mrf.mxu0
    %2276 = vmatprep.mubr.f32.mxu0 %v2007
    %2277 = vmatmul.mubr.f32.gmra.mxu0 %v2006
    %v2278 = vpop.f32.mrf.mxu0
    %v2279 = vadd.f32 0.0, %v2278
    %v2280 = vpop.f32.mrf.mxu0
    %2281 = vmatprep.mubr.f32.mxu0 %v2010
    %2282 = vmatmul.mubr.f32.gmra.mxu0 %v2009
    %v2283 = vpop.f32.mrf.mxu0
    %v2284 = vadd.f32 0.0, %v2283
    %v2285 = vpop.f32.mrf.mxu0
    %2286 = vmatprep.mubr.f32.mxu0 %v2013
    %2287 = vmatmul.mubr.f32.gmra.mxu0 %v2012
    %v2288 = vpop.f32.mrf.mxu0
    %v2289 = vadd.f32 0.0, %v2288
    %v2290 = vpop.f32.mrf.mxu0
    %2291 = vmatprep.mubr.f32.mxu0 %v2016
    %2292 = vmatmul.mubr.f32.gmra.mxu0 %v2015
    %v2293 = vpop.f32.mrf.mxu0
    %v2294 = vadd.f32 0.0, %v2293
    %v2295 = vpop.f32.mrf.mxu0
    %2296 = vmatprep.mubr.f32.mxu0 %v2019
    %2297 = vmatmul.mubr.f32.gmra.mxu0 %v2018
    %v2298 = vpop.f32.mrf.mxu0
    %v2299 = vadd.f32 0.0, %v2298
    %v2300 = vpop.f32.mrf.mxu0
    %2301 = vmatprep.mubr.f32.mxu0 %v2022
    %2302 = vmatmul.mubr.f32.gmra.mxu0 %v2021
    %v2303 = vpop.f32.mrf.mxu0
    %v2304 = vadd.f32 0.0, %v2303
    %v2305 = vpop.f32.mrf.mxu0
    %2306 = vmatprep.mubr.f32.mxu0 %v2025
    %2307 = vmatmul.mubr.f32.gmra.mxu0 %v2024
    %v2308 = vpop.f32.mrf.mxu0
    %v2309 = vadd.f32 0.0, %v2308
    %v2310 = vpop.f32.mrf.mxu0
    %2311 = vmatprep.mubr.f32.mxu0 %v2028
    %2312 = vmatmul.mubr.f32.gmra.mxu0 %v2027
    %v2313 = vpop.f32.mrf.mxu0
    %v2314 = vadd.f32 0.0, %v2313
    %v2315 = vpop.f32.mrf.mxu0
    %2316 = vmatprep.mubr.f32.mxu0 %v2031
    %2317 = vmatmul.mubr.f32.gmra.mxu0 %v2030
    %v2318 = vpop.f32.mrf.mxu0
    %v2319 = vadd.f32 0.0, %v2318
    %v2320 = vpop.f32.mrf.mxu0
    %2321 = vmatprep.mubr.f32.mxu0 %v2034
    %2322 = vmatmul.mubr.f32.gmra.mxu0 %v2033
    %v2323 = vpop.f32.mrf.mxu0
    %v2324 = vadd.f32 0.0, %v2323
    %v2325 = vpop.f32.mrf.mxu0
    %2326 = vmatprep.mubr.f32.mxu0 %v2037
    %2327 = vmatmul.mubr.f32.gmra.mxu0 %v2036
    %v2328 = vpop.f32.mrf.mxu0
    %v2329 = vadd.f32 0.0, %v2328
    %v2330 = vpop.f32.mrf.mxu0
    %2331 = vmatprep.mubr.f32.mxu0 %v2040
    %2332 = vmatmul.mubr.f32.gmra.mxu0 %v2039
    %v2333 = vpop.f32.mrf.mxu0
    %v2334 = vadd.f32 0.0, %v2333
    %v2335 = vpop.f32.mrf.mxu0
    %2336 = vmatprep.mubr.f32.mxu0 %v2043
    %2337 = vmatmul.mubr.f32.gmra.mxu0 %v2042
    %v2338 = vpop.f32.mrf.mxu0
    %v2339 = vadd.f32 0.0, %v2338
    %v2340 = vpop.f32.mrf.mxu0
    %2341 = vmatprep.mubr.f32.mxu0 %v2046
    %2342 = vmatmul.mubr.f32.gmra.mxu0 %v2045
    %v2343 = vpop.f32.mrf.mxu0
    %v2344 = vadd.f32 0.0, %v2343
    %v2345 = vpop.f32.mrf.mxu0
    %2346 = vmatprep.mubr.f32.mxu0 %v2049
    %2347 = vmatmul.mubr.f32.gmra.mxu0 %v2048
    %v2348 = vpop.f32.mrf.mxu0
    %v2349 = vadd.f32 0.0, %v2348
    %v2350 = vpop.f32.mrf.mxu0
    %2351 = vmatprep.mubr.f32.mxu0 %v2052
    %2352 = vmatmul.mubr.f32.gmra.mxu0 %v2051
    %v2353 = vpop.f32.mrf.mxu0
    %v2354 = vadd.f32 0.0, %v2353
    %v2355 = vpop.f32.mrf.mxu0
    %2356 = vmatprep.mubr.f32.mxu0 %v2055
    %2357 = vmatmul.mubr.f32.gmra.mxu0 %v2054
    %v2358 = vpop.f32.mrf.mxu0
    %v2359 = vadd.f32 0.0, %v2358
    %v2360 = vpop.f32.mrf.mxu0
    %2361 = vdwg.mxu0
    %2362 = vmatprep.subr.mxu0 0.0
    %2363 = vmatpush1.msra.mxu0 %v1887
    %2364 = vmatprep.subr.mxu0 0.0
    %2365 = vmatpush1.msra.mxu0 %v1886
    %2366 = vmatprep.subr.mxu0 0.0
    %2367 = vmatpush1.msra.mxu0 %v1885
    %2368 = vmatprep.subr.mxu0 0.0
    %2369 = vmatpush1.msra.mxu0 %v1884
    %2370 = vmatprep.subr.mxu0 0.0
    %2371 = vmatpush1.msra.mxu0 %v1883
    %2372 = vmatprep.subr.mxu0 0.0
    %2373 = vmatpush1.msra.mxu0 %v1882
    %2374 = vmatprep.subr.mxu0 0.0
    %2375 = vmatpush1.msra.mxu0 %v1881
    %2376 = vmatprep.subr.mxu0 0.0
    %2377 = vmatpush1.msra.mxu0 %v1880
    %2378 = vmatprep.subr.mxu0 0.0
    %2379 = vmatpush1.msra.mxu0 %v1879
    %2380 = vmatprep.subr.mxu0 0.0
    %2381 = vmatpush1.msra.mxu0 %v1878
    %2382 = vmatprep.subr.mxu0 0.0
    %2383 = vmatpush1.msra.mxu0 %v1877
    %2384 = vmatprep.subr.mxu0 0.0
    %2385 = vmatpush1.msra.mxu0 %v1876
    %2386 = vmatprep.subr.mxu0 0.0
    %2387 = vmatpush1.msra.mxu0 %v1875
    %2388 = vmatprep.subr.mxu0 0.0
    %2389 = vmatpush1.msra.mxu0 %v1874
    %2390 = vmatprep.subr.mxu0 0.0
    %2391 = vmatpush1.msra.mxu0 %v1873
    %2392 = vmatprep.subr.mxu0 0.0
    %2393 = vmatpush1.msra.mxu0 %v1872
    %2394 = vmatprep.subr.mxu0 0.0
    %2395 = vmatpush2.msra.mxu0 0.0
    %2396 = vmatprep.subr.mxu0 0.0
    %2397 = vmatpush2.msra.mxu0 0.0
    %2398 = vmatprep.subr.mxu0 0.0
    %2399 = vmatpush2.msra.mxu0 0.0
    %2400 = vmatprep.subr.mxu0 0.0
    %2401 = vmatpush2.msra.mxu0 0.0
    %2402 = vmatprep.subr.mxu0 0.0
    %2403 = vmatpush2.msra.mxu0 0.0
    %2404 = vmatprep.subr.mxu0 0.0
    %2405 = vmatpush2.msra.mxu0 0.0
    %2406 = vmatprep.subr.mxu0 0.0
    %2407 = vmatpush2.msra.mxu0 0.0
    %2408 = vmatprep.subr.mxu0 0.0
    %2409 = vmatpush2.msra.mxu0 0.0
    %2410 = vmatprep.subr.mxu0 0.0
    %2411 = vmatpush2.msra.mxu0 0.0
    %2412 = vmatprep.subr.mxu0 0.0
    %2413 = vmatpush2.msra.mxu0 0.0
    %2414 = vmatprep.subr.mxu0 0.0
    %2415 = vmatpush2.msra.mxu0 0.0
    %2416 = vmatprep.subr.mxu0 0.0
    %2417 = vmatpush2.msra.mxu0 0.0
    %2418 = vmatprep.subr.mxu0 0.0
    %2419 = vmatpush2.msra.mxu0 0.0
    %2420 = vmatprep.subr.mxu0 0.0
    %2421 = vmatpush2.msra.mxu0 0.0
    %2422 = vmatprep.subr.mxu0 0.0
    %2423 = vmatpush2.msra.mxu0 0.0
    %2424 = vmatprep.subr.mxu0 0.0
    %2425 = vmatpush2.msra.mxu0 0.0
    %2426 = vmatprep.mubr.f32.mxu0 0.0
    %2427 = vmatmul.mubr.f32.gmra.mxu0 %v1915
    %v2428 = vpop.f32.mrf.mxu0
    %v2429 = vadd.f32 %v2124, %v2428
    %v2430 = vpop.f32.mrf.mxu0
    %2431 = vmatprep.mubr.f32.mxu0 0.0
    %2432 = vmatmul.mubr.f32.gmra.mxu0 %v1918
    %v2433 = vpop.f32.mrf.mxu0
    %v2434 = vadd.f32 %v2129, %v2433
    %v2435 = vpop.f32.mrf.mxu0
    %2436 = vmatprep.mubr.f32.mxu0 0.0
    %2437 = vmatmul.mubr.f32.gmra.mxu0 %v1921
    %v2438 = vpop.f32.mrf.mxu0
    %v2439 = vadd.f32 %v2134, %v2438
    %v2440 = vpop.f32.mrf.mxu0
    %2441 = vmatprep.mubr.f32.mxu0 0.0
    %2442 = vmatmul.mubr.f32.gmra.mxu0 %v1924
    %v2443 = vpop.f32.mrf.mxu0
    %v2444 = vadd.f32 %v2139, %v2443
    %v2445 = vpop.f32.mrf.mxu0
    %2446 = vmatprep.mubr.f32.mxu0 0.0
    %2447 = vmatmul.mubr.f32.gmra.mxu0 %v1927
    %v2448 = vpop.f32.mrf.mxu0
    %v2449 = vadd.f32 %v2144, %v2448
    %v2450 = vpop.f32.mrf.mxu0
    %2451 = vmatprep.mubr.f32.mxu0 0.0
    %2452 = vmatmul.mubr.f32.gmra.mxu0 %v1930
    %v2453 = vpop.f32.mrf.mxu0
    %v2454 = vadd.f32 %v2149, %v2453
    %v2455 = vpop.f32.mrf.mxu0
    %2456 = vmatprep.mubr.f32.mxu0 0.0
    %2457 = vmatmul.mubr.f32.gmra.mxu0 %v1933
    %v2458 = vpop.f32.mrf.mxu0
    %v2459 = vadd.f32 %v2154, %v2458
    %v2460 = vpop.f32.mrf.mxu0
    %2461 = vmatprep.mubr.f32.mxu0 0.0
    %2462 = vmatmul.mubr.f32.gmra.mxu0 %v1936
    %v2463 = vpop.f32.mrf.mxu0
    %v2464 = vadd.f32 %v2159, %v2463
    %v2465 = vpop.f32.mrf.mxu0
    %2466 = vmatprep.mubr.f32.mxu0 0.0
    %2467 = vmatmul.mubr.f32.gmra.mxu0 %v1939
    %v2468 = vpop.f32.mrf.mxu0
    %v2469 = vadd.f32 %v2164, %v2468
    %v2470 = vpop.f32.mrf.mxu0
    %2471 = vmatprep.mubr.f32.mxu0 0.0
    %2472 = vmatmul.mubr.f32.gmra.mxu0 %v1942
    %v2473 = vpop.f32.mrf.mxu0
    %v2474 = vadd.f32 %v2169, %v2473
    %v2475 = vpop.f32.mrf.mxu0
    %2476 = vmatprep.mubr.f32.mxu0 0.0
    %2477 = vmatmul.mubr.f32.gmra.mxu0 %v1945
    %v2478 = vpop.f32.mrf.mxu0
    %v2479 = vadd.f32 %v2174, %v2478
    %v2480 = vpop.f32.mrf.mxu0
    %2481 = vmatprep.mubr.f32.mxu0 0.0
    %2482 = vmatmul.mubr.f32.gmra.mxu0 %v1948
    %v2483 = vpop.f32.mrf.mxu0
    %v2484 = vadd.f32 %v2179, %v2483
    %v2485 = vpop.f32.mrf.mxu0
    %2486 = vmatprep.mubr.f32.mxu0 0.0
    %2487 = vmatmul.mubr.f32.gmra.mxu0 %v1951
    %v2488 = vpop.f32.mrf.mxu0
    %v2489 = vadd.f32 %v2184, %v2488
    %v2490 = vpop.f32.mrf.mxu0
    %2491 = vmatprep.mubr.f32.mxu0 0.0
    %2492 = vmatmul.mubr.f32.gmra.mxu0 %v1954
    %v2493 = vpop.f32.mrf.mxu0
    %v2494 = vadd.f32 %v2189, %v2493
    %v2495 = vpop.f32.mrf.mxu0
    %2496 = vmatprep.mubr.f32.mxu0 0.0
    %2497 = vmatmul.mubr.f32.gmra.mxu0 %v1957
    %v2498 = vpop.f32.mrf.mxu0
    %v2499 = vadd.f32 %v2194, %v2498
    %v2500 = vpop.f32.mrf.mxu0
    %2501 = vmatprep.mubr.f32.mxu0 0.0
    %2502 = vmatmul.mubr.f32.gmra.mxu0 %v1960
    %v2503 = vpop.f32.mrf.mxu0
    %v2504 = vadd.f32 %v2199, %v2503
    %v2505 = vpop.f32.mrf.mxu0
    %2506 = vmatprep.mubr.f32.mxu0 0.0
    %2507 = vmatmul.mubr.f32.gmra.mxu0 %v1963
    %v2508 = vpop.f32.mrf.mxu0
    %v2509 = vadd.f32 %v2204, %v2508
    %v2510 = vpop.f32.mrf.mxu0
    %2511 = vmatprep.mubr.f32.mxu0 0.0
    %2512 = vmatmul.mubr.f32.gmra.mxu0 %v1966
    %v2513 = vpop.f32.mrf.mxu0
    %v2514 = vadd.f32 %v2209, %v2513
    %v2515 = vpop.f32.mrf.mxu0
    %2516 = vmatprep.mubr.f32.mxu0 0.0
    %2517 = vmatmul.mubr.f32.gmra.mxu0 %v1969
    %v2518 = vpop.f32.mrf.mxu0
    %v2519 = vadd.f32 %v2214, %v2518
    %v2520 = vpop.f32.mrf.mxu0
    %2521 = vmatprep.mubr.f32.mxu0 0.0
    %2522 = vmatmul.mubr.f32.gmra.mxu0 %v1972
    %v2523 = vpop.f32.mrf.mxu0
    %v2524 = vadd.f32 %v2219, %v2523
    %v2525 = vpop.f32.mrf.mxu0
    %2526 = vmatprep.mubr.f32.mxu0 0.0
    %2527 = vmatmul.mubr.f32.gmra.mxu0 %v1975
    %v2528 = vpop.f32.mrf.mxu0
    %v2529 = vadd.f32 %v2224, %v2528
    %v2530 = vpop.f32.mrf.mxu0
    %2531 = vmatprep.mubr.f32.mxu0 0.0
    %2532 = vmatmul.mubr.f32.gmra.mxu0 %v1978
    %v2533 = vpop.f32.mrf.mxu0
    %v2534 = vadd.f32 %v2229, %v2533
    %v2535 = vpop.f32.mrf.mxu0
    %2536 = vmatprep.mubr.f32.mxu0 0.0
    %2537 = vmatmul.mubr.f32.gmra.mxu0 %v1981
    %v2538 = vpop.f32.mrf.mxu0
    %v2539 = vadd.f32 %v2234, %v2538
    %v2540 = vpop.f32.mrf.mxu0
    %2541 = vmatprep.mubr.f32.mxu0 0.0
    %2542 = vmatmul.mubr.f32.gmra.mxu0 %v1984
    %v2543 = vpop.f32.mrf.mxu0
    %v2544 = vadd.f32 %v2239, %v2543
    %v2545 = vpop.f32.mrf.mxu0
    %2546 = vmatprep.mubr.f32.mxu0 0.0
    %2547 = vmatmul.mubr.f32.gmra.mxu0 %v1987
    %v2548 = vpop.f32.mrf.mxu0
    %v2549 = vadd.f32 %v2244, %v2548
    %v2550 = vpop.f32.mrf.mxu0
    %2551 = vmatprep.mubr.f32.mxu0 0.0
    %2552 = vmatmul.mubr.f32.gmra.mxu0 %v1990
    %v2553 = vpop.f32.mrf.mxu0
    %v2554 = vadd.f32 %v2249, %v2553
    %v2555 = vpop.f32.mrf.mxu0
    %2556 = vmatprep.mubr.f32.mxu0 0.0
    %2557 = vmatmul.mubr.f32.gmra.mxu0 %v1993
    %v2558 = vpop.f32.mrf.mxu0
    %v2559 = vadd.f32 %v2254, %v2558
    %v2560 = vpop.f32.mrf.mxu0
    %2561 = vmatprep.mubr.f32.mxu0 0.0
    %2562 = vmatmul.mubr.f32.gmra.mxu0 %v1996
    %v2563 = vpop.f32.mrf.mxu0
    %v2564 = vadd.f32 %v2259, %v2563
    %v2565 = vpop.f32.mrf.mxu0
    %2566 = vmatprep.mubr.f32.mxu0 0.0
    %2567 = vmatmul.mubr.f32.gmra.mxu0 %v1999
    %v2568 = vpop.f32.mrf.mxu0
    %v2569 = vadd.f32 %v2264, %v2568
    %v2570 = vpop.f32.mrf.mxu0
    %2571 = vmatprep.mubr.f32.mxu0 0.0
    %2572 = vmatmul.mubr.f32.gmra.mxu0 %v2002
    %v2573 = vpop.f32.mrf.mxu0
    %v2574 = vadd.f32 %v2269, %v2573
    %v2575 = vpop.f32.mrf.mxu0
    %2576 = vmatprep.mubr.f32.mxu0 0.0
    %2577 = vmatmul.mubr.f32.gmra.mxu0 %v2005
    %v2578 = vpop.f32.mrf.mxu0
    %v2579 = vadd.f32 %v2274, %v2578
    %v2580 = vpop.f32.mrf.mxu0
    %2581 = vmatprep.mubr.f32.mxu0 0.0
    %2582 = vmatmul.mubr.f32.gmra.mxu0 %v2008
    %v2583 = vpop.f32.mrf.mxu0
    %v2584 = vadd.f32 %v2279, %v2583
    %v2585 = vpop.f32.mrf.mxu0
    %2586 = vmatprep.mubr.f32.mxu0 0.0
    %2587 = vmatmul.mubr.f32.gmra.mxu0 %v2011
    %v2588 = vpop.f32.mrf.mxu0
    %v2589 = vadd.f32 %v2284, %v2588
    %v2590 = vpop.f32.mrf.mxu0
    %2591 = vmatprep.mubr.f32.mxu0 0.0
    %2592 = vmatmul.mubr.f32.gmra.mxu0 %v2014
    %v2593 = vpop.f32.mrf.mxu0
    %v2594 = vadd.f32 %v2289, %v2593
    %v2595 = vpop.f32.mrf.mxu0
    %2596 = vmatprep.mubr.f32.mxu0 0.0
    %2597 = vmatmul.mubr.f32.gmra.mxu0 %v2017
    %v2598 = vpop.f32.mrf.mxu0
    %v2599 = vadd.f32 %v2294, %v2598
    %v2600 = vpop.f32.mrf.mxu0
    %2601 = vmatprep.mubr.f32.mxu0 0.0
    %2602 = vmatmul.mubr.f32.gmra.mxu0 %v2020
    %v2603 = vpop.f32.mrf.mxu0
    %v2604 = vadd.f32 %v2299, %v2603
    %v2605 = vpop.f32.mrf.mxu0
    %2606 = vmatprep.mubr.f32.mxu0 0.0
    %2607 = vmatmul.mubr.f32.gmra.mxu0 %v2023
    %v2608 = vpop.f32.mrf.mxu0
    %v2609 = vadd.f32 %v2304, %v2608
    %v2610 = vpop.f32.mrf.mxu0
    %2611 = vmatprep.mubr.f32.mxu0 0.0
    %2612 = vmatmul.mubr.f32.gmra.mxu0 %v2026
    %v2613 = vpop.f32.mrf.mxu0
    %v2614 = vadd.f32 %v2309, %v2613
    %v2615 = vpop.f32.mrf.mxu0
    %2616 = vmatprep.mubr.f32.mxu0 0.0
    %2617 = vmatmul.mubr.f32.gmra.mxu0 %v2029
    %v2618 = vpop.f32.mrf.mxu0
    %v2619 = vadd.f32 %v2314, %v2618
    %v2620 = vpop.f32.mrf.mxu0
    %2621 = vmatprep.mubr.f32.mxu0 0.0
    %2622 = vmatmul.mubr.f32.gmra.mxu0 %v2032
    %v2623 = vpop.f32.mrf.mxu0
    %v2624 = vadd.f32 %v2319, %v2623
    %v2625 = vpop.f32.mrf.mxu0
    %2626 = vmatprep.mubr.f32.mxu0 0.0
    %2627 = vmatmul.mubr.f32.gmra.mxu0 %v2035
    %v2628 = vpop.f32.mrf.mxu0
    %v2629 = vadd.f32 %v2324, %v2628
    %v2630 = vpop.f32.mrf.mxu0
    %2631 = vmatprep.mubr.f32.mxu0 0.0
    %2632 = vmatmul.mubr.f32.gmra.mxu0 %v2038
    %v2633 = vpop.f32.mrf.mxu0
    %v2634 = vadd.f32 %v2329, %v2633
    %v2635 = vpop.f32.mrf.mxu0
    %2636 = vmatprep.mubr.f32.mxu0 0.0
    %2637 = vmatmul.mubr.f32.gmra.mxu0 %v2041
    %v2638 = vpop.f32.mrf.mxu0
    %v2639 = vadd.f32 %v2334, %v2638
    %v2640 = vpop.f32.mrf.mxu0
    %2641 = vmatprep.mubr.f32.mxu0 0.0
    %2642 = vmatmul.mubr.f32.gmra.mxu0 %v2044
    %v2643 = vpop.f32.mrf.mxu0
    %v2644 = vadd.f32 %v2339, %v2643
    %v2645 = vpop.f32.mrf.mxu0
    %2646 = vmatprep.mubr.f32.mxu0 0.0
    %2647 = vmatmul.mubr.f32.gmra.mxu0 %v2047
    %v2648 = vpop.f32.mrf.mxu0
    %v2649 = vadd.f32 %v2344, %v2648
    %v2650 = vpop.f32.mrf.mxu0
    %2651 = vmatprep.mubr.f32.mxu0 0.0
    %2652 = vmatmul.mubr.f32.gmra.mxu0 %v2050
    %v2653 = vpop.f32.mrf.mxu0
    %v2654 = vadd.f32 %v2349, %v2653
    %v2655 = vpop.f32.mrf.mxu0
    %2656 = vmatprep.mubr.f32.mxu0 0.0
    %2657 = vmatmul.mubr.f32.gmra.mxu0 %v2053
    %v2658 = vpop.f32.mrf.mxu0
    %v2659 = vadd.f32 %v2354, %v2658
    %v2660 = vpop.f32.mrf.mxu0
    %2661 = vmatprep.mubr.f32.mxu0 0.0
    %2662 = vmatmul.mubr.f32.gmra.mxu0 %v2056
    %v2663 = vpop.f32.mrf.mxu0
    %v2664 = vadd.f32 %v2359, %v2663
    %v2665 = vpop.f32.mrf.mxu0
    %2666 = vdwg.mxu0
    %vm2667 = vcmp.ge.f32.partialorder %v2429, 0.0
    %vm2668 = vcmp.ge.f32.partialorder %v2434, 0.0
    %vm2669 = vcmp.ge.f32.partialorder %v2439, 0.0
    %vm2670 = vcmp.ge.f32.partialorder %v2444, 0.0
    %vm2671 = vcmp.ge.f32.partialorder %v2449, 0.0
    %vm2672 = vcmp.ge.f32.partialorder %v2454, 0.0
    %vm2673 = vcmp.ge.f32.partialorder %v2459, 0.0
    %vm2674 = vcmp.ge.f32.partialorder %v2464, 0.0
    %vm2675 = vcmp.ge.f32.partialorder %v2469, 0.0
    %vm2676 = vcmp.ge.f32.partialorder %v2474, 0.0
    %vm2677 = vcmp.ge.f32.partialorder %v2479, 0.0
    %vm2678 = vcmp.ge.f32.partialorder %v2484, 0.0
    %vm2679 = vcmp.ge.f32.partialorder %v2489, 0.0
    %vm2680 = vcmp.ge.f32.partialorder %v2494, 0.0
    %vm2681 = vcmp.ge.f32.partialorder %v2499, 0.0
    %vm2682 = vcmp.ge.f32.partialorder %v2504, 0.0
    %vm2683 = vcmp.ge.f32.partialorder %v2509, 0.0
    %vm2684 = vcmp.ge.f32.partialorder %v2514, 0.0
    %vm2685 = vcmp.ge.f32.partialorder %v2519, 0.0
    %vm2686 = vcmp.ge.f32.partialorder %v2524, 0.0
    %vm2687 = vcmp.ge.f32.partialorder %v2529, 0.0
    %vm2688 = vcmp.ge.f32.partialorder %v2534, 0.0
    %vm2689 = vcmp.ge.f32.partialorder %v2539, 0.0
    %vm2690 = vcmp.ge.f32.partialorder %v2544, 0.0
    %vm2691 = vcmp.ge.f32.partialorder %v2549, 0.0
    %vm2692 = vcmp.ge.f32.partialorder %v2554, 0.0
    %vm2693 = vcmp.ge.f32.partialorder %v2559, 0.0
    %vm2694 = vcmp.ge.f32.partialorder %v2564, 0.0
    %vm2695 = vcmp.ge.f32.partialorder %v2569, 0.0
    %vm2696 = vcmp.ge.f32.partialorder %v2574, 0.0
    %vm2697 = vcmp.ge.f32.partialorder %v2579, 0.0
    %vm2698 = vcmp.ge.f32.partialorder %v2584, 0.0
    %vm2699 = vcmp.ge.f32.partialorder %v2589, 0.0
    %vm2700 = vcmp.ge.f32.partialorder %v2594, 0.0
    %vm2701 = vcmp.ge.f32.partialorder %v2599, 0.0
    %vm2702 = vcmp.ge.f32.partialorder %v2604, 0.0
    %vm2703 = vcmp.ge.f32.partialorder %v2609, 0.0
    %vm2704 = vcmp.ge.f32.partialorder %v2614, 0.0
    %vm2705 = vcmp.ge.f32.partialorder %v2619, 0.0
    %vm2706 = vcmp.ge.f32.partialorder %v2624, 0.0
    %vm2707 = vcmp.ge.f32.partialorder %v2629, 0.0
    %vm2708 = vcmp.ge.f32.partialorder %v2634, 0.0
    %vm2709 = vcmp.ge.f32.partialorder %v2639, 0.0
    %vm2710 = vcmp.ge.f32.partialorder %v2644, 0.0
    %vm2711 = vcmp.ge.f32.partialorder %v2649, 0.0
    %vm2712 = vcmp.ge.f32.partialorder %v2654, 0.0
    %vm2713 = vcmp.ge.f32.partialorder %v2659, 0.0
    %vm2714 = vcmp.ge.f32.partialorder %v2664, 0.0
    %v2715 = vmul.f32 %v2429, 0.2
    %v2716 = vmul.f32 %v2434, 0.2
    %v2717 = vmul.f32 %v2439, 0.2
    %v2718 = vmul.f32 %v2444, 0.2
    %v2719 = vmul.f32 %v2449, 0.2
    %v2720 = vmul.f32 %v2454, 0.2
    %v2721 = vmul.f32 %v2459, 0.2
    %v2722 = vmul.f32 %v2464, 0.2
    %v2723 = vmul.f32 %v2469, 0.2
    %v2724 = vmul.f32 %v2474, 0.2
    %v2725 = vmul.f32 %v2479, 0.2
    %v2726 = vmul.f32 %v2484, 0.2
    %v2727 = vmul.f32 %v2489, 0.2
    %v2728 = vmul.f32 %v2494, 0.2
    %v2729 = vmul.f32 %v2499, 0.2
    %v2730 = vmul.f32 %v2504, 0.2
    %v2731 = vmul.f32 %v2509, 0.2
    %v2732 = vmul.f32 %v2514, 0.2
    %v2733 = vmul.f32 %v2519, 0.2
    %v2734 = vmul.f32 %v2524, 0.2
    %v2735 = vmul.f32 %v2529, 0.2
    %v2736 = vmul.f32 %v2534, 0.2
    %v2737 = vmul.f32 %v2539, 0.2
    %v2738 = vmul.f32 %v2544, 0.2
    %v2739 = vmul.f32 %v2549, 0.2
    %v2740 = vmul.f32 %v2554, 0.2
    %v2741 = vmul.f32 %v2559, 0.2
    %v2742 = vmul.f32 %v2564, 0.2
    %v2743 = vmul.f32 %v2569, 0.2
    %v2744 = vmul.f32 %v2574, 0.2
    %v2745 = vmul.f32 %v2579, 0.2
    %v2746 = vmul.f32 %v2584, 0.2
    %v2747 = vmul.f32 %v2589, 0.2
    %v2748 = vmul.f32 %v2594, 0.2
    %v2749 = vmul.f32 %v2599, 0.2
    %v2750 = vmul.f32 %v2604, 0.2
    %v2751 = vmul.f32 %v2609, 0.2
    %v2752 = vmul.f32 %v2614, 0.2
    %v2753 = vmul.f32 %v2619, 0.2
    %v2754 = vmul.f32 %v2624, 0.2
    %v2755 = vmul.f32 %v2629, 0.2
    %v2756 = vmul.f32 %v2634, 0.2
    %v2757 = vmul.f32 %v2639, 0.2
    %v2758 = vmul.f32 %v2644, 0.2
    %v2759 = vmul.f32 %v2649, 0.2
    %v2760 = vmul.f32 %v2654, 0.2
    %v2761 = vmul.f32 %v2659, 0.2
    %v2762 = vmul.f32 %v2664, 0.2
    %v2763 = vsel %vm2667, %v2429, %v2715
    %v2764 = vsel %vm2668, %v2434, %v2716
    %v2765 = vsel %vm2669, %v2439, %v2717
    %v2766 = vsel %vm2670, %v2444, %v2718
    %v2767 = vsel %vm2671, %v2449, %v2719
    %v2768 = vsel %vm2672, %v2454, %v2720
    %v2769 = vsel %vm2673, %v2459, %v2721
    %v2770 = vsel %vm2674, %v2464, %v2722
    %v2771 = vsel %vm2675, %v2469, %v2723
    %v2772 = vsel %vm2676, %v2474, %v2724
    %v2773 = vsel %vm2677, %v2479, %v2725
    %v2774 = vsel %vm2678, %v2484, %v2726
    %v2775 = vsel %vm2679, %v2489, %v2727
    %v2776 = vsel %vm2680, %v2494, %v2728
    %v2777 = vsel %vm2681, %v2499, %v2729
    %v2778 = vsel %vm2682, %v2504, %v2730
    %v2779 = vsel %vm2683, %v2509, %v2731
    %v2780 = vsel %vm2684, %v2514, %v2732
    %v2781 = vsel %vm2685, %v2519, %v2733
    %v2782 = vsel %vm2686, %v2524, %v2734
    %v2783 = vsel %vm2687, %v2529, %v2735
    %v2784 = vsel %vm2688, %v2534, %v2736
    %v2785 = vsel %vm2689, %v2539, %v2737
    %v2786 = vsel %vm2690, %v2544, %v2738
    %v2787 = vsel %vm2691, %v2549, %v2739
    %v2788 = vsel %vm2692, %v2554, %v2740
    %v2789 = vsel %vm2693, %v2559, %v2741
    %v2790 = vsel %vm2694, %v2564, %v2742
    %v2791 = vsel %vm2695, %v2569, %v2743
    %v2792 = vsel %vm2696, %v2574, %v2744
    %v2793 = vsel %vm2697, %v2579, %v2745
    %v2794 = vsel %vm2698, %v2584, %v2746
    %v2795 = vsel %vm2699, %v2589, %v2747
    %v2796 = vsel %vm2700, %v2594, %v2748
    %v2797 = vsel %vm2701, %v2599, %v2749
    %v2798 = vsel %vm2702, %v2604, %v2750
    %v2799 = vsel %vm2703, %v2609, %v2751
    %v2800 = vsel %vm2704, %v2614, %v2752
    %v2801 = vsel %vm2705, %v2619, %v2753
    %v2802 = vsel %vm2706, %v2624, %v2754
    %v2803 = vsel %vm2707, %v2629, %v2755
    %v2804 = vsel %vm2708, %v2634, %v2756
    %v2805 = vsel %vm2709, %v2639, %v2757
    %v2806 = vsel %vm2710, %v2644, %v2758
    %v2807 = vsel %vm2711, %v2649, %v2759
    %v2808 = vsel %vm2712, %v2654, %v2760
    %v2809 = vsel %vm2713, %v2659, %v2761
    %v2810 = vsel %vm2714, %v2664, %v2762
    %s2811 = scalar_lea.vmem [#allocation5], 3456
    %v2812 = vld [vmem:[%s2811] sm:$0xff]
    %v2813 = vld [vmem:[%s2811 + $0x8] sm:$0xff]
    %v2814 = vld [vmem:[%s2811 + $0x10] sm:$0xff]
    %v2815 = vld [vmem:[%s2811 + $0x18] sm:$0xff]
    %v2816 = vld [vmem:[%s2811 + $0x20] sm:$0xff]
    %v2817 = vld [vmem:[%s2811 + $0x28] sm:$0xff]
    %v2818 = vld [vmem:[%s2811 + $0x30] sm:$0xff]
    %v2819 = vld [vmem:[%s2811 + $0x38] sm:$0xff]
    %v2820 = vld [vmem:[%s2811 + $0x40] sm:$0xff]
    %v2821 = vld [vmem:[%s2811 + $0x48] sm:$0xff]
    %v2822 = vld [vmem:[%s2811 + $0x50] sm:$0xff]
    %v2823 = vld [vmem:[%s2811 + $0x58] sm:$0xff]
    %v2824 = vld [vmem:[%s2811 + $0x60] sm:$0xff]
    %v2825 = vld [vmem:[%s2811 + $0x68] sm:$0xff]
    %v2826 = vld [vmem:[%s2811 + $0x70] sm:$0xff]
    %v2827 = vld [vmem:[%s2811 + $0x78] sm:$0xff]
    %v2828 = vld [vmem:[%s2811 + $0x80] sm:$0xff]
    %v2829 = vld [vmem:[%s2811 + $0x88] sm:$0xff]
    %v2830 = vld [vmem:[%s2811 + $0x90] sm:$0xff]
    %v2831 = vld [vmem:[%s2811 + $0x98] sm:$0xff]
    %v2832 = vld [vmem:[%s2811 + $0xa0] sm:$0xff]
    %v2833 = vld [vmem:[%s2811 + $0xa8] sm:$0xff]
    %v2834 = vld [vmem:[%s2811 + $0xb0] sm:$0xff]
    %v2835 = vld [vmem:[%s2811 + $0xb8] sm:$0xff]
    %v2836 = vld [vmem:[%s2811 + $0xc0] sm:$0xff]
    %v2837 = vld [vmem:[%s2811 + $0xc8] sm:$0xff]
    %v2838 = vld [vmem:[%s2811 + $0xd0] sm:$0xff]
    %v2839 = vld [vmem:[%s2811 + $0xd8] sm:$0xff]
    %v2840 = vld [vmem:[%s2811 + $0xe0] sm:$0xff]
    %v2841 = vld [vmem:[%s2811 + $0xe8] sm:$0xff]
    %v2842 = vld [vmem:[%s2811 + $0xf0] sm:$0xff]
    %v2843 = vld [vmem:[%s2811 + $0xf8] sm:$0xff]
    %v2844 = vld [vmem:[%s2811 + $0x100] sm:$0xff]
    %v2845 = vld [vmem:[%s2811 + $0x108] sm:$0xff]
    %v2846 = vld [vmem:[%s2811 + $0x110] sm:$0xff]
    %v2847 = vld [vmem:[%s2811 + $0x118] sm:$0xff]
    %v2848 = vld [vmem:[%s2811 + $0x120] sm:$0xff]
    %v2849 = vld [vmem:[%s2811 + $0x128] sm:$0xff]
    %v2850 = vld [vmem:[%s2811 + $0x130] sm:$0xff]
    %v2851 = vld [vmem:[%s2811 + $0x138] sm:$0xff]
    %v2852 = vld [vmem:[%s2811 + $0x140] sm:$0xff]
    %v2853 = vld [vmem:[%s2811 + $0x148] sm:$0xff]
    %v2854 = vld [vmem:[%s2811 + $0x150] sm:$0xff]
    %v2855 = vld [vmem:[%s2811 + $0x158] sm:$0xff]
    %v2856 = vld [vmem:[%s2811 + $0x160] sm:$0xff]
    %v2857 = vld [vmem:[%s2811 + $0x168] sm:$0xff]
    %v2858 = vld [vmem:[%s2811 + $0x170] sm:$0xff]
    %v2859 = vld [vmem:[%s2811 + $0x178] sm:$0xff]
    %v2860 = vld [vmem:[%s2811 + $0x180] sm:$0xff]
    %v2861 = vld [vmem:[%s2811 + $0x188] sm:$0xff]
    %v2862 = vld [vmem:[%s2811 + $0x190] sm:$0xff]
    %v2863 = vld [vmem:[%s2811 + $0x198] sm:$0xff]
    %v2864 = vld [vmem:[%s2811 + $0x1a0] sm:$0xff]
    %v2865 = vld [vmem:[%s2811 + $0x1a8] sm:$0xff]
    %v2866 = vld [vmem:[%s2811 + $0x1b0] sm:$0xff]
    %v2867 = vld [vmem:[%s2811 + $0x1b8] sm:$0xff]
    %v2868 = vld [vmem:[%s2811 + $0x1c0] sm:$0xff]
    %v2869 = vld [vmem:[%s2811 + $0x1c8] sm:$0xff]
    %v2870 = vld [vmem:[%s2811 + $0x1d0] sm:$0xff]
    %v2871 = vld [vmem:[%s2811 + $0x1d8] sm:$0xff]
    %v2872 = vld [vmem:[%s2811 + $0x1e0] sm:$0xff]
    %v2873 = vld [vmem:[%s2811 + $0x1e8] sm:$0xff]
    %v2874 = vld [vmem:[%s2811 + $0x1f0] sm:$0xff]
    %v2875 = vld [vmem:[%s2811 + $0x1f8] sm:$0xff]
    %v2876 = vld [vmem:[%s2811 + $0x200] sm:$0xff]
    %v2877 = vld [vmem:[%s2811 + $0x208] sm:$0xff]
    %v2878 = vld [vmem:[%s2811 + $0x210] sm:$0xff]
    %v2879 = vld [vmem:[%s2811 + $0x218] sm:$0xff]
    %v2880 = vld [vmem:[%s2811 + $0x220] sm:$0xff]
    %v2881 = vld [vmem:[%s2811 + $0x228] sm:$0xff]
    %v2882 = vld [vmem:[%s2811 + $0x230] sm:$0xff]
    %v2883 = vld [vmem:[%s2811 + $0x238] sm:$0xff]
    %v2884 = vld [vmem:[%s2811 + $0x240] sm:$0xff]
    %v2885 = vld [vmem:[%s2811 + $0x248] sm:$0xff]
    %v2886 = vld [vmem:[%s2811 + $0x250] sm:$0xff]
    %v2887 = vld [vmem:[%s2811 + $0x258] sm:$0xff]
    %v2888 = vld [vmem:[%s2811 + $0x260] sm:$0xff]
    %v2889 = vld [vmem:[%s2811 + $0x268] sm:$0xff]
    %v2890 = vld [vmem:[%s2811 + $0x270] sm:$0xff]
    %v2891 = vld [vmem:[%s2811 + $0x278] sm:$0xff]
    %v2892 = vld [vmem:[%s2811 + $0x280] sm:$0xff]
    %v2893 = vld [vmem:[%s2811 + $0x288] sm:$0xff]
    %v2894 = vld [vmem:[%s2811 + $0x290] sm:$0xff]
    %v2895 = vld [vmem:[%s2811 + $0x298] sm:$0xff]
    %v2896 = vld [vmem:[%s2811 + $0x2a0] sm:$0xff]
    %v2897 = vld [vmem:[%s2811 + $0x2a8] sm:$0xff]
    %v2898 = vld [vmem:[%s2811 + $0x2b0] sm:$0xff]
    %v2899 = vld [vmem:[%s2811 + $0x2b8] sm:$0xff]
    %v2900 = vld [vmem:[%s2811 + $0x2c0] sm:$0xff]
    %v2901 = vld [vmem:[%s2811 + $0x2c8] sm:$0xff]
    %v2902 = vld [vmem:[%s2811 + $0x2d0] sm:$0xff]
    %v2903 = vld [vmem:[%s2811 + $0x2d8] sm:$0xff]
    %v2904 = vld [vmem:[%s2811 + $0x2e0] sm:$0xff]
    %v2905 = vld [vmem:[%s2811 + $0x2e8] sm:$0xff]
    %v2906 = vld [vmem:[%s2811 + $0x2f0] sm:$0xff]
    %v2907 = vld [vmem:[%s2811 + $0x2f8] sm:$0xff]
    %v2908 = vld [vmem:[%s2811 + $0x300] sm:$0xff]
    %v2909 = vld [vmem:[%s2811 + $0x308] sm:$0xff]
    %v2910 = vld [vmem:[%s2811 + $0x310] sm:$0xff]
    %v2911 = vld [vmem:[%s2811 + $0x318] sm:$0xff]
    %v2912 = vld [vmem:[%s2811 + $0x320] sm:$0xff]
    %v2913 = vld [vmem:[%s2811 + $0x328] sm:$0xff]
    %v2914 = vld [vmem:[%s2811 + $0x330] sm:$0xff]
    %v2915 = vld [vmem:[%s2811 + $0x338] sm:$0xff]
    %v2916 = vld [vmem:[%s2811 + $0x340] sm:$0xff]
    %v2917 = vld [vmem:[%s2811 + $0x348] sm:$0xff]
    %v2918 = vld [vmem:[%s2811 + $0x350] sm:$0xff]
    %v2919 = vld [vmem:[%s2811 + $0x358] sm:$0xff]
    %v2920 = vld [vmem:[%s2811 + $0x360] sm:$0xff]
    %v2921 = vld [vmem:[%s2811 + $0x368] sm:$0xff]
    %v2922 = vld [vmem:[%s2811 + $0x370] sm:$0xff]
    %v2923 = vld [vmem:[%s2811 + $0x378] sm:$0xff]
    %v2924 = vld [vmem:[%s2811 + $0x380] sm:$0xff]
    %v2925 = vld [vmem:[%s2811 + $0x388] sm:$0xff]
    %v2926 = vld [vmem:[%s2811 + $0x390] sm:$0xff]
    %v2927 = vld [vmem:[%s2811 + $0x398] sm:$0xff]
    %v2928 = vld [vmem:[%s2811 + $0x3a0] sm:$0xff]
    %v2929 = vld [vmem:[%s2811 + $0x3a8] sm:$0xff]
    %v2930 = vld [vmem:[%s2811 + $0x3b0] sm:$0xff]
    %v2931 = vld [vmem:[%s2811 + $0x3b8] sm:$0xff]
    %v2932 = vld [vmem:[%s2811 + $0x3c0] sm:$0xff]
    %v2933 = vld [vmem:[%s2811 + $0x3c8] sm:$0xff]
    %v2934 = vld [vmem:[%s2811 + $0x3d0] sm:$0xff]
    %v2935 = vld [vmem:[%s2811 + $0x3d8] sm:$0xff]
    %v2936 = vld [vmem:[%s2811 + $0x3e0] sm:$0xff]
    %v2937 = vld [vmem:[%s2811 + $0x3e8] sm:$0xff]
    %v2938 = vld [vmem:[%s2811 + $0x3f0] sm:$0xff]
    %v2939 = vld [vmem:[%s2811 + $0x3f8] sm:$0xff]
    %v2940 = vld [vmem:[%s2811 + $0x400] sm:$0xff]
    %v2941 = vld [vmem:[%s2811 + $0x408] sm:$0xff]
    %v2942 = vld [vmem:[%s2811 + $0x410] sm:$0xff]
    %v2943 = vld [vmem:[%s2811 + $0x418] sm:$0xff]
    %v2944 = vld [vmem:[%s2811 + $0x420] sm:$0xff]
    %v2945 = vld [vmem:[%s2811 + $0x428] sm:$0xff]
    %v2946 = vld [vmem:[%s2811 + $0x430] sm:$0xff]
    %v2947 = vld [vmem:[%s2811 + $0x438] sm:$0xff]
    %v2948 = vld [vmem:[%s2811 + $0x440] sm:$0xff]
    %v2949 = vld [vmem:[%s2811 + $0x448] sm:$0xff]
    %v2950 = vld [vmem:[%s2811 + $0x450] sm:$0xff]
    %v2951 = vld [vmem:[%s2811 + $0x458] sm:$0xff]
    %v2952 = vld [vmem:[%s2811 + $0x460] sm:$0xff]
    %v2953 = vld [vmem:[%s2811 + $0x468] sm:$0xff]
    %v2954 = vld [vmem:[%s2811 + $0x470] sm:$0xff]
    %v2955 = vld [vmem:[%s2811 + $0x478] sm:$0xff]
    %2956 = vmatprep.subr.mxu0 0.0
    %2957 = vmatpush1.msra.mxu0 %v2778
    %2958 = vmatprep.subr.mxu0 0.0
    %2959 = vmatpush1.msra.mxu0 %v2777
    %2960 = vmatprep.subr.mxu0 0.0
    %2961 = vmatpush1.msra.mxu0 %v2776
    %2962 = vmatprep.subr.mxu0 0.0
    %2963 = vmatpush1.msra.mxu0 %v2775
    %2964 = vmatprep.subr.mxu0 0.0
    %2965 = vmatpush1.msra.mxu0 %v2774
    %2966 = vmatprep.subr.mxu0 0.0
    %2967 = vmatpush1.msra.mxu0 %v2773
    %2968 = vmatprep.subr.mxu0 0.0
    %2969 = vmatpush1.msra.mxu0 %v2772
    %2970 = vmatprep.subr.mxu0 0.0
    %2971 = vmatpush1.msra.mxu0 %v2771
    %2972 = vmatprep.subr.mxu0 0.0
    %2973 = vmatpush1.msra.mxu0 %v2770
    %2974 = vmatprep.subr.mxu0 0.0
    %2975 = vmatpush1.msra.mxu0 %v2769
    %2976 = vmatprep.subr.mxu0 0.0
    %2977 = vmatpush1.msra.mxu0 %v2768
    %2978 = vmatprep.subr.mxu0 0.0
    %2979 = vmatpush1.msra.mxu0 %v2767
    %2980 = vmatprep.subr.mxu0 0.0
    %2981 = vmatpush1.msra.mxu0 %v2766
    %2982 = vmatprep.subr.mxu0 0.0
    %2983 = vmatpush1.msra.mxu0 %v2765
    %2984 = vmatprep.subr.mxu0 0.0
    %2985 = vmatpush1.msra.mxu0 %v2764
    %2986 = vmatprep.subr.mxu0 0.0
    %2987 = vmatpush1.msra.mxu0 %v2763
    %2988 = vmatprep.subr.mxu0 0.0
    %2989 = vmatpush2.msra.mxu0 %v2794
    %2990 = vmatprep.subr.mxu0 0.0
    %2991 = vmatpush2.msra.mxu0 %v2793
    %2992 = vmatprep.subr.mxu0 0.0
    %2993 = vmatpush2.msra.mxu0 %v2792
    %2994 = vmatprep.subr.mxu0 0.0
    %2995 = vmatpush2.msra.mxu0 %v2791
    %2996 = vmatprep.subr.mxu0 0.0
    %2997 = vmatpush2.msra.mxu0 %v2790
    %2998 = vmatprep.subr.mxu0 0.0
    %2999 = vmatpush2.msra.mxu0 %v2789
    %3000 = vmatprep.subr.mxu0 0.0
    %3001 = vmatpush2.msra.mxu0 %v2788
    %3002 = vmatprep.subr.mxu0 0.0
    %3003 = vmatpush2.msra.mxu0 %v2787
    %3004 = vmatprep.subr.mxu0 0.0
    %3005 = vmatpush2.msra.mxu0 %v2786
    %3006 = vmatprep.subr.mxu0 0.0
    %3007 = vmatpush2.msra.mxu0 %v2785
    %3008 = vmatprep.subr.mxu0 0.0
    %3009 = vmatpush2.msra.mxu0 %v2784
    %3010 = vmatprep.subr.mxu0 0.0
    %3011 = vmatpush2.msra.mxu0 %v2783
    %3012 = vmatprep.subr.mxu0 0.0
    %3013 = vmatpush2.msra.mxu0 %v2782
    %3014 = vmatprep.subr.mxu0 0.0
    %3015 = vmatpush2.msra.mxu0 %v2781
    %3016 = vmatprep.subr.mxu0 0.0
    %3017 = vmatpush2.msra.mxu0 %v2780
    %3018 = vmatprep.subr.mxu0 0.0
    %3019 = vmatpush2.msra.mxu0 %v2779
    %3020 = vmatprep.mubr.f32.mxu0 %v2813
    %3021 = vmatmul.mubr.f32.gmra.mxu0 %v2812
    %v3022 = vpop.f32.mrf.mxu0
    %v3023 = vadd.f32 0.0, %v3022
    %v3024 = vpop.f32.mrf.mxu0
    %3025 = vmatprep.mubr.f32.mxu0 %v2816
    %3026 = vmatmul.mubr.f32.gmra.mxu0 %v2815
    %v3027 = vpop.f32.mrf.mxu0
    %v3028 = vadd.f32 0.0, %v3027
    %v3029 = vpop.f32.mrf.mxu0
    %3030 = vmatprep.mubr.f32.mxu0 %v2819
    %3031 = vmatmul.mubr.f32.gmra.mxu0 %v2818
    %v3032 = vpop.f32.mrf.mxu0
    %v3033 = vadd.f32 0.0, %v3032
    %v3034 = vpop.f32.mrf.mxu0
    %3035 = vmatprep.mubr.f32.mxu0 %v2822
    %3036 = vmatmul.mubr.f32.gmra.mxu0 %v2821
    %v3037 = vpop.f32.mrf.mxu0
    %v3038 = vadd.f32 0.0, %v3037
    %v3039 = vpop.f32.mrf.mxu0
    %3040 = vmatprep.mubr.f32.mxu0 %v2825
    %3041 = vmatmul.mubr.f32.gmra.mxu0 %v2824
    %v3042 = vpop.f32.mrf.mxu0
    %v3043 = vadd.f32 0.0, %v3042
    %v3044 = vpop.f32.mrf.mxu0
    %3045 = vmatprep.mubr.f32.mxu0 %v2828
    %3046 = vmatmul.mubr.f32.gmra.mxu0 %v2827
    %v3047 = vpop.f32.mrf.mxu0
    %v3048 = vadd.f32 0.0, %v3047
    %v3049 = vpop.f32.mrf.mxu0
    %3050 = vmatprep.mubr.f32.mxu0 %v2831
    %3051 = vmatmul.mubr.f32.gmra.mxu0 %v2830
    %v3052 = vpop.f32.mrf.mxu0
    %v3053 = vadd.f32 0.0, %v3052
    %v3054 = vpop.f32.mrf.mxu0
    %3055 = vmatprep.mubr.f32.mxu0 %v2834
    %3056 = vmatmul.mubr.f32.gmra.mxu0 %v2833
    %v3057 = vpop.f32.mrf.mxu0
    %v3058 = vadd.f32 0.0, %v3057
    %v3059 = vpop.f32.mrf.mxu0
    %3060 = vmatprep.mubr.f32.mxu0 %v2837
    %3061 = vmatmul.mubr.f32.gmra.mxu0 %v2836
    %v3062 = vpop.f32.mrf.mxu0
    %v3063 = vadd.f32 0.0, %v3062
    %v3064 = vpop.f32.mrf.mxu0
    %3065 = vmatprep.mubr.f32.mxu0 %v2840
    %3066 = vmatmul.mubr.f32.gmra.mxu0 %v2839
    %v3067 = vpop.f32.mrf.mxu0
    %v3068 = vadd.f32 0.0, %v3067
    %v3069 = vpop.f32.mrf.mxu0
    %3070 = vmatprep.mubr.f32.mxu0 %v2843
    %3071 = vmatmul.mubr.f32.gmra.mxu0 %v2842
    %v3072 = vpop.f32.mrf.mxu0
    %v3073 = vadd.f32 0.0, %v3072
    %v3074 = vpop.f32.mrf.mxu0
    %3075 = vmatprep.mubr.f32.mxu0 %v2846
    %3076 = vmatmul.mubr.f32.gmra.mxu0 %v2845
    %v3077 = vpop.f32.mrf.mxu0
    %v3078 = vadd.f32 0.0, %v3077
    %v3079 = vpop.f32.mrf.mxu0
    %3080 = vmatprep.mubr.f32.mxu0 %v2849
    %3081 = vmatmul.mubr.f32.gmra.mxu0 %v2848
    %v3082 = vpop.f32.mrf.mxu0
    %v3083 = vadd.f32 0.0, %v3082
    %v3084 = vpop.f32.mrf.mxu0
    %3085 = vmatprep.mubr.f32.mxu0 %v2852
    %3086 = vmatmul.mubr.f32.gmra.mxu0 %v2851
    %v3087 = vpop.f32.mrf.mxu0
    %v3088 = vadd.f32 0.0, %v3087
    %v3089 = vpop.f32.mrf.mxu0
    %3090 = vmatprep.mubr.f32.mxu0 %v2855
    %3091 = vmatmul.mubr.f32.gmra.mxu0 %v2854
    %v3092 = vpop.f32.mrf.mxu0
    %v3093 = vadd.f32 0.0, %v3092
    %v3094 = vpop.f32.mrf.mxu0
    %3095 = vmatprep.mubr.f32.mxu0 %v2858
    %3096 = vmatmul.mubr.f32.gmra.mxu0 %v2857
    %v3097 = vpop.f32.mrf.mxu0
    %v3098 = vadd.f32 0.0, %v3097
    %v3099 = vpop.f32.mrf.mxu0
    %3100 = vmatprep.mubr.f32.mxu0 %v2861
    %3101 = vmatmul.mubr.f32.gmra.mxu0 %v2860
    %v3102 = vpop.f32.mrf.mxu0
    %v3103 = vadd.f32 0.0, %v3102
    %v3104 = vpop.f32.mrf.mxu0
    %3105 = vmatprep.mubr.f32.mxu0 %v2864
    %3106 = vmatmul.mubr.f32.gmra.mxu0 %v2863
    %v3107 = vpop.f32.mrf.mxu0
    %v3108 = vadd.f32 0.0, %v3107
    %v3109 = vpop.f32.mrf.mxu0
    %3110 = vmatprep.mubr.f32.mxu0 %v2867
    %3111 = vmatmul.mubr.f32.gmra.mxu0 %v2866
    %v3112 = vpop.f32.mrf.mxu0
    %v3113 = vadd.f32 0.0, %v3112
    %v3114 = vpop.f32.mrf.mxu0
    %3115 = vmatprep.mubr.f32.mxu0 %v2870
    %3116 = vmatmul.mubr.f32.gmra.mxu0 %v2869
    %v3117 = vpop.f32.mrf.mxu0
    %v3118 = vadd.f32 0.0, %v3117
    %v3119 = vpop.f32.mrf.mxu0
    %3120 = vmatprep.mubr.f32.mxu0 %v2873
    %3121 = vmatmul.mubr.f32.gmra.mxu0 %v2872
    %v3122 = vpop.f32.mrf.mxu0
    %v3123 = vadd.f32 0.0, %v3122
    %v3124 = vpop.f32.mrf.mxu0
    %3125 = vmatprep.mubr.f32.mxu0 %v2876
    %3126 = vmatmul.mubr.f32.gmra.mxu0 %v2875
    %v3127 = vpop.f32.mrf.mxu0
    %v3128 = vadd.f32 0.0, %v3127
    %v3129 = vpop.f32.mrf.mxu0
    %3130 = vmatprep.mubr.f32.mxu0 %v2879
    %3131 = vmatmul.mubr.f32.gmra.mxu0 %v2878
    %v3132 = vpop.f32.mrf.mxu0
    %v3133 = vadd.f32 0.0, %v3132
    %v3134 = vpop.f32.mrf.mxu0
    %3135 = vmatprep.mubr.f32.mxu0 %v2882
    %3136 = vmatmul.mubr.f32.gmra.mxu0 %v2881
    %v3137 = vpop.f32.mrf.mxu0
    %v3138 = vadd.f32 0.0, %v3137
    %v3139 = vpop.f32.mrf.mxu0
    %3140 = vmatprep.mubr.f32.mxu0 %v2885
    %3141 = vmatmul.mubr.f32.gmra.mxu0 %v2884
    %v3142 = vpop.f32.mrf.mxu0
    %v3143 = vadd.f32 0.0, %v3142
    %v3144 = vpop.f32.mrf.mxu0
    %3145 = vmatprep.mubr.f32.mxu0 %v2888
    %3146 = vmatmul.mubr.f32.gmra.mxu0 %v2887
    %v3147 = vpop.f32.mrf.mxu0
    %v3148 = vadd.f32 0.0, %v3147
    %v3149 = vpop.f32.mrf.mxu0
    %3150 = vmatprep.mubr.f32.mxu0 %v2891
    %3151 = vmatmul.mubr.f32.gmra.mxu0 %v2890
    %v3152 = vpop.f32.mrf.mxu0
    %v3153 = vadd.f32 0.0, %v3152
    %v3154 = vpop.f32.mrf.mxu0
    %3155 = vmatprep.mubr.f32.mxu0 %v2894
    %3156 = vmatmul.mubr.f32.gmra.mxu0 %v2893
    %v3157 = vpop.f32.mrf.mxu0
    %v3158 = vadd.f32 0.0, %v3157
    %v3159 = vpop.f32.mrf.mxu0
    %3160 = vmatprep.mubr.f32.mxu0 %v2897
    %3161 = vmatmul.mubr.f32.gmra.mxu0 %v2896
    %v3162 = vpop.f32.mrf.mxu0
    %v3163 = vadd.f32 0.0, %v3162
    %v3164 = vpop.f32.mrf.mxu0
    %3165 = vmatprep.mubr.f32.mxu0 %v2900
    %3166 = vmatmul.mubr.f32.gmra.mxu0 %v2899
    %v3167 = vpop.f32.mrf.mxu0
    %v3168 = vadd.f32 0.0, %v3167
    %v3169 = vpop.f32.mrf.mxu0
    %3170 = vmatprep.mubr.f32.mxu0 %v2903
    %3171 = vmatmul.mubr.f32.gmra.mxu0 %v2902
    %v3172 = vpop.f32.mrf.mxu0
    %v3173 = vadd.f32 0.0, %v3172
    %v3174 = vpop.f32.mrf.mxu0
    %3175 = vmatprep.mubr.f32.mxu0 %v2906
    %3176 = vmatmul.mubr.f32.gmra.mxu0 %v2905
    %v3177 = vpop.f32.mrf.mxu0
    %v3178 = vadd.f32 0.0, %v3177
    %v3179 = vpop.f32.mrf.mxu0
    %3180 = vmatprep.mubr.f32.mxu0 %v2909
    %3181 = vmatmul.mubr.f32.gmra.mxu0 %v2908
    %v3182 = vpop.f32.mrf.mxu0
    %v3183 = vadd.f32 0.0, %v3182
    %v3184 = vpop.f32.mrf.mxu0
    %3185 = vmatprep.mubr.f32.mxu0 %v2912
    %3186 = vmatmul.mubr.f32.gmra.mxu0 %v2911
    %v3187 = vpop.f32.mrf.mxu0
    %v3188 = vadd.f32 0.0, %v3187
    %v3189 = vpop.f32.mrf.mxu0
    %3190 = vmatprep.mubr.f32.mxu0 %v2915
    %3191 = vmatmul.mubr.f32.gmra.mxu0 %v2914
    %v3192 = vpop.f32.mrf.mxu0
    %v3193 = vadd.f32 0.0, %v3192
    %v3194 = vpop.f32.mrf.mxu0
    %3195 = vmatprep.mubr.f32.mxu0 %v2918
    %3196 = vmatmul.mubr.f32.gmra.mxu0 %v2917
    %v3197 = vpop.f32.mrf.mxu0
    %v3198 = vadd.f32 0.0, %v3197
    %v3199 = vpop.f32.mrf.mxu0
    %3200 = vmatprep.mubr.f32.mxu0 %v2921
    %3201 = vmatmul.mubr.f32.gmra.mxu0 %v2920
    %v3202 = vpop.f32.mrf.mxu0
    %v3203 = vadd.f32 0.0, %v3202
    %v3204 = vpop.f32.mrf.mxu0
    %3205 = vmatprep.mubr.f32.mxu0 %v2924
    %3206 = vmatmul.mubr.f32.gmra.mxu0 %v2923
    %v3207 = vpop.f32.mrf.mxu0
    %v3208 = vadd.f32 0.0, %v3207
    %v3209 = vpop.f32.mrf.mxu0
    %3210 = vmatprep.mubr.f32.mxu0 %v2927
    %3211 = vmatmul.mubr.f32.gmra.mxu0 %v2926
    %v3212 = vpop.f32.mrf.mxu0
    %v3213 = vadd.f32 0.0, %v3212
    %v3214 = vpop.f32.mrf.mxu0
    %3215 = vmatprep.mubr.f32.mxu0 %v2930
    %3216 = vmatmul.mubr.f32.gmra.mxu0 %v2929
    %v3217 = vpop.f32.mrf.mxu0
    %v3218 = vadd.f32 0.0, %v3217
    %v3219 = vpop.f32.mrf.mxu0
    %3220 = vmatprep.mubr.f32.mxu0 %v2933
    %3221 = vmatmul.mubr.f32.gmra.mxu0 %v2932
    %v3222 = vpop.f32.mrf.mxu0
    %v3223 = vpop.f32.mrf.mxu0
    %3224 = vmatprep.mubr.f32.mxu0 %v2936
    %3225 = vmatmul.mubr.f32.gmra.mxu0 %v2935
    %v3226 = vpop.f32.mrf.mxu0
    %v3227 = vpop.f32.mrf.mxu0
    %3228 = vmatprep.mubr.f32.mxu0 %v2939
    %3229 = vmatmul.mubr.f32.gmra.mxu0 %v2938
    %v3230 = vpop.f32.mrf.mxu0
    %v3231 = vpop.f32.mrf.mxu0
    %3232 = vmatprep.mubr.f32.mxu0 %v2942
    %3233 = vmatmul.mubr.f32.gmra.mxu0 %v2941
    %v3234 = vpop.f32.mrf.mxu0
    %v3235 = vpop.f32.mrf.mxu0
    %3236 = vmatprep.mubr.f32.mxu0 %v2945
    %3237 = vmatmul.mubr.f32.gmra.mxu0 %v2944
    %v3238 = vpop.f32.mrf.mxu0
    %v3239 = vpop.f32.mrf.mxu0
    %3240 = vmatprep.mubr.f32.mxu0 %v2948
    %3241 = vmatmul.mubr.f32.gmra.mxu0 %v2947
    %v3242 = vpop.f32.mrf.mxu0
    %v3243 = vpop.f32.mrf.mxu0
    %3244 = vmatprep.mubr.f32.mxu0 %v2951
    %3245 = vmatmul.mubr.f32.gmra.mxu0 %v2950
    %v3246 = vpop.f32.mrf.mxu0
    %v3247 = vpop.f32.mrf.mxu0
    %3248 = vmatprep.mubr.f32.mxu0 %v2954
    %3249 = vmatmul.mubr.f32.gmra.mxu0 %v2953
    %v3250 = vpop.f32.mrf.mxu0
    %v3251 = vpop.f32.mrf.mxu0
    %3252 = vdwg.mxu0
    %3253 = vmatprep.subr.mxu0 0.0
    %3254 = vmatpush1.msra.mxu0 %v2810
    %3255 = vmatprep.subr.mxu0 0.0
    %3256 = vmatpush1.msra.mxu0 %v2809
    %3257 = vmatprep.subr.mxu0 0.0
    %3258 = vmatpush1.msra.mxu0 %v2808
    %3259 = vmatprep.subr.mxu0 0.0
    %3260 = vmatpush1.msra.mxu0 %v2807
    %3261 = vmatprep.subr.mxu0 0.0
    %3262 = vmatpush1.msra.mxu0 %v2806
    %3263 = vmatprep.subr.mxu0 0.0
    %3264 = vmatpush1.msra.mxu0 %v2805
    %3265 = vmatprep.subr.mxu0 0.0
    %3266 = vmatpush1.msra.mxu0 %v2804
    %3267 = vmatprep.subr.mxu0 0.0
    %3268 = vmatpush1.msra.mxu0 %v2803
    %3269 = vmatprep.subr.mxu0 0.0
    %3270 = vmatpush1.msra.mxu0 %v2802
    %3271 = vmatprep.subr.mxu0 0.0
    %3272 = vmatpush1.msra.mxu0 %v2801
    %3273 = vmatprep.subr.mxu0 0.0
    %3274 = vmatpush1.msra.mxu0 %v2800
    %3275 = vmatprep.subr.mxu0 0.0
    %3276 = vmatpush1.msra.mxu0 %v2799
    %3277 = vmatprep.subr.mxu0 0.0
    %3278 = vmatpush1.msra.mxu0 %v2798
    %3279 = vmatprep.subr.mxu0 0.0
    %3280 = vmatpush1.msra.mxu0 %v2797
    %3281 = vmatprep.subr.mxu0 0.0
    %3282 = vmatpush1.msra.mxu0 %v2796
    %3283 = vmatprep.subr.mxu0 0.0
    %3284 = vmatpush1.msra.mxu0 %v2795
    %3285 = vmatprep.subr.mxu0 0.0
    %3286 = vmatpush2.msra.mxu0 0.0
    %3287 = vmatprep.subr.mxu0 0.0
    %3288 = vmatpush2.msra.mxu0 0.0
    %3289 = vmatprep.subr.mxu0 0.0
    %3290 = vmatpush2.msra.mxu0 0.0
    %3291 = vmatprep.subr.mxu0 0.0
    %3292 = vmatpush2.msra.mxu0 0.0
    %3293 = vmatprep.subr.mxu0 0.0
    %3294 = vmatpush2.msra.mxu0 0.0
    %3295 = vmatprep.subr.mxu0 0.0
    %3296 = vmatpush2.msra.mxu0 0.0
    %3297 = vmatprep.subr.mxu0 0.0
    %3298 = vmatpush2.msra.mxu0 0.0
    %3299 = vmatprep.subr.mxu0 0.0
    %3300 = vmatpush2.msra.mxu0 0.0
    %3301 = vmatprep.subr.mxu0 0.0
    %3302 = vmatpush2.msra.mxu0 0.0
    %3303 = vmatprep.subr.mxu0 0.0
    %3304 = vmatpush2.msra.mxu0 0.0
    %3305 = vmatprep.subr.mxu0 0.0
    %3306 = vmatpush2.msra.mxu0 0.0
    %3307 = vmatprep.subr.mxu0 0.0
    %3308 = vmatpush2.msra.mxu0 0.0
    %3309 = vmatprep.subr.mxu0 0.0
    %3310 = vmatpush2.msra.mxu0 0.0
    %3311 = vmatprep.subr.mxu0 0.0
    %3312 = vmatpush2.msra.mxu0 0.0
    %3313 = vmatprep.subr.mxu0 0.0
    %3314 = vmatpush2.msra.mxu0 0.0
    %3315 = vmatprep.subr.mxu0 0.0
    %3316 = vmatpush2.msra.mxu0 0.0
    %3317 = vmatprep.mubr.f32.mxu0 0.0
    %3318 = vmatmul.mubr.f32.gmra.mxu0 %v2814
    %v3319 = vpop.f32.mrf.mxu0
    %v3320 = vadd.f32 %v3023, %v3319
    %v3321 = vpop.f32.mrf.mxu0
    %3322 = vmatprep.mubr.f32.mxu0 0.0
    %3323 = vmatmul.mubr.f32.gmra.mxu0 %v2817
    %v3324 = vpop.f32.mrf.mxu0
    %v3325 = vadd.f32 %v3028, %v3324
    %v3326 = vpop.f32.mrf.mxu0
    %3327 = vmatprep.mubr.f32.mxu0 0.0
    %3328 = vmatmul.mubr.f32.gmra.mxu0 %v2820
    %v3329 = vpop.f32.mrf.mxu0
    %v3330 = vadd.f32 %v3033, %v3329
    %v3331 = vpop.f32.mrf.mxu0
    %3332 = vmatprep.mubr.f32.mxu0 0.0
    %3333 = vmatmul.mubr.f32.gmra.mxu0 %v2823
    %v3334 = vpop.f32.mrf.mxu0
    %v3335 = vadd.f32 %v3038, %v3334
    %v3336 = vpop.f32.mrf.mxu0
    %3337 = vmatprep.mubr.f32.mxu0 0.0
    %3338 = vmatmul.mubr.f32.gmra.mxu0 %v2826
    %v3339 = vpop.f32.mrf.mxu0
    %v3340 = vadd.f32 %v3043, %v3339
    %v3341 = vpop.f32.mrf.mxu0
    %3342 = vmatprep.mubr.f32.mxu0 0.0
    %3343 = vmatmul.mubr.f32.gmra.mxu0 %v2829
    %v3344 = vpop.f32.mrf.mxu0
    %v3345 = vadd.f32 %v3048, %v3344
    %v3346 = vpop.f32.mrf.mxu0
    %3347 = vmatprep.mubr.f32.mxu0 0.0
    %3348 = vmatmul.mubr.f32.gmra.mxu0 %v2832
    %v3349 = vpop.f32.mrf.mxu0
    %v3350 = vadd.f32 %v3053, %v3349
    %v3351 = vpop.f32.mrf.mxu0
    %3352 = vmatprep.mubr.f32.mxu0 0.0
    %3353 = vmatmul.mubr.f32.gmra.mxu0 %v2835
    %v3354 = vpop.f32.mrf.mxu0
    %v3355 = vadd.f32 %v3058, %v3354
    %v3356 = vpop.f32.mrf.mxu0
    %3357 = vmatprep.mubr.f32.mxu0 0.0
    %3358 = vmatmul.mubr.f32.gmra.mxu0 %v2838
    %v3359 = vpop.f32.mrf.mxu0
    %v3360 = vadd.f32 %v3063, %v3359
    %v3361 = vpop.f32.mrf.mxu0
    %3362 = vmatprep.mubr.f32.mxu0 0.0
    %3363 = vmatmul.mubr.f32.gmra.mxu0 %v2841
    %v3364 = vpop.f32.mrf.mxu0
    %v3365 = vadd.f32 %v3068, %v3364
    %v3366 = vpop.f32.mrf.mxu0
    %3367 = vmatprep.mubr.f32.mxu0 0.0
    %3368 = vmatmul.mubr.f32.gmra.mxu0 %v2844
    %v3369 = vpop.f32.mrf.mxu0
    %v3370 = vadd.f32 %v3073, %v3369
    %v3371 = vpop.f32.mrf.mxu0
    %3372 = vmatprep.mubr.f32.mxu0 0.0
    %3373 = vmatmul.mubr.f32.gmra.mxu0 %v2847
    %v3374 = vpop.f32.mrf.mxu0
    %v3375 = vadd.f32 %v3078, %v3374
    %v3376 = vpop.f32.mrf.mxu0
    %3377 = vmatprep.mubr.f32.mxu0 0.0
    %3378 = vmatmul.mubr.f32.gmra.mxu0 %v2850
    %v3379 = vpop.f32.mrf.mxu0
    %v3380 = vadd.f32 %v3083, %v3379
    %v3381 = vpop.f32.mrf.mxu0
    %3382 = vmatprep.mubr.f32.mxu0 0.0
    %3383 = vmatmul.mubr.f32.gmra.mxu0 %v2853
    %v3384 = vpop.f32.mrf.mxu0
    %v3385 = vadd.f32 %v3088, %v3384
    %v3386 = vpop.f32.mrf.mxu0
    %3387 = vmatprep.mubr.f32.mxu0 0.0
    %3388 = vmatmul.mubr.f32.gmra.mxu0 %v2856
    %v3389 = vpop.f32.mrf.mxu0
    %v3390 = vadd.f32 %v3093, %v3389
    %v3391 = vpop.f32.mrf.mxu0
    %3392 = vmatprep.mubr.f32.mxu0 0.0
    %3393 = vmatmul.mubr.f32.gmra.mxu0 %v2859
    %v3394 = vpop.f32.mrf.mxu0
    %v3395 = vadd.f32 %v3098, %v3394
    %v3396 = vpop.f32.mrf.mxu0
    %3397 = vmatprep.mubr.f32.mxu0 0.0
    %3398 = vmatmul.mubr.f32.gmra.mxu0 %v2862
    %v3399 = vpop.f32.mrf.mxu0
    %v3400 = vadd.f32 %v3103, %v3399
    %v3401 = vpop.f32.mrf.mxu0
    %3402 = vmatprep.mubr.f32.mxu0 0.0
    %3403 = vmatmul.mubr.f32.gmra.mxu0 %v2865
    %v3404 = vpop.f32.mrf.mxu0
    %v3405 = vadd.f32 %v3108, %v3404
    %v3406 = vpop.f32.mrf.mxu0
    %3407 = vmatprep.mubr.f32.mxu0 0.0
    %3408 = vmatmul.mubr.f32.gmra.mxu0 %v2868
    %v3409 = vpop.f32.mrf.mxu0
    %v3410 = vadd.f32 %v3113, %v3409
    %v3411 = vpop.f32.mrf.mxu0
    %3412 = vmatprep.mubr.f32.mxu0 0.0
    %3413 = vmatmul.mubr.f32.gmra.mxu0 %v2871
    %v3414 = vpop.f32.mrf.mxu0
    %v3415 = vadd.f32 %v3118, %v3414
    %v3416 = vpop.f32.mrf.mxu0
    %3417 = vmatprep.mubr.f32.mxu0 0.0
    %3418 = vmatmul.mubr.f32.gmra.mxu0 %v2874
    %v3419 = vpop.f32.mrf.mxu0
    %v3420 = vadd.f32 %v3123, %v3419
    %v3421 = vpop.f32.mrf.mxu0
    %3422 = vmatprep.mubr.f32.mxu0 0.0
    %3423 = vmatmul.mubr.f32.gmra.mxu0 %v2877
    %v3424 = vpop.f32.mrf.mxu0
    %v3425 = vadd.f32 %v3128, %v3424
    %v3426 = vpop.f32.mrf.mxu0
    %3427 = vmatprep.mubr.f32.mxu0 0.0
    %3428 = vmatmul.mubr.f32.gmra.mxu0 %v2880
    %v3429 = vpop.f32.mrf.mxu0
    %v3430 = vadd.f32 %v3133, %v3429
    %v3431 = vpop.f32.mrf.mxu0
    %3432 = vmatprep.mubr.f32.mxu0 0.0
    %3433 = vmatmul.mubr.f32.gmra.mxu0 %v2883
    %v3434 = vpop.f32.mrf.mxu0
    %v3435 = vadd.f32 %v3138, %v3434
    %v3436 = vpop.f32.mrf.mxu0
    %3437 = vmatprep.mubr.f32.mxu0 0.0
    %3438 = vmatmul.mubr.f32.gmra.mxu0 %v2886
    %v3439 = vpop.f32.mrf.mxu0
    %v3440 = vadd.f32 %v3143, %v3439
    %v3441 = vpop.f32.mrf.mxu0
    %3442 = vmatprep.mubr.f32.mxu0 0.0
    %3443 = vmatmul.mubr.f32.gmra.mxu0 %v2889
    %v3444 = vpop.f32.mrf.mxu0
    %v3445 = vadd.f32 %v3148, %v3444
    %v3446 = vpop.f32.mrf.mxu0
    %3447 = vmatprep.mubr.f32.mxu0 0.0
    %3448 = vmatmul.mubr.f32.gmra.mxu0 %v2892
    %v3449 = vpop.f32.mrf.mxu0
    %v3450 = vadd.f32 %v3153, %v3449
    %v3451 = vpop.f32.mrf.mxu0
    %3452 = vmatprep.mubr.f32.mxu0 0.0
    %3453 = vmatmul.mubr.f32.gmra.mxu0 %v2895
    %v3454 = vpop.f32.mrf.mxu0
    %v3455 = vadd.f32 %v3158, %v3454
    %v3456 = vpop.f32.mrf.mxu0
    %3457 = vmatprep.mubr.f32.mxu0 0.0
    %3458 = vmatmul.mubr.f32.gmra.mxu0 %v2898
    %v3459 = vpop.f32.mrf.mxu0
    %v3460 = vadd.f32 %v3163, %v3459
    %v3461 = vpop.f32.mrf.mxu0
    %3462 = vmatprep.mubr.f32.mxu0 0.0
    %3463 = vmatmul.mubr.f32.gmra.mxu0 %v2901
    %v3464 = vpop.f32.mrf.mxu0
    %v3465 = vadd.f32 %v3168, %v3464
    %v3466 = vpop.f32.mrf.mxu0
    %3467 = vmatprep.mubr.f32.mxu0 0.0
    %3468 = vmatmul.mubr.f32.gmra.mxu0 %v2904
    %v3469 = vpop.f32.mrf.mxu0
    %v3470 = vadd.f32 %v3173, %v3469
    %v3471 = vpop.f32.mrf.mxu0
    %3472 = vmatprep.mubr.f32.mxu0 0.0
    %3473 = vmatmul.mubr.f32.gmra.mxu0 %v2907
    %v3474 = vpop.f32.mrf.mxu0
    %v3475 = vadd.f32 %v3178, %v3474
    %v3476 = vpop.f32.mrf.mxu0
    %3477 = vmatprep.mubr.f32.mxu0 0.0
    %3478 = vmatmul.mubr.f32.gmra.mxu0 %v2910
    %v3479 = vpop.f32.mrf.mxu0
    %v3480 = vadd.f32 %v3183, %v3479
    %v3481 = vpop.f32.mrf.mxu0
    %3482 = vmatprep.mubr.f32.mxu0 0.0
    %3483 = vmatmul.mubr.f32.gmra.mxu0 %v2913
    %v3484 = vpop.f32.mrf.mxu0
    %v3485 = vadd.f32 %v3188, %v3484
    %v3486 = vpop.f32.mrf.mxu0
    %3487 = vmatprep.mubr.f32.mxu0 0.0
    %3488 = vmatmul.mubr.f32.gmra.mxu0 %v2916
    %v3489 = vpop.f32.mrf.mxu0
    %v3490 = vadd.f32 %v3193, %v3489
    %v3491 = vpop.f32.mrf.mxu0
    %3492 = vmatprep.mubr.f32.mxu0 0.0
    %3493 = vmatmul.mubr.f32.gmra.mxu0 %v2919
    %v3494 = vpop.f32.mrf.mxu0
    %v3495 = vadd.f32 %v3198, %v3494
    %v3496 = vpop.f32.mrf.mxu0
    %3497 = vmatprep.mubr.f32.mxu0 0.0
    %3498 = vmatmul.mubr.f32.gmra.mxu0 %v2922
    %v3499 = vpop.f32.mrf.mxu0
    %v3500 = vadd.f32 %v3203, %v3499
    %v3501 = vpop.f32.mrf.mxu0
    %3502 = vmatprep.mubr.f32.mxu0 0.0
    %3503 = vmatmul.mubr.f32.gmra.mxu0 %v2925
    %v3504 = vpop.f32.mrf.mxu0
    %v3505 = vadd.f32 %v3208, %v3504
    %v3506 = vpop.f32.mrf.mxu0
    %3507 = vmatprep.mubr.f32.mxu0 0.0
    %3508 = vmatmul.mubr.f32.gmra.mxu0 %v2928
    %v3509 = vpop.f32.mrf.mxu0
    %v3510 = vadd.f32 %v3213, %v3509
    %v3511 = vpop.f32.mrf.mxu0
    %3512 = vmatprep.mubr.f32.mxu0 0.0
    %3513 = vmatmul.mubr.f32.gmra.mxu0 %v2931
    %v3514 = vpop.f32.mrf.mxu0
    %v3515 = vadd.f32 %v3218, %v3514
    %v3516 = vpop.f32.mrf.mxu0
    %3517 = vmatprep.mubr.f32.mxu0 0.0
    %3518 = vmatmul.mubr.f32.gmra.mxu0 %v2934
    %v3519 = vpop.f32.mrf.mxu0
    %v3520 = vpop.f32.mrf.mxu0
    %3521 = vmatprep.mubr.f32.mxu0 0.0
    %3522 = vmatmul.mubr.f32.gmra.mxu0 %v2937
    %v3523 = vpop.f32.mrf.mxu0
    %v3524 = vpop.f32.mrf.mxu0
    %3525 = vmatprep.mubr.f32.mxu0 0.0
    %3526 = vmatmul.mubr.f32.gmra.mxu0 %v2940
    %v3527 = vpop.f32.mrf.mxu0
    %v3528 = vpop.f32.mrf.mxu0
    %3529 = vmatprep.mubr.f32.mxu0 0.0
    %3530 = vmatmul.mubr.f32.gmra.mxu0 %v2943
    %v3531 = vpop.f32.mrf.mxu0
    %v3532 = vpop.f32.mrf.mxu0
    %3533 = vmatprep.mubr.f32.mxu0 0.0
    %3534 = vmatmul.mubr.f32.gmra.mxu0 %v2946
    %v3535 = vpop.f32.mrf.mxu0
    %v3536 = vpop.f32.mrf.mxu0
    %3537 = vmatprep.mubr.f32.mxu0 0.0
    %3538 = vmatmul.mubr.f32.gmra.mxu0 %v2949
    %v3539 = vpop.f32.mrf.mxu0
    %v3540 = vpop.f32.mrf.mxu0
    %3541 = vmatprep.mubr.f32.mxu0 0.0
    %3542 = vmatmul.mubr.f32.gmra.mxu0 %v2952
    %v3543 = vpop.f32.mrf.mxu0
    %v3544 = vpop.f32.mrf.mxu0
    %3545 = vmatprep.mubr.f32.mxu0 0.0
    %3546 = vmatmul.mubr.f32.gmra.mxu0 %v2955
    %v3547 = vpop.f32.mrf.mxu0
    %v3548 = vpop.f32.mrf.mxu0
    %3549 = vdwg.mxu0
    %3550 = vst [vmem:[#allocation7] sm:$0xff] %v3320
    %3551 = vst [vmem:[#allocation7 + $0x8] sm:$0xff] %v3325
    %3552 = vst [vmem:[#allocation7 + $0x10] sm:$0xff] %v3330
    %3553 = vst [vmem:[#allocation7 + $0x18] sm:$0xff] %v3335
    %3554 = vst [vmem:[#allocation7 + $0x20] sm:$0xff] %v3340
    %3555 = vst [vmem:[#allocation7 + $0x28] sm:$0xff] %v3345
    %3556 = vst [vmem:[#allocation7 + $0x30] sm:$0xff] %v3350
    %3557 = vst [vmem:[#allocation7 + $0x38] sm:$0xff] %v3355
    %3558 = vst [vmem:[#allocation7 + $0x40] sm:$0xff] %v3360
    %3559 = vst [vmem:[#allocation7 + $0x48] sm:$0xff] %v3365
    %3560 = vst [vmem:[#allocation7 + $0x50] sm:$0xff] %v3370
    %3561 = vst [vmem:[#allocation7 + $0x58] sm:$0xff] %v3375
    %3562 = vst [vmem:[#allocation7 + $0x60] sm:$0xff] %v3380
    %3563 = vst [vmem:[#allocation7 + $0x68] sm:$0xff] %v3385
    %3564 = vst [vmem:[#allocation7 + $0x70] sm:$0xff] %v3390
    %3565 = vst [vmem:[#allocation7 + $0x78] sm:$0xff] %v3395
    %3566 = vst [vmem:[#allocation7 + $0x80] sm:$0xff] %v3400
    %3567 = vst [vmem:[#allocation7 + $0x88] sm:$0xff] %v3405
    %3568 = vst [vmem:[#allocation7 + $0x90] sm:$0xff] %v3410
    %3569 = vst [vmem:[#allocation7 + $0x98] sm:$0xff] %v3415
    %3570 = vst [vmem:[#allocation7 + $0xa0] sm:$0xff] %v3420
    %3571 = vst [vmem:[#allocation7 + $0xa8] sm:$0xff] %v3425
    %3572 = vst [vmem:[#allocation7 + $0xb0] sm:$0xff] %v3430
    %3573 = vst [vmem:[#allocation7 + $0xb8] sm:$0xff] %v3435
    %3574 = vst [vmem:[#allocation7 + $0xc0] sm:$0xff] %v3440
    %3575 = vst [vmem:[#allocation7 + $0xc8] sm:$0xff] %v3445
    %3576 = vst [vmem:[#allocation7 + $0xd0] sm:$0xff] %v3450
    %3577 = vst [vmem:[#allocation7 + $0xd8] sm:$0xff] %v3455
    %3578 = vst [vmem:[#allocation7 + $0xe0] sm:$0xff] %v3460
    %3579 = vst [vmem:[#allocation7 + $0xe8] sm:$0xff] %v3465
    %3580 = vst [vmem:[#allocation7 + $0xf0] sm:$0xff] %v3470
    %3581 = vst [vmem:[#allocation7 + $0xf8] sm:$0xff] %v3475
    %3582 = vst [vmem:[#allocation7 + $0x100] sm:$0xff] %v3480
    %3583 = vst [vmem:[#allocation7 + $0x108] sm:$0xff] %v3485
    %3584 = vst [vmem:[#allocation7 + $0x110] sm:$0xff] %v3490
    %3585 = vst [vmem:[#allocation7 + $0x118] sm:$0xff] %v3495
    %3586 = vst [vmem:[#allocation7 + $0x120] sm:$0xff] %v3500
    %3587 = vst [vmem:[#allocation7 + $0x128] sm:$0xff] %v3505
    %3588 = vst [vmem:[#allocation7 + $0x130] sm:$0xff] %v3510
    %3589 = vst [vmem:[#allocation7 + $0x138] sm:$0xff] %v3515
    // Predicated region
    $region18: #{tpu_custom_call.1} parent=1 // pred_check
      _
    $region19: #{tpu_custom_call.1} parent=1 // pred_check_branch
      %3591 = sbr.rel (0) target = $region21
    $region20: #{tpu_custom_call.1} parent=1 // pred_region
      %s3593 = ssub.s32 5120, 5120
      %3594 = vsyncadd [#allocation4], %s3593
      %s3595 = sshll.u32 [#allocation7], 4
      %s3596 = int_to_ptr.vmem [resolvable:$true] %s3595
      %3601 = dma.vmem_to_hbm [thread:$0]  %s3596, 5120, %s2, [#allocation4], 128, 128, 8
    $region21: #{tpu_custom_call.1} parent=1 // pred_fallthru
      _
    // Predicated region
    $region22: #{tpu_custom_call.1} parent=1 // pred_check
      _
    $region23: #{tpu_custom_call.1} parent=1 // pred_check_branch
      %3603 = sbr.rel (0) target = $region25
    $region24: #{tpu_custom_call.1} parent=1 // pred_region
      %s3605 = ssub.s32 3072, 3072
      %3606 = vsyncadd [#allocation9], %s3605
      %s3607 = sshll.u32 [#allocation8], 4
      %s3608 = int_to_ptr.vmem [resolvable:$true] %s3607
      %3613 = dma.vmem_to_hbm [thread:$0]  %s3608, 3072, %s3, [#allocation9], 128, 128, 8
    $region25: #{tpu_custom_call.1} parent=1 // pred_fallthru
      _
    // Predicated region
    $region26: #{tpu_custom_call.1} parent=1 // pred_check
      _
    $region27: #{tpu_custom_call.1} parent=1 // pred_check_branch
      %3615 = sbr.rel (0) target = $region29
    $region28: #{tpu_custom_call.1} parent=1 // pred_region
      %3616 = dma.done [#allocation4], 5120
    $region29: #{tpu_custom_call.1} parent=1 // pred_fallthru
      _
    // Predicated region
    $region30: #{tpu_custom_call.1} parent=1 // pred_check
      _
    $region31: #{tpu_custom_call.1} parent=1 // pred_check_branch
      %3618 = sbr.rel (0) target = $region33
    $region32: #{tpu_custom_call.1} parent=1 // pred_region
      %3619 = dma.done [#allocation9], 3072
    $region33: #{tpu_custom_call.1} parent=1 // pred_fallthru
      _
    %3620 = vsyncpa [#allocation3], 1
    %3621 = vsyncpa [#allocation6], 1
    %3622 = vsyncpa [#allocation4], 1
    %3623 = vsyncpa [#allocation9], 1

</llo_original>
